<compile_context>
chip_gen: v5e
topology: v5e:2x2
jax: 0.10.0
libtpu: 0.0.40
codegen_flags: <defaults>
</compile_context>

<pallas_src>
import math
import numpy as np
import jax
import jax.numpy as jnp
from jax.experimental import pallas as pl
from jax.experimental.pallas import tpu as pltpu

# ----------------------------- configuration --------------------------------
BATCH       = 2
SEQ_LEN     = 8
INPUT_DIM   = 32          # d_model
NUM_HEADS   = 4
NUM_LAYERS  = 2
DIM_FF      = 2048        # nn.TransformerEncoderLayer default dim_feedforward
N_TICKERS   = 4
DH          = INPUT_DIM // NUM_HEADS
BS          = BATCH * SEQ_LEN
OUT_LANES   = 128         # lane-dense padded output width
FEATURE_ATTN_ENABLED = True
FEATURE_ATTN = 1.0 if FEATURE_ATTN_ENABLED else 0.0
LN_EPS      = 1e-5

QKV_PAD     = 128         # q/k/v each occupy a 128-lane slab of the fused proj
FF_CHUNK    = 512
N_FF_CHUNKS = DIM_FF // FF_CHUNK

# const slab rows (lane width = INPUT_DIM)
ROW_POS  = 0                       # rows 0:BS   positional embedding (tiled)
ROW_FW   = 16                      # row  16     feature weights
ROW_MASK = 24                      # rows 24:40  block-diagonal attn mask (BSxBS)
ROW_HM   = 40                      # rows 40+8h  per-head lane masks
CONST_ROWS = ROW_HM + 8 * NUM_HEADS

# per-layer vector slab rows (lane width = INPUT_DIM)
LV_BQ, LV_BK, LV_BV, LV_BO = 0, 1, 2, 3
LV_G1, LV_BE1, LV_G2, LV_BE2 = 4, 5, 6, 7
LV_B2 = 8
LV_WO = 16                         # rows 16:48  out-projection weight (D x D)
LVEC_ROWS = 48

# head slab rows (lane width = OUT_LANES)
HD_WH1, HD_BH1 = 0, 32             # wh1 rows 0:32 lanes 0:64, bh1 row 32
HD_WH2, HD_BH2 = 40, 104           # wh2 rows 40:104, bh2 row 104
HD_PRELU = 112                     # PReLU slope at [112, 0]
HEAD_ROWS = 120


# ------------------------------- kernel -------------------------------------
def _ln(x, g, b):
    mu = jnp.mean(x, axis=-1, keepdims=True)
    xc = x - mu
    var = jnp.mean(xc * xc, axis=-1, keepdims=True)
    return xc * jax.lax.rsqrt(var + LN_EPS) * g + b


def trader_kernel(x_ref, const_ref, wqkv_ref, lvec_ref, b1_ref, w1_ref, w2_ref,
                  head_ref, out_ref, x_s):
    l = pl.program_id(0)
    D = INPUT_DIM
    inv_sqrt_dh = 1.0 / math.sqrt(DH)

    # ---- first grid step: feature scaling + positional embedding -> carry ----
    @pl.when(l == 0)
    def _():
        fw = const_ref[ROW_FW:ROW_FW + 1, :]
        pos = const_ref[ROW_POS:ROW_POS + BS, :]
        x_s[...] = x_ref[...] * (fw * FEATURE_ATTN) + pos

    x = x_s[...]                                           # (BS, D)
    neg_mask = const_ref[ROW_MASK:ROW_MASK + BS, 0:BS]     # (BS, BS) block-diag

    # ---- fused, lane-aligned Q/K/V projection (bf16 weights, f32 acc) ----
    qkv = jnp.dot(x.astype(jnp.bfloat16), wqkv_ref[0],
                  preferred_element_type=jnp.float32)      # (BS, 3*128)
    q = qkv[:, 0:D] + lvec_ref[0, LV_BQ:LV_BQ + 1, :]
    k = qkv[:, QKV_PAD:QKV_PAD + D] + lvec_ref[0, LV_BK:LV_BK + 1, :]
    v = qkv[:, 2 * QKV_PAD:2 * QKV_PAD + D] + lvec_ref[0, LV_BV:LV_BV + 1, :]

    # ---- multi-head attention via lane-masked K/V (no sub-128 lane slices) ---
    heads = jnp.zeros((BS, D), jnp.float32)
    for h in range(NUM_HEADS):
        hm = const_ref[ROW_HM + 8 * h:ROW_HM + 8 * h + 1, :]   # (1, D) 0/1 mask
        s = jax.lax.dot_general(q, k * hm, (((1,), (1,)), ((), ())),
                                preferred_element_type=jnp.float32)  # (BS, BS)
        s = s * inv_sqrt_dh + neg_mask
        s = s - jnp.max(s, axis=-1, keepdims=True)
        e = jnp.exp(s)
        p = e * pl.reciprocal(jnp.sum(e, axis=-1, keepdims=True), approx=False)
        # head h's output lands in its own lane group of the (BS, D) tile
        heads = heads + jnp.dot(p, v * hm, preferred_element_type=jnp.float32)

    wo = lvec_ref[0, LV_WO:LV_WO + D, :]                   # (D, D) f32
    attn = jnp.dot(heads, wo, preferred_element_type=jnp.float32) \
        + lvec_ref[0, LV_BO:LV_BO + 1, :]
    x = _ln(x + attn,
            lvec_ref[0, LV_G1:LV_G1 + 1, :], lvec_ref[0, LV_BE1:LV_BE1 + 1, :])

    # ---- feed-forward, chunked over DIM_FF to bound live vregs ----
    x_bf = x.astype(jnp.bfloat16)
    ff = jnp.zeros((BS, D), jnp.float32)
    for c in range(N_FF_CHUNKS):
        c0 = c * FF_CHUNK
        h1 = jnp.dot(x_bf, w1_ref[0, :, c0:c0 + FF_CHUNK],
                     preferred_element_type=jnp.float32) \
            + b1_ref[0, :, c0:c0 + FF_CHUNK]
        h1 = jnp.maximum(h1, 0.0)
        ff = ff + jnp.dot(h1.astype(jnp.bfloat16), w2_ref[0, c0:c0 + FF_CHUNK, :],
                          preferred_element_type=jnp.float32)
    ff = ff + lvec_ref[0, LV_B2:LV_B2 + 1, :]
    x = _ln(x + ff,
            lvec_ref[0, LV_G2:LV_G2 + 1, :], lvec_ref[0, LV_BE2:LV_BE2 + 1, :])
    x_s[...] = x

    # ---- MLP head on last layer only; lane-dense (BS, 128) unmasked store ----
    @pl.when(l == NUM_LAYERS - 1)
    def _():
        wh1 = head_ref[HD_WH1:HD_WH1 + D, 0:64]
        bh1 = head_ref[HD_BH1:HD_BH1 + 1, 0:64]
        m = jnp.dot(x, wh1, preferred_element_type=jnp.float32) + bh1
        a = head_ref[HD_PRELU:HD_PRELU + 1, 0:1]           # PReLU slope
        m = jnp.where(m > 0, m, m * a)
        wh2 = head_ref[HD_WH2:HD_WH2 + 64, :]
        bh2 = head_ref[HD_BH2:HD_BH2 + 1, :]
        out_ref[...] = jnp.dot(m, wh2, preferred_element_type=jnp.float32) + bh2


# ------------------------------- wrapper -------------------------------------
def transformer_trader(x, packed):
    B, S, D = x.shape
    x2 = x.reshape(B * S, D)                               # fold batch into M

    in_specs = [
        pl.BlockSpec((BS, D), lambda l: (0, 0)),                     # x
        pl.BlockSpec((CONST_ROWS, D), lambda l: (0, 0)),             # const slab
        pl.BlockSpec((1, D, 3 * QKV_PAD), lambda l: (l, 0, 0)),      # wqkv / layer
        pl.BlockSpec((1, LVEC_ROWS, D), lambda l: (l, 0, 0)),        # lvec / layer
        pl.BlockSpec((1, 1, DIM_FF), lambda l: (l, 0, 0)),           # b1   / layer
        pl.BlockSpec((1, D, DIM_FF), lambda l: (l, 0, 0)),           # w1   / layer
        pl.BlockSpec((1, DIM_FF, D), lambda l: (l, 0, 0)),           # w2   / layer
        pl.BlockSpec((HEAD_ROWS, OUT_LANES), lambda l: (0, 0)),      # head slab
    ]
    out_full = pl.pallas_call(
        trader_kernel,
        out_shape=jax.ShapeDtypeStruct((BS, OUT_LANES), jnp.float32),
        grid_spec=pltpu.PrefetchScalarGridSpec(
            num_scalar_prefetch=0,
            grid=(NUM_LAYERS,),
            in_specs=in_specs,
            out_specs=pl.BlockSpec((BS, OUT_LANES), lambda l: (0, 0)),
            scratch_shapes=[pltpu.VMEM((BS, D), jnp.float32)],       # carried x
        ),
        compiler_params=pltpu.CompilerParams(
            dimension_semantics=("arbitrary",)),
    )(x2, packed['const'], packed['wqkv'], packed['lvec'],
      packed['b1'], packed['w1'], packed['w2'], packed['head'])

    # last time-step of each sample (rows S-1, 2S-1, ...); first N_TICKERS lanes
    return out_full[S - 1::S, :N_TICKERS]                  # (B, N_TICKERS)


# --------------------------- parameter init / packing ------------------------
def init_params(key):
    keys = jax.random.split(key, 12)
    n = lambda k, s, sc=0.05: sc * jax.random.normal(k, s, jnp.float32)
    L, D, F = NUM_LAYERS, INPUT_DIM, DIM_FF
    return {
        'pos':  jax.random.normal(keys[0], (1, SEQ_LEN, D), jnp.float32),
        'fw':   jnp.ones((D,), jnp.float32),
        # fused in-projection (y = x @ W + b orientation): [Wq | Wk | Wv]
        'wqkv': n(keys[1], (L, D, 3 * D)), 'bqkv': n(keys[2], (L, 3 * D)),
        'wo':   n(keys[3], (L, D, D)),     'bo':   n(keys[4], (L, D)),
        # feed-forward weights stored in bf16 (halved HBM/VMEM traffic)
        'w1':   n(keys[5], (L, D, F)).astype(jnp.bfloat16), 'b1': n(keys[6], (L, F)),
        'w2':   n(keys[7], (L, F, D)).astype(jnp.bfloat16), 'b2': n(keys[8], (L, D)),
        'g1':  jnp.ones((L, D), jnp.float32), 'be1': jnp.zeros((L, D), jnp.float32),
        'g2':  jnp.ones((L, D), jnp.float32), 'be2': jnp.zeros((L, D), jnp.float32),
        'wh1': n(keys[9], (D, 64)),          'bh1': jnp.zeros((64,), jnp.float32),
        'prelu': jnp.full((1,), 0.25, jnp.float32),
        'wh2': n(keys[10], (64, N_TICKERS)), 'bh2': jnp.zeros((N_TICKERS,), jnp.float32),
    }


def pack_params(p):
    """Consolidate small parameters into slabs and lay out weights lane-aligned."""
    L, D, F = NUM_LAYERS, INPUT_DIM, DIM_FF
    f32 = np.float32

    const = np.zeros((CONST_ROWS, D), f32)
    const[ROW_POS:ROW_POS + BS, :] = np.tile(np.asarray(p['pos'][0], f32), (BATCH, 1))
    const[ROW_FW, :] = np.asarray(p['fw'], f32)
    r = np.arange(BS)
    same = (r[:, None] // SEQ_LEN) == (r[None, :] // SEQ_LEN)
    const[ROW_MASK:ROW_MASK + BS, 0:BS] = np.where(same, 0.0, -1e30).astype(f32)
    lane = np.arange(D)
    for h in range(NUM_HEADS):
        const[ROW_HM + 8 * h, :] = ((lane // DH) == h).astype(f32)

    wqkv = np.asarray(p['wqkv'], f32)
    wqkv_p = np.zeros((L, D, 3 * QKV_PAD), f32)            # q/k/v on 128-lane slabs
    wqkv_p[:, :, 0:D] = wqkv[:, :, 0:D]
    wqkv_p[:, :, QKV_PAD:QKV_PAD + D] = wqkv[:, :, D:2 * D]
    wqkv_p[:, :, 2 * QKV_PAD:2 * QKV_PAD + D] = wqkv[:, :, 2 * D:3 * D]

    bqkv = np.asarray(p['bqkv'], f32)
    lvec = np.zeros((L, LVEC_ROWS, D), f32)
    lvec[:, LV_BQ, :] = bqkv[:, 0:D]
    lvec[:, LV_BK, :] = bqkv[:, D:2 * D]
    lvec[:, LV_BV, :] = bqkv[:, 2 * D:3 * D]
    lvec[:, LV_BO, :] = np.asarray(p['bo'], f32)
    lvec[:, LV_G1, :] = np.asarray(p['g1'], f32)
    lvec[:, LV_BE1, :] = np.asarray(p['be1'], f32)
    lvec[:, LV_G2, :] = np.asarray(p['g2'], f32)
    lvec[:, LV_BE2, :] = np.asarray(p['be2'], f32)
    lvec[:, LV_B2, :] = np.asarray(p['b2'], f32)
    lvec[:, LV_WO:LV_WO + D, :] = np.asarray(p['wo'], f32)

    head = np.zeros((HEAD_ROWS, OUT_LANES), f32)
    head[HD_WH1:HD_WH1 + D, 0:64] = np.asarray(p['wh1'], f32)
    head[HD_BH1, 0:64] = np.asarray(p['bh1'], f32)
    head[HD_WH2:HD_WH2 + 64, 0:N_TICKERS] = np.asarray(p['wh2'], f32)
    head[HD_BH2, 0:N_TICKERS] = np.asarray(p['bh2'], f32)
    head[HD_PRELU, 0] = float(np.asarray(p['prelu'])[0])

    return {
        'const': jnp.asarray(const),
        'wqkv': jnp.asarray(wqkv_p, jnp.bfloat16),
        'lvec': jnp.asarray(lvec),
        'b1':   jnp.asarray(np.asarray(p['b1'], f32).reshape(L, 1, F)),
        'w1':   p['w1'],                                   # (L, D, F) bf16
        'w2':   p['w2'],                                   # (L, F, D) bf16
        'head': jnp.asarray(head),
    }


# --------------------------- pure-JAX reference ------------------------------
def _ln_ref(x, g, b):
    mu = jnp.mean(x, axis=-1, keepdims=True)
    xc = x - mu
    var = jnp.mean(xc * xc, axis=-1, keepdims=True)
    return xc * jax.lax.rsqrt(var + LN_EPS) * g + b


def ref_forward(x, p):
    B, S, D = x.shape
    h = x * (p['fw'] * FEATURE_ATTN) + p['pos']
    for l in range(NUM_LAYERS):
        wqkv = p['wqkv'][l].astype(jnp.bfloat16)
        qkv = jnp.dot(h.astype(jnp.bfloat16), wqkv,
                      preferred_element_type=jnp.float32) + p['bqkv'][l]
        q, k, v = qkv[..., :D], qkv[..., D:2 * D], qkv[..., 2 * D:]
        split = lambda t: t.reshape(B, S, NUM_HEADS, DH).transpose(0, 2, 1, 3)
        qh, kh, vh = split(q), split(k), split(v)
        s = jnp.einsum('bhqd,bhkd->bhqk', qh, kh) / math.sqrt(DH)
        a = jax.nn.softmax(s, axis=-1)
        o = jnp.einsum('bhqk,bhkd->bhqd', a, vh).transpose(0, 2, 1, 3).reshape(B, S, D)
        o = o @ p['wo'][l] + p['bo'][l]
        h = _ln_ref(h + o, p['g1'][l], p['be1'][l])
        f1 = jnp.dot(h.astype(jnp.bfloat16), p['w1'][l],
                     preferred_element_type=jnp.float32) + p['b1'][l]
        f1 = jax.nn.relu(f1)
        f2 = jnp.dot(f1.astype(jnp.bfloat16), p['w2'][l],
                     preferred_element_type=jnp.float32) + p['b2'][l]
        h = _ln_ref(h + f2, p['g2'][l], p['be2'][l])
    last = h[:, -1, :]
    m = last @ p['wh1'] + p['bh1']
    m = jnp.where(m > 0, m, p['prelu'][0] * m)
    return m @ p['wh2'] + p['bh2']


# --------------------------------- main ---------------------------------------
if __name__ == "__main__":
    key = jax.random.PRNGKey(0)
    kx, kp = jax.random.split(key)
    x = jax.random.normal(kx, (BATCH, SEQ_LEN, INPUT_DIM), jnp.float32)
    params = init_params(kp)
    packed = pack_params(params)

    out = jax.block_until_ready(transformer_trader(x, packed))
    ref = jax.block_until_ready(ref_forward(x, params))
    np.testing.assert_allclose(np.asarray(out), np.asarray(ref), rtol=2e-3, atol=2e-3)

    print("KERNEL_OK")
</pallas_src>

<mosaic_0001>
module attributes {stable_mosaic.version = 11 : i64} {
  func.func @trader_kernel(%arg0: i32, %arg1: memref<16x32xf32, #tpu.memory_space<vmem>>, %arg2: memref<72x32xf32, #tpu.memory_space<vmem>>, %arg3: memref<1x32x384xbf16, #tpu.memory_space<vmem>>, %arg4: memref<1x48x32xf32, #tpu.memory_space<vmem>>, %arg5: memref<1x1x2048xf32, #tpu.memory_space<vmem>>, %arg6: memref<1x32x2048xbf16, #tpu.memory_space<vmem>>, %arg7: memref<1x2048x32xbf16, #tpu.memory_space<vmem>>, %arg8: memref<120x128xf32, #tpu.memory_space<vmem>>, %arg9: memref<16x128xf32, #tpu.memory_space<vmem>>, %arg10: memref<16x32xf32, #tpu.memory_space<vmem>>) attributes {dimension_semantics = [#tpu.dimension_semantics<arbitrary>], iteration_bounds = array<i64: 2>, scalar_prefetch = 0 : i64, scratch_operands = 1 : i64, tpu.core_type = #tpu.core_type<tc>, window_params = [{pipeline_mode = #tpu.pipeline_mode<synchronous>, transform_indices = @transform_0, window_bounds = array<i64: 16, 32>}, {pipeline_mode = #tpu.pipeline_mode<synchronous>, transform_indices = @transform_1, window_bounds = array<i64: 72, 32>}, {transform_indices = @transform_2, window_bounds = array<i64: 1, 32, 384>}, {transform_indices = @transform_3, window_bounds = array<i64: 1, 48, 32>}, {transform_indices = @transform_4, window_bounds = array<i64: 1, 1, 2048>}, {transform_indices = @transform_5, window_bounds = array<i64: 1, 32, 2048>}, {transform_indices = @transform_6, window_bounds = array<i64: 1, 2048, 32>}, {pipeline_mode = #tpu.pipeline_mode<synchronous>, transform_indices = @transform_7, window_bounds = array<i64: 120, 128>}, {pipeline_mode = #tpu.pipeline_mode<synchronous>, transform_indices = @transform_8, window_bounds = array<i64: 16, 128>}]} {
    %c0_i32 = arith.constant 0 : i32
    %0 = arith.cmpi eq, %arg0, %c0_i32 : i32
    %1 = arith.extui %0 : i1 to i32
    %c0_i32_0 = arith.constant 0 : i32
    %2 = arith.cmpi ne, %1, %c0_i32_0 : i32
    scf.if %2 {
      %c16_112 = arith.constant 16 : index
      %c0_113 = arith.constant 0 : index
      %232 = vector.load %arg2[%c16_112, %c0_113] : memref<72x32xf32, #tpu.memory_space<vmem>>, vector<1x32xf32>
      %c0_114 = arith.constant 0 : index
      %c0_115 = arith.constant 0 : index
      %233 = vector.load %arg2[%c0_114, %c0_115] : memref<72x32xf32, #tpu.memory_space<vmem>>, vector<16x32xf32>
      %c0_116 = arith.constant 0 : index
      %c0_117 = arith.constant 0 : index
      %234 = vector.load %arg1[%c0_116, %c0_117] : memref<16x32xf32, #tpu.memory_space<vmem>>, vector<16x32xf32>
      %cst_118 = arith.constant 1.000000e+00 : f32
      %235 = vector.broadcast %cst_118 : f32 to vector<1x32xf32>
      %236 = arith.mulf %232, %235 : vector<1x32xf32>
      %237 = vector.broadcast %236 : vector<1x32xf32> to vector<16x32xf32>
      %238 = arith.mulf %234, %237 : vector<16x32xf32>
      %239 = arith.addf %238, %233 : vector<16x32xf32>
      %c0_119 = arith.constant 0 : index
      %c0_120 = arith.constant 0 : index
      %240 = vector.load %arg10[%c0_119, %c0_120] : memref<16x32xf32, #tpu.memory_space<vmem>>, vector<16x32xf32>
      tpu.vector_store %arg10[%c0_119, %c0_120], %239 {strides = array<i32>} : memref<16x32xf32, #tpu.memory_space<vmem>>, vector<16x32xf32>,
    } else {
    }
    %c0 = arith.constant 0 : index
    %c0_1 = arith.constant 0 : index
    %3 = vector.load %arg10[%c0, %c0_1] : memref<16x32xf32, #tpu.memory_space<vmem>>, vector<16x32xf32>
    %c24 = arith.constant 24 : index
    %c0_2 = arith.constant 0 : index
    %4 = vector.load %arg2[%c24, %c0_2] : memref<72x32xf32, #tpu.memory_space<vmem>>, vector<16x16xf32>
    %5 = arith.truncf %3 : vector<16x32xf32> to vector<16x32xbf16>
    %c0_3 = arith.constant 0 : index
    %c0_4 = arith.constant 0 : index
    %c0_5 = arith.constant 0 : index
    %6 = vector.load %arg3[%c0_3, %c0_4, %c0_5] : memref<1x32x384xbf16, #tpu.memory_space<vmem>>, vector<1x32x384xbf16>
    %7 = vector.shape_cast %6 : vector<1x32x384xbf16> to vector<32x384xbf16>
    %cst = arith.constant dense<0.000000e+00> : vector<16x384xf32>
    %8 = tpu.matmul %5, %7, %cst {dimension_numbers = #tpu.dot_dimension_numbers<[1], [0], [0], [1], [0, 0, 1, 1], [], []>} : vector<16x32xbf16>, vector<32x384xbf16>, vector<16x384xf32> -> vector<16x384xf32>
    %9 = vector.extract_strided_slice %8 {offsets = [0, 0], sizes = [16, 32], strides = [1, 1]} : vector<16x384xf32> to vector<16x32xf32>
    %c0_6 = arith.constant 0 : index
    %c0_7 = arith.constant 0 : index
    %c0_8 = arith.constant 0 : index
    %10 = vector.load %arg4[%c0_6, %c0_7, %c0_8] : memref<1x48x32xf32, #tpu.memory_space<vmem>>, vector<1x1x32xf32>
    %11 = vector.shape_cast %10 : vector<1x1x32xf32> to vector<1x32xf32>
    %12 = vector.broadcast %11 : vector<1x32xf32> to vector<16x32xf32>
    %13 = arith.addf %9, %12 : vector<16x32xf32>
    %14 = vector.extract_strided_slice %8 {offsets = [0, 128], sizes = [16, 32], strides = [1, 1]} : vector<16x384xf32> to vector<16x32xf32>
    %c0_9 = arith.constant 0 : index
    %c1 = arith.constant 1 : index
    %c0_10 = arith.constant 0 : index
    %15 = vector.load %arg4[%c0_9, %c1, %c0_10] : memref<1x48x32xf32, #tpu.memory_space<vmem>>, vector<1x1x32xf32>
    %16 = vector.shape_cast %15 : vector<1x1x32xf32> to vector<1x32xf32>
    %17 = vector.broadcast %16 : vector<1x32xf32> to vector<16x32xf32>
    %18 = arith.addf %14, %17 : vector<16x32xf32>
    %19 = vector.extract_strided_slice %8 {offsets = [0, 256], sizes = [16, 32], strides = [1, 1]} : vector<16x384xf32> to vector<16x32xf32>
    %c0_11 = arith.constant 0 : index
    %c2 = arith.constant 2 : index
    %c0_12 = arith.constant 0 : index
    %20 = vector.load %arg4[%c0_11, %c2, %c0_12] : memref<1x48x32xf32, #tpu.memory_space<vmem>>, vector<1x1x32xf32>
    %21 = vector.shape_cast %20 : vector<1x1x32xf32> to vector<1x32xf32>
    %22 = vector.broadcast %21 : vector<1x32xf32> to vector<16x32xf32>
    %23 = arith.addf %19, %22 : vector<16x32xf32>
    %cst_13 = arith.constant 0.000000e+00 : f32
    %24 = vector.broadcast %cst_13 : f32 to vector<16x32xf32>
    %c40 = arith.constant 40 : index
    %c0_14 = arith.constant 0 : index
    %25 = vector.load %arg2[%c40, %c0_14] : memref<72x32xf32, #tpu.memory_space<vmem>>, vector<1x32xf32>
    %26 = vector.broadcast %25 : vector<1x32xf32> to vector<16x32xf32>
    %27 = arith.mulf %18, %26 : vector<16x32xf32>
    %cst_15 = arith.constant dense<0.000000e+00> : vector<16x16xf32>
    %28 = tpu.matmul %13, %27, %cst_15 {dimension_numbers = #tpu.dot_dimension_numbers<[1], [1], [0], [0], [0, 0, 1, 0], [], []>} : vector<16x32xf32>, vector<16x32xf32>, vector<16x16xf32> -> vector<16x16xf32>
    %cst_16 = arith.constant 0.353553385 : f32
    %29 = vector.broadcast %cst_16 : f32 to vector<16x16xf32>
    %30 = arith.mulf %28, %29 : vector<16x16xf32>
    %31 = arith.addf %30, %4 : vector<16x16xf32>
    %cst_17 = arith.constant dense<0xFF800000> : vector<16xf32>
    %32 = vector.multi_reduction <maximumf>, %31, %cst_17 [1] : vector<16x16xf32> to vector<16xf32>
    %33 = vector.shape_cast %32 : vector<16xf32> to vector<16x1xf32>
    %34 = vector.broadcast %33 : vector<16x1xf32> to vector<16x16xf32>
    %35 = arith.subf %31, %34 : vector<16x16xf32>
    %36 = math.exp %35 : vector<16x16xf32>
    %cst_18 = arith.constant dense<0.000000e+00> : vector<16xf32>
    %37 = vector.multi_reduction <add>, %36, %cst_18 [1] : vector<16x16xf32> to vector<16xf32>
    %38 = vector.shape_cast %37 : vector<16xf32> to vector<16x1xf32>
    %39 = tpu.reciprocal %38 : vector<16x1xf32> -> vector<16x1xf32>
    %40 = vector.broadcast %39 : vector<16x1xf32> to vector<16x16xf32>
    %41 = arith.mulf %36, %40 : vector<16x16xf32>
    %42 = vector.broadcast %25 : vector<1x32xf32> to vector<16x32xf32>
    %43 = arith.mulf %23, %42 : vector<16x32xf32>
    %cst_19 = arith.constant dense<0.000000e+00> : vector<16x32xf32>
    %44 = tpu.matmul %41, %43, %cst_19 {dimension_numbers = #tpu.dot_dimension_numbers<[1], [0], [0], [1], [0, 0, 1, 1], [], []>} : vector<16x16xf32>, vector<16x32xf32>, vector<16x32xf32> -> vector<16x32xf32>
    %45 = arith.addf %24, %44 : vector<16x32xf32>
    %c48 = arith.constant 48 : index
    %c0_20 = arith.constant 0 : index
    %46 = vector.load %arg2[%c48, %c0_20] : memref<72x32xf32, #tpu.memory_space<vmem>>, vector<1x32xf32>
    %47 = vector.broadcast %46 : vector<1x32xf32> to vector<16x32xf32>
    %48 = arith.mulf %18, %47 : vector<16x32xf32>
    %cst_21 = arith.constant dense<0.000000e+00> : vector<16x16xf32>
    %49 = tpu.matmul %13, %48, %cst_21 {dimension_numbers = #tpu.dot_dimension_numbers<[1], [1], [0], [0], [0, 0, 1, 0], [], []>} : vector<16x32xf32>, vector<16x32xf32>, vector<16x16xf32> -> vector<16x16xf32>
    %cst_22 = arith.constant 0.353553385 : f32
    %50 = vector.broadcast %cst_22 : f32 to vector<16x16xf32>
    %51 = arith.mulf %49, %50 : vector<16x16xf32>
    %52 = arith.addf %51, %4 : vector<16x16xf32>
    %cst_23 = arith.constant dense<0xFF800000> : vector<16xf32>
    %53 = vector.multi_reduction <maximumf>, %52, %cst_23 [1] : vector<16x16xf32> to vector<16xf32>
    %54 = vector.shape_cast %53 : vector<16xf32> to vector<16x1xf32>
    %55 = vector.broadcast %54 : vector<16x1xf32> to vector<16x16xf32>
    %56 = arith.subf %52, %55 : vector<16x16xf32>
    %57 = math.exp %56 : vector<16x16xf32>
    %cst_24 = arith.constant dense<0.000000e+00> : vector<16xf32>
    %58 = vector.multi_reduction <add>, %57, %cst_24 [1] : vector<16x16xf32> to vector<16xf32>
    %59 = vector.shape_cast %58 : vector<16xf32> to vector<16x1xf32>
    %60 = tpu.reciprocal %59 : vector<16x1xf32> -> vector<16x1xf32>
    %61 = vector.broadcast %60 : vector<16x1xf32> to vector<16x16xf32>
    %62 = arith.mulf %57, %61 : vector<16x16xf32>
    %63 = vector.broadcast %46 : vector<1x32xf32> to vector<16x32xf32>
    %64 = arith.mulf %23, %63 : vector<16x32xf32>
    %cst_25 = arith.constant dense<0.000000e+00> : vector<16x32xf32>
    %65 = tpu.matmul %62, %64, %cst_25 {dimension_numbers = #tpu.dot_dimension_numbers<[1], [0], [0], [1], [0, 0, 1, 1], [], []>} : vector<16x16xf32>, vector<16x32xf32>, vector<16x32xf32> -> vector<16x32xf32>
    %66 = arith.addf %45, %65 : vector<16x32xf32>
    %c56 = arith.constant 56 : index
    %c0_26 = arith.constant 0 : index
    %67 = vector.load %arg2[%c56, %c0_26] : memref<72x32xf32, #tpu.memory_space<vmem>>, vector<1x32xf32>
    %68 = vector.broadcast %67 : vector<1x32xf32> to vector<16x32xf32>
    %69 = arith.mulf %18, %68 : vector<16x32xf32>
    %cst_27 = arith.constant dense<0.000000e+00> : vector<16x16xf32>
    %70 = tpu.matmul %13, %69, %cst_27 {dimension_numbers = #tpu.dot_dimension_numbers<[1], [1], [0], [0], [0, 0, 1, 0], [], []>} : vector<16x32xf32>, vector<16x32xf32>, vector<16x16xf32> -> vector<16x16xf32>
    %cst_28 = arith.constant 0.353553385 : f32
    %71 = vector.broadcast %cst_28 : f32 to vector<16x16xf32>
    %72 = arith.mulf %70, %71 : vector<16x16xf32>
    %73 = arith.addf %72, %4 : vector<16x16xf32>
    %cst_29 = arith.constant dense<0xFF800000> : vector<16xf32>
    %74 = vector.multi_reduction <maximumf>, %73, %cst_29 [1] : vector<16x16xf32> to vector<16xf32>
    %75 = vector.shape_cast %74 : vector<16xf32> to vector<16x1xf32>
    %76 = vector.broadcast %75 : vector<16x1xf32> to vector<16x16xf32>
    %77 = arith.subf %73, %76 : vector<16x16xf32>
    %78 = math.exp %77 : vector<16x16xf32>
    %cst_30 = arith.constant dense<0.000000e+00> : vector<16xf32>
    %79 = vector.multi_reduction <add>, %78, %cst_30 [1] : vector<16x16xf32> to vector<16xf32>
    %80 = vector.shape_cast %79 : vector<16xf32> to vector<16x1xf32>
    %81 = tpu.reciprocal %80 : vector<16x1xf32> -> vector<16x1xf32>
    %82 = vector.broadcast %81 : vector<16x1xf32> to vector<16x16xf32>
    %83 = arith.mulf %78, %82 : vector<16x16xf32>
    %84 = vector.broadcast %67 : vector<1x32xf32> to vector<16x32xf32>
    %85 = arith.mulf %23, %84 : vector<16x32xf32>
    %cst_31 = arith.constant dense<0.000000e+00> : vector<16x32xf32>
    %86 = tpu.matmul %83, %85, %cst_31 {dimension_numbers = #tpu.dot_dimension_numbers<[1], [0], [0], [1], [0, 0, 1, 1], [], []>} : vector<16x16xf32>, vector<16x32xf32>, vector<16x32xf32> -> vector<16x32xf32>
    %87 = arith.addf %66, %86 : vector<16x32xf32>
    %c64 = arith.constant 64 : index
    %c0_32 = arith.constant 0 : index
    %88 = vector.load %arg2[%c64, %c0_32] : memref<72x32xf32, #tpu.memory_space<vmem>>, vector<1x32xf32>
    %89 = vector.broadcast %88 : vector<1x32xf32> to vector<16x32xf32>
    %90 = arith.mulf %18, %89 : vector<16x32xf32>
    %cst_33 = arith.constant dense<0.000000e+00> : vector<16x16xf32>
    %91 = tpu.matmul %13, %90, %cst_33 {dimension_numbers = #tpu.dot_dimension_numbers<[1], [1], [0], [0], [0, 0, 1, 0], [], []>} : vector<16x32xf32>, vector<16x32xf32>, vector<16x16xf32> -> vector<16x16xf32>
    %cst_34 = arith.constant 0.353553385 : f32
    %92 = vector.broadcast %cst_34 : f32 to vector<16x16xf32>
    %93 = arith.mulf %91, %92 : vector<16x16xf32>
    %94 = arith.addf %93, %4 : vector<16x16xf32>
    %cst_35 = arith.constant dense<0xFF800000> : vector<16xf32>
    %95 = vector.multi_reduction <maximumf>, %94, %cst_35 [1] : vector<16x16xf32> to vector<16xf32>
    %96 = vector.shape_cast %95 : vector<16xf32> to vector<16x1xf32>
    %97 = vector.broadcast %96 : vector<16x1xf32> to vector<16x16xf32>
    %98 = arith.subf %94, %97 : vector<16x16xf32>
    %99 = math.exp %98 : vector<16x16xf32>
    %cst_36 = arith.constant dense<0.000000e+00> : vector<16xf32>
    %100 = vector.multi_reduction <add>, %99, %cst_36 [1] : vector<16x16xf32> to vector<16xf32>
    %101 = vector.shape_cast %100 : vector<16xf32> to vector<16x1xf32>
    %102 = tpu.reciprocal %101 : vector<16x1xf32> -> vector<16x1xf32>
    %103 = vector.broadcast %102 : vector<16x1xf32> to vector<16x16xf32>
    %104 = arith.mulf %99, %103 : vector<16x16xf32>
    %105 = vector.broadcast %88 : vector<1x32xf32> to vector<16x32xf32>
    %106 = arith.mulf %23, %105 : vector<16x32xf32>
    %cst_37 = arith.constant dense<0.000000e+00> : vector<16x32xf32>
    %107 = tpu.matmul %104, %106, %cst_37 {dimension_numbers = #tpu.dot_dimension_numbers<[1], [0], [0], [1], [0, 0, 1, 1], [], []>} : vector<16x16xf32>, vector<16x32xf32>, vector<16x32xf32> -> vector<16x32xf32>
    %108 = arith.addf %87, %107 : vector<16x32xf32>
    %c0_38 = arith.constant 0 : index
    %c16 = arith.constant 16 : index
    %c0_39 = arith.constant 0 : index
    %109 = vector.load %arg4[%c0_38, %c16, %c0_39] : memref<1x48x32xf32, #tpu.memory_space<vmem>>, vector<1x32x32xf32>
    %110 = vector.shape_cast %109 : vector<1x32x32xf32> to vector<32x32xf32>
    %cst_40 = arith.constant dense<0.000000e+00> : vector<16x32xf32>
    %111 = tpu.matmul %108, %110, %cst_40 {dimension_numbers = #tpu.dot_dimension_numbers<[1], [0], [0], [1], [0, 0, 1, 1], [], []>} : vector<16x32xf32>, vector<32x32xf32>, vector<16x32xf32> -> vector<16x32xf32>
    %c0_41 = arith.constant 0 : index
    %c3 = arith.constant 3 : index
    %c0_42 = arith.constant 0 : index
    %112 = vector.load %arg4[%c0_41, %c3, %c0_42] : memref<1x48x32xf32, #tpu.memory_space<vmem>>, vector<1x1x32xf32>
    %113 = vector.shape_cast %112 : vector<1x1x32xf32> to vector<1x32xf32>
    %114 = vector.broadcast %113 : vector<1x32xf32> to vector<16x32xf32>
    %115 = arith.addf %111, %114 : vector<16x32xf32>
    %116 = arith.addf %3, %115 : vector<16x32xf32>
    %c0_43 = arith.constant 0 : index
    %c4 = arith.constant 4 : index
    %c0_44 = arith.constant 0 : index
    %117 = vector.load %arg4[%c0_43, %c4, %c0_44] : memref<1x48x32xf32, #tpu.memory_space<vmem>>, vector<1x1x32xf32>
    %118 = vector.shape_cast %117 : vector<1x1x32xf32> to vector<1x32xf32>
    %c0_45 = arith.constant 0 : index
    %c5 = arith.constant 5 : index
    %c0_46 = arith.constant 0 : index
    %119 = vector.load %arg4[%c0_45, %c5, %c0_46] : memref<1x48x32xf32, #tpu.memory_space<vmem>>, vector<1x1x32xf32>
    %120 = vector.shape_cast %119 : vector<1x1x32xf32> to vector<1x32xf32>
    %cst_47 = arith.constant dense<0.000000e+00> : vector<16xf32>
    %121 = vector.multi_reduction <add>, %116, %cst_47 [1] : vector<16x32xf32> to vector<16xf32>
    %122 = vector.shape_cast %121 : vector<16xf32> to vector<16x1xf32>
    %cst_48 = arith.constant 3.200000e+01 : f32
    %123 = vector.broadcast %cst_48 : f32 to vector<16x1xf32>
    %124 = arith.divf %122, %123 : vector<16x1xf32>
    %125 = vector.broadcast %124 : vector<16x1xf32> to vector<16x32xf32>
    %126 = arith.subf %116, %125 : vector<16x32xf32>
    %127 = arith.mulf %126, %126 : vector<16x32xf32>
    %cst_49 = arith.constant dense<0.000000e+00> : vector<16xf32>
    %128 = vector.multi_reduction <add>, %127, %cst_49 [1] : vector<16x32xf32> to vector<16xf32>
    %129 = vector.shape_cast %128 : vector<16xf32> to vector<16x1xf32>
    %cst_50 = arith.constant 3.200000e+01 : f32
    %130 = vector.broadcast %cst_50 : f32 to vector<16x1xf32>
    %131 = arith.divf %129, %130 : vector<16x1xf32>
    %cst_51 = arith.constant 9.99999974E-6 : f32
    %132 = vector.broadcast %cst_51 : f32 to vector<16x1xf32>
    %133 = arith.addf %131, %132 : vector<16x1xf32>
    %134 = math.rsqrt %133 : vector<16x1xf32>
    %135 = vector.broadcast %134 : vector<16x1xf32> to vector<16x32xf32>
    %136 = arith.mulf %126, %135 : vector<16x32xf32>
    %137 = vector.broadcast %118 : vector<1x32xf32> to vector<16x32xf32>
    %138 = arith.mulf %136, %137 : vector<16x32xf32>
    %139 = vector.broadcast %120 : vector<1x32xf32> to vector<16x32xf32>
    %140 = arith.addf %138, %139 : vector<16x32xf32>
    %141 = arith.truncf %140 : vector<16x32xf32> to vector<16x32xbf16>
    %cst_52 = arith.constant 0.000000e+00 : f32
    %142 = vector.broadcast %cst_52 : f32 to vector<16x32xf32>
    %c0_53 = arith.constant 0 : index
    %c0_54 = arith.constant 0 : index
    %c0_55 = arith.constant 0 : index
    %143 = vector.load %arg6[%c0_53, %c0_54, %c0_55] : memref<1x32x2048xbf16, #tpu.memory_space<vmem>>, vector<1x32x512xbf16>
    %144 = vector.shape_cast %143 : vector<1x32x512xbf16> to vector<32x512xbf16>
    %cst_56 = arith.constant dense<0.000000e+00> : vector<16x512xf32>
    %145 = tpu.matmul %141, %144, %cst_56 {dimension_numbers = #tpu.dot_dimension_numbers<[1], [0], [0], [1], [0, 0, 1, 1], [], []>} : vector<16x32xbf16>, vector<32x512xbf16>, vector<16x512xf32> -> vector<16x512xf32>
    %c0_57 = arith.constant 0 : index
    %c0_58 = arith.constant 0 : index
    %c0_59 = arith.constant 0 : index
    %146 = vector.load %arg5[%c0_57, %c0_58, %c0_59] : memref<1x1x2048xf32, #tpu.memory_space<vmem>>, vector<1x1x512xf32>
    %147 = vector.shape_cast %146 : vector<1x1x512xf32> to vector<1x512xf32>
    %148 = vector.broadcast %147 : vector<1x512xf32> to vector<16x512xf32>
    %149 = arith.addf %145, %148 : vector<16x512xf32>
    %cst_60 = arith.constant 0.000000e+00 : f32
    %150 = vector.broadcast %cst_60 : f32 to vector<16x512xf32>
    %151 = arith.maximumf %149, %150 : vector<16x512xf32>
    %152 = arith.truncf %151 : vector<16x512xf32> to vector<16x512xbf16>
    %c0_61 = arith.constant 0 : index
    %c0_62 = arith.constant 0 : index
    %c0_63 = arith.constant 0 : index
    %153 = vector.load %arg7[%c0_61, %c0_62, %c0_63] : memref<1x2048x32xbf16, #tpu.memory_space<vmem>>, vector<1x512x32xbf16>
    %154 = vector.shape_cast %153 : vector<1x512x32xbf16> to vector<512x32xbf16>
    %cst_64 = arith.constant dense<0.000000e+00> : vector<16x32xf32>
    %155 = tpu.matmul %152, %154, %cst_64 {dimension_numbers = #tpu.dot_dimension_numbers<[1], [0], [0], [1], [0, 0, 1, 1], [], []>} : vector<16x512xbf16>, vector<512x32xbf16>, vector<16x32xf32> -> vector<16x32xf32>
    %156 = arith.addf %142, %155 : vector<16x32xf32>
    %c0_65 = arith.constant 0 : index
    %c0_66 = arith.constant 0 : index
    %c512 = arith.constant 512 : index
    %157 = vector.load %arg6[%c0_65, %c0_66, %c512] : memref<1x32x2048xbf16, #tpu.memory_space<vmem>>, vector<1x32x512xbf16>
    %158 = vector.shape_cast %157 : vector<1x32x512xbf16> to vector<32x512xbf16>
    %cst_67 = arith.constant dense<0.000000e+00> : vector<16x512xf32>
    %159 = tpu.matmul %141, %158, %cst_67 {dimension_numbers = #tpu.dot_dimension_numbers<[1], [0], [0], [1], [0, 0, 1, 1], [], []>} : vector<16x32xbf16>, vector<32x512xbf16>, vector<16x512xf32> -> vector<16x512xf32>
    %c0_68 = arith.constant 0 : index
    %c0_69 = arith.constant 0 : index
    %c512_70 = arith.constant 512 : index
    %160 = vector.load %arg5[%c0_68, %c0_69, %c512_70] : memref<1x1x2048xf32, #tpu.memory_space<vmem>>, vector<1x1x512xf32>
    %161 = vector.shape_cast %160 : vector<1x1x512xf32> to vector<1x512xf32>
    %162 = vector.broadcast %161 : vector<1x512xf32> to vector<16x512xf32>
    %163 = arith.addf %159, %162 : vector<16x512xf32>
    %cst_71 = arith.constant 0.000000e+00 : f32
    %164 = vector.broadcast %cst_71 : f32 to vector<16x512xf32>
    %165 = arith.maximumf %163, %164 : vector<16x512xf32>
    %166 = arith.truncf %165 : vector<16x512xf32> to vector<16x512xbf16>
    %c0_72 = arith.constant 0 : index
    %c512_73 = arith.constant 512 : index
    %c0_74 = arith.constant 0 : index
    %167 = vector.load %arg7[%c0_72, %c512_73, %c0_74] : memref<1x2048x32xbf16, #tpu.memory_space<vmem>>, vector<1x512x32xbf16>
    %168 = vector.shape_cast %167 : vector<1x512x32xbf16> to vector<512x32xbf16>
    %cst_75 = arith.constant dense<0.000000e+00> : vector<16x32xf32>
    %169 = tpu.matmul %166, %168, %cst_75 {dimension_numbers = #tpu.dot_dimension_numbers<[1], [0], [0], [1], [0, 0, 1, 1], [], []>} : vector<16x512xbf16>, vector<512x32xbf16>, vector<16x32xf32> -> vector<16x32xf32>
    %170 = arith.addf %156, %169 : vector<16x32xf32>
    %c0_76 = arith.constant 0 : index
    %c0_77 = arith.constant 0 : index
    %c1024 = arith.constant 1024 : index
    %171 = vector.load %arg6[%c0_76, %c0_77, %c1024] : memref<1x32x2048xbf16, #tpu.memory_space<vmem>>, vector<1x32x512xbf16>
    %172 = vector.shape_cast %171 : vector<1x32x512xbf16> to vector<32x512xbf16>
    %cst_78 = arith.constant dense<0.000000e+00> : vector<16x512xf32>
    %173 = tpu.matmul %141, %172, %cst_78 {dimension_numbers = #tpu.dot_dimension_numbers<[1], [0], [0], [1], [0, 0, 1, 1], [], []>} : vector<16x32xbf16>, vector<32x512xbf16>, vector<16x512xf32> -> vector<16x512xf32>
    %c0_79 = arith.constant 0 : index
    %c0_80 = arith.constant 0 : index
    %c1024_81 = arith.constant 1024 : index
    %174 = vector.load %arg5[%c0_79, %c0_80, %c1024_81] : memref<1x1x2048xf32, #tpu.memory_space<vmem>>, vector<1x1x512xf32>
    %175 = vector.shape_cast %174 : vector<1x1x512xf32> to vector<1x512xf32>
    %176 = vector.broadcast %175 : vector<1x512xf32> to vector<16x512xf32>
    %177 = arith.addf %173, %176 : vector<16x512xf32>
    %cst_82 = arith.constant 0.000000e+00 : f32
    %178 = vector.broadcast %cst_82 : f32 to vector<16x512xf32>
    %179 = arith.maximumf %177, %178 : vector<16x512xf32>
    %180 = arith.truncf %179 : vector<16x512xf32> to vector<16x512xbf16>
    %c0_83 = arith.constant 0 : index
    %c1024_84 = arith.constant 1024 : index
    %c0_85 = arith.constant 0 : index
    %181 = vector.load %arg7[%c0_83, %c1024_84, %c0_85] : memref<1x2048x32xbf16, #tpu.memory_space<vmem>>, vector<1x512x32xbf16>
    %182 = vector.shape_cast %181 : vector<1x512x32xbf16> to vector<512x32xbf16>
    %cst_86 = arith.constant dense<0.000000e+00> : vector<16x32xf32>
    %183 = tpu.matmul %180, %182, %cst_86 {dimension_numbers = #tpu.dot_dimension_numbers<[1], [0], [0], [1], [0, 0, 1, 1], [], []>} : vector<16x512xbf16>, vector<512x32xbf16>, vector<16x32xf32> -> vector<16x32xf32>
    %184 = arith.addf %170, %183 : vector<16x32xf32>
    %c0_87 = arith.constant 0 : index
    %c0_88 = arith.constant 0 : index
    %c1536 = arith.constant 1536 : index
    %185 = vector.load %arg6[%c0_87, %c0_88, %c1536] : memref<1x32x2048xbf16, #tpu.memory_space<vmem>>, vector<1x32x512xbf16>
    %186 = vector.shape_cast %185 : vector<1x32x512xbf16> to vector<32x512xbf16>
    %cst_89 = arith.constant dense<0.000000e+00> : vector<16x512xf32>
    %187 = tpu.matmul %141, %186, %cst_89 {dimension_numbers = #tpu.dot_dimension_numbers<[1], [0], [0], [1], [0, 0, 1, 1], [], []>} : vector<16x32xbf16>, vector<32x512xbf16>, vector<16x512xf32> -> vector<16x512xf32>
    %c0_90 = arith.constant 0 : index
    %c0_91 = arith.constant 0 : index
    %c1536_92 = arith.constant 1536 : index
    %188 = vector.load %arg5[%c0_90, %c0_91, %c1536_92] : memref<1x1x2048xf32, #tpu.memory_space<vmem>>, vector<1x1x512xf32>
    %189 = vector.shape_cast %188 : vector<1x1x512xf32> to vector<1x512xf32>
    %190 = vector.broadcast %189 : vector<1x512xf32> to vector<16x512xf32>
    %191 = arith.addf %187, %190 : vector<16x512xf32>
    %cst_93 = arith.constant 0.000000e+00 : f32
    %192 = vector.broadcast %cst_93 : f32 to vector<16x512xf32>
    %193 = arith.maximumf %191, %192 : vector<16x512xf32>
    %194 = arith.truncf %193 : vector<16x512xf32> to vector<16x512xbf16>
    %c0_94 = arith.constant 0 : index
    %c1536_95 = arith.constant 1536 : index
    %c0_96 = arith.constant 0 : index
    %195 = vector.load %arg7[%c0_94, %c1536_95, %c0_96] : memref<1x2048x32xbf16, #tpu.memory_space<vmem>>, vector<1x512x32xbf16>
    %196 = vector.shape_cast %195 : vector<1x512x32xbf16> to vector<512x32xbf16>
    %cst_97 = arith.constant dense<0.000000e+00> : vector<16x32xf32>
    %197 = tpu.matmul %194, %196, %cst_97 {dimension_numbers = #tpu.dot_dimension_numbers<[1], [0], [0], [1], [0, 0, 1, 1], [], []>} : vector<16x512xbf16>, vector<512x32xbf16>, vector<16x32xf32> -> vector<16x32xf32>
    %198 = arith.addf %184, %197 : vector<16x32xf32>
    %c0_98 = arith.constant 0 : index
    %c8 = arith.constant 8 : index
    %c0_99 = arith.constant 0 : index
    %199 = vector.load %arg4[%c0_98, %c8, %c0_99] : memref<1x48x32xf32, #tpu.memory_space<vmem>>, vector<1x1x32xf32>
    %200 = vector.shape_cast %199 : vector<1x1x32xf32> to vector<1x32xf32>
    %201 = vector.broadcast %200 : vector<1x32xf32> to vector<16x32xf32>
    %202 = arith.addf %198, %201 : vector<16x32xf32>
    %203 = arith.addf %140, %202 : vector<16x32xf32>
    %c0_100 = arith.constant 0 : index
    %c6 = arith.constant 6 : index
    %c0_101 = arith.constant 0 : index
    %204 = vector.load %arg4[%c0_100, %c6, %c0_101] : memref<1x48x32xf32, #tpu.memory_space<vmem>>, vector<1x1x32xf32>
    %205 = vector.shape_cast %204 : vector<1x1x32xf32> to vector<1x32xf32>
    %c0_102 = arith.constant 0 : index
    %c7 = arith.constant 7 : index
    %c0_103 = arith.constant 0 : index
    %206 = vector.load %arg4[%c0_102, %c7, %c0_103] : memref<1x48x32xf32, #tpu.memory_space<vmem>>, vector<1x1x32xf32>
    %207 = vector.shape_cast %206 : vector<1x1x32xf32> to vector<1x32xf32>
    %cst_104 = arith.constant dense<0.000000e+00> : vector<16xf32>
    %208 = vector.multi_reduction <add>, %203, %cst_104 [1] : vector<16x32xf32> to vector<16xf32>
    %209 = vector.shape_cast %208 : vector<16xf32> to vector<16x1xf32>
    %cst_105 = arith.constant 3.200000e+01 : f32
    %210 = vector.broadcast %cst_105 : f32 to vector<16x1xf32>
    %211 = arith.divf %209, %210 : vector<16x1xf32>
    %212 = vector.broadcast %211 : vector<16x1xf32> to vector<16x32xf32>
    %213 = arith.subf %203, %212 : vector<16x32xf32>
    %214 = arith.mulf %213, %213 : vector<16x32xf32>
    %cst_106 = arith.constant dense<0.000000e+00> : vector<16xf32>
    %215 = vector.multi_reduction <add>, %214, %cst_106 [1] : vector<16x32xf32> to vector<16xf32>
    %216 = vector.shape_cast %215 : vector<16xf32> to vector<16x1xf32>
    %cst_107 = arith.constant 3.200000e+01 : f32
    %217 = vector.broadcast %cst_107 : f32 to vector<16x1xf32>
    %218 = arith.divf %216, %217 : vector<16x1xf32>
    %cst_108 = arith.constant 9.99999974E-6 : f32
    %219 = vector.broadcast %cst_108 : f32 to vector<16x1xf32>
    %220 = arith.addf %218, %219 : vector<16x1xf32>
    %221 = math.rsqrt %220 : vector<16x1xf32>
    %222 = vector.broadcast %221 : vector<16x1xf32> to vector<16x32xf32>
    %223 = arith.mulf %213, %222 : vector<16x32xf32>
    %224 = vector.broadcast %205 : vector<1x32xf32> to vector<16x32xf32>
    %225 = arith.mulf %223, %224 : vector<16x32xf32>
    %226 = vector.broadcast %207 : vector<1x32xf32> to vector<16x32xf32>
    %227 = arith.addf %225, %226 : vector<16x32xf32>
    %c0_109 = arith.constant 0 : index
    %c0_110 = arith.constant 0 : index
    %228 = vector.load %arg10[%c0_109, %c0_110] : memref<16x32xf32, #tpu.memory_space<vmem>>, vector<16x32xf32>
    tpu.vector_store %arg10[%c0_109, %c0_110], %227 {strides = array<i32>} : memref<16x32xf32, #tpu.memory_space<vmem>>, vector<16x32xf32>,
    %c1_i32 = arith.constant 1 : i32
    %229 = arith.cmpi eq, %arg0, %c1_i32 : i32
    %230 = arith.extui %229 : i1 to i32
    %c0_i32_111 = arith.constant 0 : i32
    %231 = arith.cmpi ne, %230, %c0_i32_111 : i32
    scf.if %231 {
      %c0_112 = arith.constant 0 : index
      %c0_113 = arith.constant 0 : index
      %232 = vector.load %arg8[%c0_112, %c0_113] : memref<120x128xf32, #tpu.memory_space<vmem>>, vector<32x64xf32>
      %c32 = arith.constant 32 : index
      %c0_114 = arith.constant 0 : index
      %233 = vector.load %arg8[%c32, %c0_114] : memref<120x128xf32, #tpu.memory_space<vmem>>, vector<1x64xf32>
      %cst_115 = arith.constant dense<0.000000e+00> : vector<16x64xf32>
      %234 = tpu.matmul %227, %232, %cst_115 {dimension_numbers = #tpu.dot_dimension_numbers<[1], [0], [0], [1], [0, 0, 1, 1], [], []>} : vector<16x32xf32>, vector<32x64xf32>, vector<16x64xf32> -> vector<16x64xf32>
      %235 = vector.broadcast %233 : vector<1x64xf32> to vector<16x64xf32>
      %236 = arith.addf %234, %235 : vector<16x64xf32>
      %c112 = arith.constant 112 : index
      %c0_116 = arith.constant 0 : index
      %237 = vector.load %arg8[%c112, %c0_116] : memref<120x128xf32, #tpu.memory_space<vmem>>, vector<1x1xf32>
      %cst_117 = arith.constant 0.000000e+00 : f32
      %238 = vector.broadcast %cst_117 : f32 to vector<16x64xf32>
      %239 = arith.cmpf ogt, %236, %238 : vector<16x64xf32>
      %240 = vector.broadcast %237 : vector<1x1xf32> to vector<16x64xf32>
      %241 = arith.mulf %236, %240 : vector<16x64xf32>
      %242 = arith.select %239, %236, %241 : vector<16x64xi1>, vector<16x64xf32>
      %c40_118 = arith.constant 40 : index
      %c0_119 = arith.constant 0 : index
      %243 = vector.load %arg8[%c40_118, %c0_119] : memref<120x128xf32, #tpu.memory_space<vmem>>, vector<64x128xf32>
      %c104 = arith.constant 104 : index
      %c0_120 = arith.constant 0 : index
      %244 = vector.load %arg8[%c104, %c0_120] : memref<120x128xf32, #tpu.memory_space<vmem>>, vector<1x128xf32>
      %cst_121 = arith.constant dense<0.000000e+00> : vector<16x128xf32>
      %245 = tpu.matmul %242, %243, %cst_121 {dimension_numbers = #tpu.dot_dimension_numbers<[1], [0], [0], [1], [0, 0, 1, 1], [], []>} : vector<16x64xf32>, vector<64x128xf32>, vector<16x128xf32> -> vector<16x128xf32>
      %246 = vector.broadcast %244 : vector<1x128xf32> to vector<16x128xf32>
      %247 = arith.addf %245, %246 : vector<16x128xf32>
      %c0_122 = arith.constant 0 : index
      %c0_123 = arith.constant 0 : index
      %248 = vector.load %arg9[%c0_122, %c0_123] : memref<16x128xf32, #tpu.memory_space<vmem>>, vector<16x128xf32>
      tpu.vector_store %arg9[%c0_122, %c0_123], %247 {strides = array<i32>} : memref<16x128xf32, #tpu.memory_space<vmem>>, vector<16x128xf32>,
    } else {
    }
    return
  }
  func.func @transform_0(%arg0: i32) -> (i32, i32) {
    %c0_i32 = arith.constant 0 : i32
    %c0_i32_0 = arith.constant 0 : i32
    %c0_i32_1 = arith.constant 0 : i32
    return %c0_i32, %c0_i32_0 : i32, i32
  }
  func.func @transform_1(%arg0: i32) -> (i32, i32) {
    %c0_i32 = arith.constant 0 : i32
    %c0_i32_0 = arith.constant 0 : i32
    %c0_i32_1 = arith.constant 0 : i32
    return %c0_i32, %c0_i32_0 : i32, i32
  }
  func.func @transform_2(%arg0: i32) -> (i32, i32, i32) {
    %c0_i32 = arith.constant 0 : i32
    %c0_i32_0 = arith.constant 0 : i32
    %c0_i32_1 = arith.constant 0 : i32
    return %arg0, %c0_i32, %c0_i32_0 : i32, i32, i32
  }
  func.func @transform_3(%arg0: i32) -> (i32, i32, i32) {
    %c0_i32 = arith.constant 0 : i32
    %c0_i32_0 = arith.constant 0 : i32
    %c0_i32_1 = arith.constant 0 : i32
    return %arg0, %c0_i32, %c0_i32_0 : i32, i32, i32
  }
  func.func @transform_4(%arg0: i32) -> (i32, i32, i32) {
    %c0_i32 = arith.constant 0 : i32
    %c0_i32_0 = arith.constant 0 : i32
    %c0_i32_1 = arith.constant 0 : i32
    return %arg0, %c0_i32, %c0_i32_0 : i32, i32, i32
  }
  func.func @transform_5(%arg0: i32) -> (i32, i32, i32) {
    %c0_i32 = arith.constant 0 : i32
    %c0_i32_0 = arith.constant 0 : i32
    %c0_i32_1 = arith.constant 0 : i32
    return %arg0, %c0_i32, %c0_i32_0 : i32, i32, i32
  }
  func.func @transform_6(%arg0: i32) -> (i32, i32, i32) {
    %c0_i32 = arith.constant 0 : i32
    %c0_i32_0 = arith.constant 0 : i32
    %c0_i32_1 = arith.constant 0 : i32
    return %arg0, %c0_i32, %c0_i32_0 : i32, i32, i32
  }
  func.func @transform_7(%arg0: i32) -> (i32, i32) {
    %c0_i32 = arith.constant 0 : i32
    %c0_i32_0 = arith.constant 0 : i32
    %c0_i32_1 = arith.constant 0 : i32
    return %c0_i32, %c0_i32_0 : i32, i32
  }
  func.func @transform_8(%arg0: i32) -> (i32, i32) {
    %c0_i32 = arith.constant 0 : i32
    %c0_i32_0 = arith.constant 0 : i32
    %c0_i32_1 = arith.constant 0 : i32
    return %c0_i32, %c0_i32_0 : i32, i32
  }
}

</mosaic_0001>

<llo_original>
// kernel: tpu_custom_call.1
$region0: #{tpu_custom_call.1}
  #allocation0 [shape = 'u32[]', space=smem, size = 0x4, offset = 0x4, fixed_abs, tag = 'smem constant byte address 0x4 - core index']
  #allocation1 [shape = 'u32[72,128]{1,0:T(1,128)}', space=vmem, size = 0x9000, scoped, tag = 'internal scratch']
  #allocation2 [shape = 'f32[16,32]{1,0:T(8,128)}', space=vmem, size = 0x2000, scoped, tag = 'scratch operand']
  %s0 = inlined_call_operand.vmem [shape: f32[16,32], index: 0, kind: input, shape index: {}]
  %s1 = inlined_call_operand.vmem [shape: f32[72,32], index: 1, kind: input, shape index: {}]
  %s2 = inlined_call_operand.vmem [shape: bf16[2,32,384], index: 2, kind: input, shape index: {}]
  %s3 = inlined_call_operand.vmem [shape: f32[2,48,32], index: 3, kind: input, shape index: {}]
  %s4 = inlined_call_operand.vmem [shape: f32[2,1,2048], index: 4, kind: input, shape index: {}]
  %s5 = inlined_call_operand.vmem [shape: bf16[2,32,2048], index: 5, kind: input, shape index: {}]
  %s6 = inlined_call_operand.vmem [shape: bf16[2,2048,32], index: 6, kind: input, shape index: {}]
  %s7 = inlined_call_operand.vmem [shape: f32[120,128], index: 7, kind: input, shape index: {}]
  %s8 = inlined_call_operand.hbm [shape: f32[16,128], index: 8, kind: output, shape index: {}]
  %s9 = sld [smem:[#allocation0]]
  $region73: #{tpu_custom_call.1} parent=0
    _
  %s11 = ssub.s32 1, %s9
  %s12 = scalar_select 0, %s11, %s9
  $region1: #{tpu_custom_call.1} parent=0
    #allocation3 [shape = 'u8[8192]{0}', space=vmem, size = 0x2000, scoped, tag = 'output window, operand 0, single buffered']
    #allocation4 [shape = 's32[2]{0}', space=sflag, size = 0x8, scoped, tag = 'scoped memory for tpu_custom_call.1']
    %13 = vsyncpa [#allocation4], 0
    loop: start=0, step=1, limit=4
    $region2: #{tpu_custom_call.1} parent=1 // loop_pre_header
      _
    $region3: #{tpu_custom_call.1} parent=1 // loop_header
      %s15 = sphi 0, %s19
      %p16 = scmp.ge.s32.totalorder %s15, 4
      %s23 = sphi 0, %s23
      %s25 = sphi 0, %s23
      %s26 = sphi 0, %s25
      %s40 = sphi 0, %s26
      %s44 = sphi 0, %s44
      %s46 = sphi 0, %s44
      %s47 = sphi 0, %s46
      %s61 = sphi 0, %s47
      %s67 = sphi 0, %s69
      %s70 = sphi 0, %s67
      %s71 = sphi 0, %s70
      %s87 = sphi 0, %s71
      %s93 = sphi 0, %s95
      %s96 = sphi 0, %s93
      %s97 = sphi 0, %s96
      %s113 = sphi 0, %s97
      %s119 = sphi 0, %s121
      %s122 = sphi 0, %s119
      %s123 = sphi 0, %s122
      %s139 = sphi 0, %s123
      %s145 = sphi 0, %s147
      %s148 = sphi 0, %s145
      %s149 = sphi 0, %s148
      %s165 = sphi 0, %s149
      %s171 = sphi 0, %s173
      %s174 = sphi 0, %s171
      %s175 = sphi 0, %s174
      %s191 = sphi 0, %s175
      %s195 = sphi 0, %s195
      %s197 = sphi 0, %s195
      %s198 = sphi 0, %s197
      %s212 = sphi 0, %s198
      %s216 = sphi 0, %s216
      %s218 = sphi 0, %s216
      %s219 = sphi 0, %s218
      %s233 = sphi 0, %s219
    $region4: #{tpu_custom_call.1} parent=1 // loop_header_branch
      %18 = sbr.rel (%p16) target = $region8
    $region5: #{tpu_custom_call.1} parent=1 // loop_body
      %s20 = ssub.s32 %s15, 1
      %s21 = ssub.s32 %s15, 2
      %s22 = sadd.s32 %s15, 1
      %s24 = sadd.s32 %s23, 1
      %p27 = scmp.eq.s32.totalorder %s15, 1
      %p28 = scmp.ne.s32.totalorder %s23, %s25
      %p29 = scmp.eq.s32.totalorder %s15, 0
      %p30 = por %p28, %p29
      %p31 = scmp.ne.s32.totalorder %s23, %s25
      %p32 = scmp.eq.s32.totalorder %s20, 1
      %p33 = por %p31, %p32
      %p34 = scmp.ne.s32.totalorder %s25, %s26
      %p35 = scmp.eq.s32.totalorder %s20, 0
      %p36 = por %p34, %p35
      %p37 = scmp.ne.s32.totalorder %s25, %s26
      %p38 = scmp.eq.s32.totalorder %s21, 1
      %p39 = por %p37, %p38
      %p41 = scmp.ne.s32.totalorder %s26, %s40
      %p42 = scmp.eq.s32.totalorder %s21, 0
      %p43 = por %p41, %p42
      %s45 = sadd.s32 %s44, 1
      %p48 = scmp.eq.s32.totalorder %s15, 1
      %p49 = scmp.ne.s32.totalorder %s44, %s46
      %p50 = scmp.eq.s32.totalorder %s15, 0
      %p51 = por %p49, %p50
      %p52 = scmp.ne.s32.totalorder %s44, %s46
      %p53 = scmp.eq.s32.totalorder %s20, 1
      %p54 = por %p52, %p53
      %p55 = scmp.ne.s32.totalorder %s46, %s47
      %p56 = scmp.eq.s32.totalorder %s20, 0
      %p57 = por %p55, %p56
      %p58 = scmp.ne.s32.totalorder %s46, %s47
      %p59 = scmp.eq.s32.totalorder %s21, 1
      %p60 = por %p58, %p59
      %p62 = scmp.ne.s32.totalorder %s47, %s61
      %p63 = scmp.eq.s32.totalorder %s21, 0
      %p64 = por %p62, %p63
      %s65 = ssub.s32 %s15, %s22
      %p66 = scmp.eq.s32.totalorder %s65, 0
      %s68 = sadd.s32 %s67, 1
      %s69 = scalar_select %p66, %s67, %s68
      %p72 = pneg %p66
      %p73 = scmp.eq.s32.totalorder %s15, 1
      %p74 = por %p72, %p73
      %p75 = scmp.ne.s32.totalorder %s67, %s70
      %p76 = scmp.eq.s32.totalorder %s15, 0
      %p77 = por %p75, %p76
      %p78 = scmp.ne.s32.totalorder %s67, %s70
      %p79 = scmp.eq.s32.totalorder %s20, 1
      %p80 = por %p78, %p79
      %p81 = scmp.ne.s32.totalorder %s70, %s71
      %p82 = scmp.eq.s32.totalorder %s20, 0
      %p83 = por %p81, %p82
      %p84 = scmp.ne.s32.totalorder %s70, %s71
      %p85 = scmp.eq.s32.totalorder %s21, 1
      %p86 = por %p84, %p85
      %p88 = scmp.ne.s32.totalorder %s71, %s87
      %p89 = scmp.eq.s32.totalorder %s21, 0
      %p90 = por %p88, %p89
      %s91 = ssub.s32 %s15, %s22
      %p92 = scmp.eq.s32.totalorder %s91, 0
      %s94 = sadd.s32 %s93, 1
      %s95 = scalar_select %p92, %s93, %s94
      %p98 = pneg %p92
      %p99 = scmp.eq.s32.totalorder %s15, 1
      %p100 = por %p98, %p99
      %p101 = scmp.ne.s32.totalorder %s93, %s96
      %p102 = scmp.eq.s32.totalorder %s15, 0
      %p103 = por %p101, %p102
      %p104 = scmp.ne.s32.totalorder %s93, %s96
      %p105 = scmp.eq.s32.totalorder %s20, 1
      %p106 = por %p104, %p105
      %p107 = scmp.ne.s32.totalorder %s96, %s97
      %p108 = scmp.eq.s32.totalorder %s20, 0
      %p109 = por %p107, %p108
      %p110 = scmp.ne.s32.totalorder %s96, %s97
      %p111 = scmp.eq.s32.totalorder %s21, 1
      %p112 = por %p110, %p111
      %p114 = scmp.ne.s32.totalorder %s97, %s113
      %p115 = scmp.eq.s32.totalorder %s21, 0
      %p116 = por %p114, %p115
      %s117 = ssub.s32 %s15, %s22
      %p118 = scmp.eq.s32.totalorder %s117, 0
      %s120 = sadd.s32 %s119, 1
      %s121 = scalar_select %p118, %s119, %s120
      %p124 = pneg %p118
      %p125 = scmp.eq.s32.totalorder %s15, 1
      %p126 = por %p124, %p125
      %p127 = scmp.ne.s32.totalorder %s119, %s122
      %p128 = scmp.eq.s32.totalorder %s15, 0
      %p129 = por %p127, %p128
      %p130 = scmp.ne.s32.totalorder %s119, %s122
      %p131 = scmp.eq.s32.totalorder %s20, 1
      %p132 = por %p130, %p131
      %p133 = scmp.ne.s32.totalorder %s122, %s123
      %p134 = scmp.eq.s32.totalorder %s20, 0
      %p135 = por %p133, %p134
      %p136 = scmp.ne.s32.totalorder %s122, %s123
      %p137 = scmp.eq.s32.totalorder %s21, 1
      %p138 = por %p136, %p137
      %p140 = scmp.ne.s32.totalorder %s123, %s139
      %p141 = scmp.eq.s32.totalorder %s21, 0
      %p142 = por %p140, %p141
      %s143 = ssub.s32 %s15, %s22
      %p144 = scmp.eq.s32.totalorder %s143, 0
      %s146 = sadd.s32 %s145, 1
      %s147 = scalar_select %p144, %s145, %s146
      %p150 = pneg %p144
      %p151 = scmp.eq.s32.totalorder %s15, 1
      %p152 = por %p150, %p151
      %p153 = scmp.ne.s32.totalorder %s145, %s148
      %p154 = scmp.eq.s32.totalorder %s15, 0
      %p155 = por %p153, %p154
      %p156 = scmp.ne.s32.totalorder %s145, %s148
      %p157 = scmp.eq.s32.totalorder %s20, 1
      %p158 = por %p156, %p157
      %p159 = scmp.ne.s32.totalorder %s148, %s149
      %p160 = scmp.eq.s32.totalorder %s20, 0
      %p161 = por %p159, %p160
      %p162 = scmp.ne.s32.totalorder %s148, %s149
      %p163 = scmp.eq.s32.totalorder %s21, 1
      %p164 = por %p162, %p163
      %p166 = scmp.ne.s32.totalorder %s149, %s165
      %p167 = scmp.eq.s32.totalorder %s21, 0
      %p168 = por %p166, %p167
      %s169 = ssub.s32 %s15, %s22
      %p170 = scmp.eq.s32.totalorder %s169, 0
      %s172 = sadd.s32 %s171, 1
      %s173 = scalar_select %p170, %s171, %s172
      %p176 = pneg %p170
      %p177 = scmp.eq.s32.totalorder %s15, 1
      %p178 = por %p176, %p177
      %p179 = scmp.ne.s32.totalorder %s171, %s174
      %p180 = scmp.eq.s32.totalorder %s15, 0
      %p181 = por %p179, %p180
      %p182 = scmp.ne.s32.totalorder %s171, %s174
      %p183 = scmp.eq.s32.totalorder %s20, 1
      %p184 = por %p182, %p183
      %p185 = scmp.ne.s32.totalorder %s174, %s175
      %p186 = scmp.eq.s32.totalorder %s20, 0
      %p187 = por %p185, %p186
      %p188 = scmp.ne.s32.totalorder %s174, %s175
      %p189 = scmp.eq.s32.totalorder %s21, 1
      %p190 = por %p188, %p189
      %p192 = scmp.ne.s32.totalorder %s175, %s191
      %p193 = scmp.eq.s32.totalorder %s21, 0
      %p194 = por %p192, %p193
      %s196 = sadd.s32 %s195, 1
      %p199 = scmp.eq.s32.totalorder %s15, 1
      %p200 = scmp.ne.s32.totalorder %s195, %s197
      %p201 = scmp.eq.s32.totalorder %s15, 0
      %p202 = por %p200, %p201
      %p203 = scmp.ne.s32.totalorder %s195, %s197
      %p204 = scmp.eq.s32.totalorder %s20, 1
      %p205 = por %p203, %p204
      %p206 = scmp.ne.s32.totalorder %s197, %s198
      %p207 = scmp.eq.s32.totalorder %s20, 0
      %p208 = por %p206, %p207
      %p209 = scmp.ne.s32.totalorder %s197, %s198
      %p210 = scmp.eq.s32.totalorder %s21, 1
      %p211 = por %p209, %p210
      %p213 = scmp.ne.s32.totalorder %s198, %s212
      %p214 = scmp.eq.s32.totalorder %s21, 0
      %p215 = por %p213, %p214
      %s217 = sadd.s32 %s216, 1
      %p220 = scmp.eq.s32.totalorder %s15, 1
      %p221 = scmp.ne.s32.totalorder %s216, %s218
      %p222 = scmp.eq.s32.totalorder %s15, 0
      %p223 = por %p221, %p222
      %p224 = scmp.ne.s32.totalorder %s216, %s218
      %p225 = scmp.eq.s32.totalorder %s20, 1
      %p226 = por %p224, %p225
      %p227 = scmp.ne.s32.totalorder %s218, %s219
      %p228 = scmp.eq.s32.totalorder %s20, 0
      %p229 = por %p227, %p228
      %p230 = scmp.ne.s32.totalorder %s218, %s219
      %p231 = scmp.eq.s32.totalorder %s21, 1
      %p232 = por %p230, %p231
      %p234 = scmp.ne.s32.totalorder %s219, %s233
      %p235 = scmp.eq.s32.totalorder %s21, 0
      %p236 = por %p234, %p235
      %p237 = scmp.le.s32.totalorder 1, %s15
      %p238 = scmp.lt.s32.totalorder %s15, 3
      %p239 = pnand %p237, %p238
      %p240 = pneg %p239
      // Predicated region
      $region9: #{tpu_custom_call.1} parent=5 // pred_check
        _
      $region10: #{tpu_custom_call.1} parent=5 // pred_check_branch
        %242 = sbr.rel (%p239) target = $region12
      $region11: #{tpu_custom_call.1} parent=5 // pred_region
        %s243 = ssub.s32 %s15, 1
        // Predicated region
        $region13: #{tpu_custom_call.1} parent=11 // pred_check
          %p244 = pneg %p36
        $region14: #{tpu_custom_call.1} parent=11 // pred_check_branch
          %246 = sbr.rel (%p244) target = $region16
        $region15: #{tpu_custom_call.1} parent=11 // pred_region
          _
        $region16: #{tpu_custom_call.1} parent=11 // pred_fallthru
          _
        // Predicated region
        $region17: #{tpu_custom_call.1} parent=11 // pred_check
          %p247 = pneg %p57
        $region18: #{tpu_custom_call.1} parent=11 // pred_check_branch
          %249 = sbr.rel (%p247) target = $region20
        $region19: #{tpu_custom_call.1} parent=11 // pred_region
          _
        $region20: #{tpu_custom_call.1} parent=11 // pred_fallthru
          _
        // Predicated region
        $region21: #{tpu_custom_call.1} parent=11 // pred_check
          %p250 = pneg %p208
        $region22: #{tpu_custom_call.1} parent=11 // pred_check_branch
          %252 = sbr.rel (%p250) target = $region24
        $region23: #{tpu_custom_call.1} parent=11 // pred_region
          _
        $region24: #{tpu_custom_call.1} parent=11 // pred_fallthru
          _
      $region12: #{tpu_custom_call.1} parent=5 // pred_fallthru
        _
      %p253 = scmp.lt.s32.totalorder %s15, 2
      // Predicated region
      $region25: #{tpu_custom_call.1} parent=5 // pred_check
        %p254 = pneg %p253
      $region26: #{tpu_custom_call.1} parent=5 // pred_check_branch
        %256 = sbr.rel (%p254) target = $region28
      $region27: #{tpu_custom_call.1} parent=5 // pred_region
        // Predicated region
        $region29: #{tpu_custom_call.1} parent=27 // pred_check
          %p257 = pneg %p77
        $region30: #{tpu_custom_call.1} parent=27 // pred_check_branch
          %259 = sbr.rel (%p257) target = $region32
        $region31: #{tpu_custom_call.1} parent=27 // pred_region
          %p260 = scmp.lt.s32.totalorder %s15, 1
          %s261 = scalar_select %p260, %s15, 1
          %s262 = smul.addr %s261, 12
          %s263 = smul.addr %s262, 4
          %s264 = scalar_lea.vmem %s2, %s263
        $region32: #{tpu_custom_call.1} parent=27 // pred_fallthru
          _
        // Predicated region
        $region33: #{tpu_custom_call.1} parent=27 // pred_check
          %p265 = pneg %p103
        $region34: #{tpu_custom_call.1} parent=27 // pred_check_branch
          %267 = sbr.rel (%p265) target = $region36
        $region35: #{tpu_custom_call.1} parent=27 // pred_region
          %p268 = scmp.lt.s32.totalorder %s15, 1
          %s269 = scalar_select %p268, %s15, 1
          %s270 = smul.addr %s269, 6
          %s271 = smul.addr %s270, 8
          %s272 = scalar_lea.vmem %s3, %s271
        $region36: #{tpu_custom_call.1} parent=27 // pred_fallthru
          _
        // Predicated region
        $region37: #{tpu_custom_call.1} parent=27 // pred_check
          %p273 = pneg %p129
        $region38: #{tpu_custom_call.1} parent=27 // pred_check_branch
          %275 = sbr.rel (%p273) target = $region40
        $region39: #{tpu_custom_call.1} parent=27 // pred_region
          %p276 = scmp.lt.s32.totalorder %s15, 1
          %s277 = scalar_select %p276, %s15, 1
          %s278 = smul.addr %s277, 16
          %s279 = scalar_lea.vmem %s4, %s278
        $region40: #{tpu_custom_call.1} parent=27 // pred_fallthru
          _
        // Predicated region
        $region41: #{tpu_custom_call.1} parent=27 // pred_check
          %p280 = pneg %p155
        $region42: #{tpu_custom_call.1} parent=27 // pred_check_branch
          %282 = sbr.rel (%p280) target = $region44
        $region43: #{tpu_custom_call.1} parent=27 // pred_region
          %p283 = scmp.lt.s32.totalorder %s15, 1
          %s284 = scalar_select %p283, %s15, 1
          %s285 = smul.addr %s284, 64
          %s286 = smul.addr %s285, 4
          %s287 = scalar_lea.vmem %s5, %s286
        $region44: #{tpu_custom_call.1} parent=27 // pred_fallthru
          _
        // Predicated region
        $region45: #{tpu_custom_call.1} parent=27 // pred_check
          %p288 = pneg %p181
        $region46: #{tpu_custom_call.1} parent=27 // pred_check_branch
          %290 = sbr.rel (%p288) target = $region48
        $region47: #{tpu_custom_call.1} parent=27 // pred_region
          %p291 = scmp.lt.s32.totalorder %s15, 1
          %s292 = scalar_select %p291, %s15, 1
          %s293 = smul.addr %s292, 256
          %s294 = smul.addr %s293, 4
          %s295 = scalar_lea.vmem %s6, %s294
        $region48: #{tpu_custom_call.1} parent=27 // pred_fallthru
          _
      $region28: #{tpu_custom_call.1} parent=5 // pred_fallthru
        _
      %p296 = scmp.le.s32.totalorder 1, %s15
      %p297 = scmp.lt.s32.totalorder %s15, 3
      %p298 = pnand %p296, %p297
      %p299 = pneg %p298
      // Predicated region
      $region49: #{tpu_custom_call.1} parent=5 // pred_check
        _
      $region50: #{tpu_custom_call.1} parent=5 // pred_check_branch
        %301 = sbr.rel (%p298) target = $region52
      $region51: #{tpu_custom_call.1} parent=5 // pred_region
        %s302 = ssub.s32 %s15, 1
        %p303 = pneg %p36
        %p304 = pneg %p33
        %p305 = pneg %p57
        %p306 = pneg %p54
        %p307 = scmp.lt.s32.totalorder %s20, 1
        %s308 = scalar_select %p307, %s20, 1
        %s309 = smul.addr %s308, 12
        %s310 = smul.addr %s309, 4
        %s311 = scalar_lea.vmem %s2, %s310
        %p312 = pneg %p83
        %p313 = pneg %p80
        %p314 = scmp.lt.s32.totalorder %s20, 1
        %s315 = scalar_select %p314, %s20, 1
        %s316 = smul.addr %s315, 6
        %s317 = smul.addr %s316, 8
        %s318 = scalar_lea.vmem %s3, %s317
        %p319 = pneg %p109
        %p320 = pneg %p106
        %p321 = scmp.lt.s32.totalorder %s20, 1
        %s322 = scalar_select %p321, %s20, 1
        %s323 = smul.addr %s322, 16
        %s324 = scalar_lea.vmem %s4, %s323
        %p325 = pneg %p135
        %p326 = pneg %p132
        %p327 = scmp.lt.s32.totalorder %s20, 1
        %s328 = scalar_select %p327, %s20, 1
        %s329 = smul.addr %s328, 64
        %s330 = smul.addr %s329, 4
        %s331 = scalar_lea.vmem %s5, %s330
        %p332 = pneg %p161
        %p333 = pneg %p158
        %p334 = scmp.lt.s32.totalorder %s20, 1
        %s335 = scalar_select %p334, %s20, 1
        %s336 = smul.addr %s335, 256
        %s337 = smul.addr %s336, 4
        %s338 = scalar_lea.vmem %s6, %s337
        %p339 = pneg %p187
        %p340 = pneg %p184
        %p341 = pneg %p208
        %p342 = pneg %p205
        %p343 = pneg %p229
        %p344 = pneg %p226
        %p345 = scmp.lt.s32.totalorder %s20, 1
        %s346 = scalar_select %p345, %s20, 1
        %s347 = smul.addr %s346, 12
        %s348 = smul.addr %s347, 4
        %s349 = scalar_lea.vmem %s2, %s348
        %p350 = scmp.lt.s32.totalorder %s20, 1
        %s351 = scalar_select %p350, %s20, 1
        %s352 = smul.addr %s351, 6
        %s353 = smul.addr %s352, 8
        %s354 = scalar_lea.vmem %s3, %s353
        %p355 = scmp.lt.s32.totalorder %s20, 1
        %s356 = scalar_select %p355, %s20, 1
        %s357 = smul.addr %s356, 16
        %s358 = scalar_lea.vmem %s4, %s357
        %p359 = scmp.lt.s32.totalorder %s20, 1
        %s360 = scalar_select %p359, %s20, 1
        %s361 = smul.addr %s360, 64
        %s362 = smul.addr %s361, 4
        %s363 = scalar_lea.vmem %s5, %s362
        %p364 = scmp.lt.s32.totalorder %s20, 1
        %s365 = scalar_select %p364, %s20, 1
        %s366 = smul.addr %s365, 256
        %s367 = smul.addr %s366, 4
        %s368 = scalar_lea.vmem %s6, %s367
        %p370 = scmp.eq.s32.totalorder %s20, 0
        // Predicated region
        $region53: #{tpu_custom_call.1} parent=51 // pred_check
          %p371 = pneg %p370
        $region54: #{tpu_custom_call.1} parent=51 // pred_check_branch
          %373 = sbr.rel (%p371) target = $region56
        $region55: #{tpu_custom_call.1} parent=51 // pred_region
          %v374 = vld [vmem:[%s1 + $0x10] sm:$0x1]
          %v375 = vld [vmem:[%s1] sm:$0xff]
          %v376 = vld [vmem:[%s1 + $0x8] sm:$0xff]
          %v377 = vld [vmem:[%s0] sm:$0xff]
          %v378 = vld [vmem:[%s0 + $0x8] sm:$0xff]
          %v379 = vperm.slane %v374, 0
          %v380 = vmul.f32 %v377, %v379
          %v381 = vmul.f32 %v378, %v379
          %v382 = vadd.f32 %v380, %v375
          %v383 = vadd.f32 %v381, %v376
          %vm384 = vcmask 261120
          %385 = vst.msk [vmem:[#allocation2] sm:$0xff] %vm384, %v382
          %386 = vst.msk [vmem:[#allocation2 + $0x8] sm:$0xff] %vm384, %v383
        $region56: #{tpu_custom_call.1} parent=51 // pred_fallthru
          _
        %v387 = vld [vmem:[#allocation2] sm:$0xff]
        %v388 = vld [vmem:[#allocation2 + $0x8] sm:$0xff]
        %v389 = vld [vmem:[%s1 + $0x18] sm:$0xff]
        %v390 = vld [vmem:[%s1 + $0x20] sm:$0xff]
        %v391 = vpack.c.bf16 %v388, %v387
        %v392 = vld [vmem:[%s349] sm:$0xff]
        %v393 = vld [vmem:[%s349 + $0x8] sm:$0xf]
        %v394 = vld [vmem:[%s349 + $0xc] sm:$0xff]
        %v395 = vld [vmem:[%s349 + $0x14] sm:$0xf]
        %v396 = vld [vmem:[%s349 + $0x18] sm:$0xff]
        %v397 = vld [vmem:[%s349 + $0x20] sm:$0xf]
        %v398 = vld [vmem:[%s349 + $0x24] sm:$0xff]
        %v399 = vld [vmem:[%s349 + $0x2c] sm:$0xf]
        %v408 = vunpack.c.l.b16 %v392
        %v409 = vunpack.c.h.b16 %v392
        %v410 = vunpack.c.l.b16 %v393
        %v411 = vunpack.c.l.b16 %v394
        %v412 = vunpack.c.h.b16 %v394
        %v413 = vunpack.c.l.b16 %v395
        %v414 = vunpack.c.l.b16 %v396
        %v415 = vunpack.c.h.b16 %v396
        %v416 = vunpack.c.l.b16 %v397
        %v417 = vunpack.c.l.b16 %v398
        %v418 = vunpack.c.h.b16 %v398
        %v419 = vunpack.c.l.b16 %v399
        %v420 = vpack.c.b16 %v411, %v408
        %v421 = vpack.c.b16 %v412, %v409
        %v422 = vpack.c.b16 %v413, %v410
        %v423 = vpack.c.b16 %v417, %v414
        %v424 = vpack.c.b16 %v418, %v415
        %v425 = vpack.c.b16 %v419, %v416
        %vm432 = vcmask 261120
        %v434 = vsel %vm432, %v391, 0
        %436 = vmatpush.bf16.msra.mxu0 0
        %437 = vmatpush.bf16.msra.mxu0 0
        %438 = vmatpush.bf16.msra.mxu0 0
        %439 = vmatpush.bf16.msra.mxu0 0
        %440 = vmatpush.bf16.msra.mxu0 0
        %441 = vmatpush.bf16.msra.mxu0 0
        %442 = vmatpush.bf16.msra.mxu0 %v423
        %443 = vmatpush.bf16.msra.mxu0 %v420
        %444 = vmatmul.bf16.gmra.mxu0 %v434
        %v445 = vpop.f32.mrf.mxu0
        %v446 = vadd.f32 0.0, %v445
        %v447 = vpop.f32.mrf.mxu0
        %v448 = vadd.f32 0.0, %v447
        %449 = vdwg.mxu0
        %450 = vmatpush.bf16.msra.mxu0 0
        %451 = vmatpush.bf16.msra.mxu0 0
        %452 = vmatpush.bf16.msra.mxu0 0
        %453 = vmatpush.bf16.msra.mxu0 0
        %454 = vmatpush.bf16.msra.mxu0 0
        %455 = vmatpush.bf16.msra.mxu0 0
        %456 = vmatpush.bf16.msra.mxu0 %v424
        %457 = vmatpush.bf16.msra.mxu0 %v421
        %458 = vmatmul.bf16.gmra.mxu0 %v434
        %v459 = vpop.f32.mrf.mxu0
        %v460 = vadd.f32 0.0, %v459
        %v461 = vpop.f32.mrf.mxu0
        %v462 = vadd.f32 0.0, %v461
        %463 = vdwg.mxu0
        %464 = vmatpush.bf16.msra.mxu0 0
        %465 = vmatpush.bf16.msra.mxu0 0
        %466 = vmatpush.bf16.msra.mxu0 0
        %467 = vmatpush.bf16.msra.mxu0 0
        %468 = vmatpush.bf16.msra.mxu0 0
        %469 = vmatpush.bf16.msra.mxu0 0
        %470 = vmatpush.bf16.msra.mxu0 %v425
        %471 = vmatpush.bf16.msra.mxu0 %v422
        %472 = vmatmul.bf16.gmra.mxu0 %v434
        %v473 = vpop.f32.mrf.mxu0
        %v474 = vadd.f32 0.0, %v473
        %v475 = vpop.f32.mrf.mxu0
        %v476 = vadd.f32 0.0, %v475
        %477 = vdwg.mxu0
        %v478 = vld [vmem:[%s354] sm:$0x1]
        %v479 = vperm.slane %v478, 0
        %v480 = vadd.f32 %v446, %v479
        %v481 = vadd.f32 %v448, %v479
        %v482 = vld [vmem:[%s354 + $0x1] sm:$0x1]
        %v483 = vperm.slane %v482, 0
        %v484 = vadd.f32 %v460, %v483
        %v485 = vadd.f32 %v462, %v483
        %v486 = vld [vmem:[%s354 + $0x2] sm:$0x1]
        %v487 = vperm.slane %v486, 0
        %v488 = vadd.f32 %v474, %v487
        %v489 = vadd.f32 %v476, %v487
        %v490 = vld [vmem:[%s1 + $0x28] sm:$0x1]
        %v491 = vperm.slane %v490, 0
        %v492 = vmul.f32 %v484, %v491
        %v493 = vmul.f32 %v485, %v491
        %v495 = vsel %vm432, %v480, 0
        %v498 = vsel %vm432, %v481, 0
        %v501 = vsel %vm432, %v492, 0
        %v504 = vsel %vm432, %v493, 0
        %506 = vmatpush.xpose.msra.mxu0 0.0
        %507 = vmatpush.xpose.msra.mxu0 0.0
        %508 = vmatpush.xpose.msra.mxu0 0.0
        %509 = vmatpush.xpose.msra.mxu0 0.0
        %510 = vmatpush.xpose.msra.mxu0 0.0
        %511 = vmatpush.xpose.msra.mxu0 0.0
        %512 = vmatpush.xpose.msra.mxu0 0.0
        %513 = vmatpush.xpose.msra.mxu0 0.0
        %514 = vmatpush.xpose.msra.mxu0 0.0
        %515 = vmatpush.xpose.msra.mxu0 0.0
        %516 = vmatpush.xpose.msra.mxu0 0.0
        %517 = vmatpush.xpose.msra.mxu0 0.0
        %518 = vmatpush.xpose.msra.mxu0 0.0
        %519 = vmatpush.xpose.msra.mxu0 0.0
        %520 = vmatpush.xpose.msra.mxu0 %v504
        %521 = vmatpush.xpose.msra.mxu0 %v501
        %522 = vmatmul.f32.gmra.mxu0 %v495
        %v523 = vpop.f32.mrf.mxu0
        %v524 = vadd.f32 0.0, %v523
        %525 = vmatmul.f32.gmra.mxu0 %v498
        %v526 = vpop.f32.mrf.mxu0
        %v527 = vadd.f32 0.0, %v526
        %528 = vdwg.mxu0
        %v529 = vmul.f32 %v524, 0.35355338
        %v530 = vmul.f32 %v527, 0.35355338
        %v531 = vadd.f32 %v529, %v389
        %v532 = vadd.f32 %v530, %v390
        %vm533 = vcmask 130048
        %v534 = vsel %vm533, %v531, -inf
        %535 = vmax.xlane.f32.xlu0 %v534
        %v536 = vpop.xlane.xlu0 %535
        %v537 = vsel %vm533, %v532, -inf
        %538 = vmax.xlane.f32.xlu0 %v537
        %v539 = vpop.xlane.xlu0 %538
        %v540 = vsub.f32 %v531, %v536
        %v541 = vsub.f32 %v532, %v539
        %v542 = vmul.f32 %v540, 1.442695
        %v543 = vpow.pop %v542
        %v544 = vmul.f32 %v541, 1.442695
        %v545 = vpow.pop %v544
        %v546 = vsel %vm533, %v543, 0.0
        %547 = vadd.xlane.f32.xlu0 %v546
        %v548 = vpop.xlane.xlu0 %547
        %v549 = vsel %vm533, %v545, 0.0
        %550 = vadd.xlane.f32.xlu0 %v549
        %v551 = vpop.xlane.xlu0 %550
        %v552 = vrcp.pop %v548
        %v553 = vmul.f32 %v548, %v552
        %v554 = vsub.f32 1.0, %v553
        %v555 = vmul.f32 %v552, %v554
        %v556 = vadd.f32 %v552, %v555
        %vm557 = vweird.f32 %v548
        %vm558 = vweird.f32 %v552
        %vm559 = vmor %vm557, %vm558
        %v560 = vsel %vm559, %v552, %v556
        %v561 = vand.u32 2147483647, %v548
        %vm562 = vcmp.eq.f32.partialorder %v561, 8.507059e+37
        %v563 = vand.u32 %v548, 2147483648
        %v564 = vor.u32 1.1754944e-38, %v563
        %v565 = vsel %vm562, %v564, %v560
        %v566 = vrcp.pop %v551
        %v567 = vmul.f32 %v551, %v566
        %v568 = vsub.f32 1.0, %v567
        %v569 = vmul.f32 %v566, %v568
        %v570 = vadd.f32 %v566, %v569
        %vm571 = vweird.f32 %v551
        %vm572 = vweird.f32 %v566
        %vm573 = vmor %vm571, %vm572
        %v574 = vsel %vm573, %v566, %v570
        %v575 = vand.u32 2147483647, %v551
        %vm576 = vcmp.eq.f32.partialorder %v575, 8.507059e+37
        %v577 = vand.u32 %v551, 2147483648
        %v578 = vor.u32 1.1754944e-38, %v577
        %v579 = vsel %vm576, %v578, %v574
        %v580 = vmul.f32 %v543, %v565
        %v581 = vmul.f32 %v545, %v579
        %v582 = vmul.f32 %v488, %v491
        %v583 = vmul.f32 %v489, %v491
        %v584 = vld [vmem:[%s1 + $0x30] sm:$0x1]
        %v585 = vperm.slane %v584, 0
        %v586 = vmul.f32 %v484, %v585
        %v587 = vmul.f32 %v485, %v585
        %v589 = vsel %vm432, %v586, 0
        %v592 = vsel %vm432, %v587, 0
        %594 = vmatpush.xpose.msra.mxu0 0.0
        %595 = vmatpush.xpose.msra.mxu0 0.0
        %596 = vmatpush.xpose.msra.mxu0 0.0
        %597 = vmatpush.xpose.msra.mxu0 0.0
        %598 = vmatpush.xpose.msra.mxu0 0.0
        %599 = vmatpush.xpose.msra.mxu0 0.0
        %600 = vmatpush.xpose.msra.mxu0 0.0
        %601 = vmatpush.xpose.msra.mxu0 0.0
        %602 = vmatpush.xpose.msra.mxu0 0.0
        %603 = vmatpush.xpose.msra.mxu0 0.0
        %604 = vmatpush.xpose.msra.mxu0 0.0
        %605 = vmatpush.xpose.msra.mxu0 0.0
        %606 = vmatpush.xpose.msra.mxu0 0.0
        %607 = vmatpush.xpose.msra.mxu0 0.0
        %608 = vmatpush.xpose.msra.mxu0 %v592
        %609 = vmatpush.xpose.msra.mxu0 %v589
        %610 = vmatmul.f32.gmra.mxu0 %v495
        %v611 = vpop.f32.mrf.mxu0
        %v612 = vadd.f32 0.0, %v611
        %613 = vmatmul.f32.gmra.mxu0 %v498
        %v614 = vpop.f32.mrf.mxu0
        %v615 = vadd.f32 0.0, %v614
        %616 = vdwg.mxu0
        %v617 = vmul.f32 %v612, 0.35355338
        %v618 = vmul.f32 %v615, 0.35355338
        %v619 = vadd.f32 %v617, %v389
        %v620 = vadd.f32 %v618, %v390
        %v621 = vsel %vm533, %v619, -inf
        %622 = vmax.xlane.f32.xlu0 %v621
        %v623 = vpop.xlane.xlu0 %622
        %v624 = vsel %vm533, %v620, -inf
        %625 = vmax.xlane.f32.xlu0 %v624
        %v626 = vpop.xlane.xlu0 %625
        %v627 = vsub.f32 %v619, %v623
        %v628 = vsub.f32 %v620, %v626
        %v629 = vmul.f32 %v627, 1.442695
        %v630 = vpow.pop %v629
        %v631 = vmul.f32 %v628, 1.442695
        %v632 = vpow.pop %v631
        %v633 = vsel %vm533, %v630, 0.0
        %634 = vadd.xlane.f32.xlu0 %v633
        %v635 = vpop.xlane.xlu0 %634
        %v636 = vsel %vm533, %v632, 0.0
        %637 = vadd.xlane.f32.xlu0 %v636
        %v638 = vpop.xlane.xlu0 %637
        %v639 = vrcp.pop %v635
        %v640 = vmul.f32 %v635, %v639
        %v641 = vsub.f32 1.0, %v640
        %v642 = vmul.f32 %v639, %v641
        %v643 = vadd.f32 %v639, %v642
        %vm644 = vweird.f32 %v635
        %vm645 = vweird.f32 %v639
        %vm646 = vmor %vm644, %vm645
        %v647 = vsel %vm646, %v639, %v643
        %v648 = vand.u32 2147483647, %v635
        %vm649 = vcmp.eq.f32.partialorder %v648, 8.507059e+37
        %v650 = vand.u32 %v635, 2147483648
        %v651 = vor.u32 1.1754944e-38, %v650
        %v652 = vsel %vm649, %v651, %v647
        %v653 = vrcp.pop %v638
        %v654 = vmul.f32 %v638, %v653
        %v655 = vsub.f32 1.0, %v654
        %v656 = vmul.f32 %v653, %v655
        %v657 = vadd.f32 %v653, %v656
        %vm658 = vweird.f32 %v638
        %vm659 = vweird.f32 %v653
        %vm660 = vmor %vm658, %vm659
        %v661 = vsel %vm660, %v653, %v657
        %v662 = vand.u32 2147483647, %v638
        %vm663 = vcmp.eq.f32.partialorder %v662, 8.507059e+37
        %v664 = vand.u32 %v638, 2147483648
        %v665 = vor.u32 1.1754944e-38, %v664
        %v666 = vsel %vm663, %v665, %v661
        %v667 = vmul.f32 %v630, %v652
        %v668 = vmul.f32 %v632, %v666
        %v669 = vmul.f32 %v488, %v585
        %v670 = vmul.f32 %v489, %v585
        %v672 = vsel %vm533, %v667, 0
        %v675 = vsel %vm533, %v668, 0
        %677 = vmatpush.msra.mxu0 0.0
        %678 = vmatpush.msra.mxu0 0.0
        %679 = vmatpush.msra.mxu0 0.0
        %680 = vmatpush.msra.mxu0 0.0
        %681 = vmatpush.msra.mxu0 0.0
        %682 = vmatpush.msra.mxu0 0.0
        %683 = vmatpush.msra.mxu0 0.0
        %684 = vmatpush.msra.mxu0 0.0
        %685 = vmatpush.msra.mxu0 0.0
        %686 = vmatpush.msra.mxu0 0.0
        %687 = vmatpush.msra.mxu0 0.0
        %688 = vmatpush.msra.mxu0 0.0
        %689 = vmatpush.msra.mxu0 0.0
        %690 = vmatpush.msra.mxu0 0.0
        %691 = vmatpush.msra.mxu0 %v670
        %692 = vmatpush.msra.mxu0 %v669
        %693 = vmatmul.f32.gmra.mxu0 %v672
        %v694 = vpop.f32.mrf.mxu0
        %v695 = vadd.f32 0.0, %v694
        %696 = vmatmul.f32.gmra.mxu0 %v675
        %v697 = vpop.f32.mrf.mxu0
        %v698 = vadd.f32 0.0, %v697
        %699 = vdwg.mxu0
        %v701 = vsel %vm533, %v580, 0
        %v704 = vsel %vm533, %v581, 0
        %706 = vmatpush.msra.mxu0 0.0
        %707 = vmatpush.msra.mxu0 0.0
        %708 = vmatpush.msra.mxu0 0.0
        %709 = vmatpush.msra.mxu0 0.0
        %710 = vmatpush.msra.mxu0 0.0
        %711 = vmatpush.msra.mxu0 0.0
        %712 = vmatpush.msra.mxu0 0.0
        %713 = vmatpush.msra.mxu0 0.0
        %714 = vmatpush.msra.mxu0 0.0
        %715 = vmatpush.msra.mxu0 0.0
        %716 = vmatpush.msra.mxu0 0.0
        %717 = vmatpush.msra.mxu0 0.0
        %718 = vmatpush.msra.mxu0 0.0
        %719 = vmatpush.msra.mxu0 0.0
        %720 = vmatpush.msra.mxu0 %v583
        %721 = vmatpush.msra.mxu0 %v582
        %722 = vmatmul.f32.gmra.mxu0 %v701
        %v723 = vpop.f32.mrf.mxu0
        %v724 = vadd.f32 %v695, %v723
        %725 = vmatmul.f32.gmra.mxu0 %v704
        %v726 = vpop.f32.mrf.mxu0
        %v727 = vadd.f32 %v698, %v726
        %728 = vdwg.mxu0
        %v729 = vld [vmem:[%s1 + $0x38] sm:$0x1]
        %v730 = vperm.slane %v729, 0
        %v731 = vmul.f32 %v484, %v730
        %v732 = vmul.f32 %v485, %v730
        %v734 = vsel %vm432, %v731, 0
        %v737 = vsel %vm432, %v732, 0
        %739 = vmatpush.xpose.msra.mxu0 0.0
        %740 = vmatpush.xpose.msra.mxu0 0.0
        %741 = vmatpush.xpose.msra.mxu0 0.0
        %742 = vmatpush.xpose.msra.mxu0 0.0
        %743 = vmatpush.xpose.msra.mxu0 0.0
        %744 = vmatpush.xpose.msra.mxu0 0.0
        %745 = vmatpush.xpose.msra.mxu0 0.0
        %746 = vmatpush.xpose.msra.mxu0 0.0
        %747 = vmatpush.xpose.msra.mxu0 0.0
        %748 = vmatpush.xpose.msra.mxu0 0.0
        %749 = vmatpush.xpose.msra.mxu0 0.0
        %750 = vmatpush.xpose.msra.mxu0 0.0
        %751 = vmatpush.xpose.msra.mxu0 0.0
        %752 = vmatpush.xpose.msra.mxu0 0.0
        %753 = vmatpush.xpose.msra.mxu0 %v737
        %754 = vmatpush.xpose.msra.mxu0 %v734
        %755 = vmatmul.f32.gmra.mxu0 %v495
        %v756 = vpop.f32.mrf.mxu0
        %v757 = vadd.f32 0.0, %v756
        %758 = vmatmul.f32.gmra.mxu0 %v498
        %v759 = vpop.f32.mrf.mxu0
        %v760 = vadd.f32 0.0, %v759
        %761 = vdwg.mxu0
        %v762 = vmul.f32 %v757, 0.35355338
        %v763 = vmul.f32 %v760, 0.35355338
        %v764 = vadd.f32 %v762, %v389
        %v765 = vadd.f32 %v763, %v390
        %v766 = vsel %vm533, %v764, -inf
        %767 = vmax.xlane.f32.xlu0 %v766
        %v768 = vpop.xlane.xlu0 %767
        %v769 = vsel %vm533, %v765, -inf
        %770 = vmax.xlane.f32.xlu0 %v769
        %v771 = vpop.xlane.xlu0 %770
        %v772 = vsub.f32 %v764, %v768
        %v773 = vsub.f32 %v765, %v771
        %v774 = vmul.f32 %v772, 1.442695
        %v775 = vpow.pop %v774
        %v776 = vmul.f32 %v773, 1.442695
        %v777 = vpow.pop %v776
        %v778 = vsel %vm533, %v775, 0.0
        %779 = vadd.xlane.f32.xlu0 %v778
        %v780 = vpop.xlane.xlu0 %779
        %v781 = vsel %vm533, %v777, 0.0
        %782 = vadd.xlane.f32.xlu0 %v781
        %v783 = vpop.xlane.xlu0 %782
        %v784 = vrcp.pop %v780
        %v785 = vmul.f32 %v780, %v784
        %v786 = vsub.f32 1.0, %v785
        %v787 = vmul.f32 %v784, %v786
        %v788 = vadd.f32 %v784, %v787
        %vm789 = vweird.f32 %v780
        %vm790 = vweird.f32 %v784
        %vm791 = vmor %vm789, %vm790
        %v792 = vsel %vm791, %v784, %v788
        %v793 = vand.u32 2147483647, %v780
        %vm794 = vcmp.eq.f32.partialorder %v793, 8.507059e+37
        %v795 = vand.u32 %v780, 2147483648
        %v796 = vor.u32 1.1754944e-38, %v795
        %v797 = vsel %vm794, %v796, %v792
        %v798 = vrcp.pop %v783
        %v799 = vmul.f32 %v783, %v798
        %v800 = vsub.f32 1.0, %v799
        %v801 = vmul.f32 %v798, %v800
        %v802 = vadd.f32 %v798, %v801
        %vm803 = vweird.f32 %v783
        %vm804 = vweird.f32 %v798
        %vm805 = vmor %vm803, %vm804
        %v806 = vsel %vm805, %v798, %v802
        %v807 = vand.u32 2147483647, %v783
        %vm808 = vcmp.eq.f32.partialorder %v807, 8.507059e+37
        %v809 = vand.u32 %v783, 2147483648
        %v810 = vor.u32 1.1754944e-38, %v809
        %v811 = vsel %vm808, %v810, %v806
        %v812 = vmul.f32 %v775, %v797
        %v813 = vmul.f32 %v777, %v811
        %v814 = vmul.f32 %v488, %v730
        %v815 = vmul.f32 %v489, %v730
        %v817 = vsel %vm533, %v812, 0
        %v820 = vsel %vm533, %v813, 0
        %822 = vmatpush.msra.mxu0 0.0
        %823 = vmatpush.msra.mxu0 0.0
        %824 = vmatpush.msra.mxu0 0.0
        %825 = vmatpush.msra.mxu0 0.0
        %826 = vmatpush.msra.mxu0 0.0
        %827 = vmatpush.msra.mxu0 0.0
        %828 = vmatpush.msra.mxu0 0.0
        %829 = vmatpush.msra.mxu0 0.0
        %830 = vmatpush.msra.mxu0 0.0
        %831 = vmatpush.msra.mxu0 0.0
        %832 = vmatpush.msra.mxu0 0.0
        %833 = vmatpush.msra.mxu0 0.0
        %834 = vmatpush.msra.mxu0 0.0
        %835 = vmatpush.msra.mxu0 0.0
        %836 = vmatpush.msra.mxu0 %v815
        %837 = vmatpush.msra.mxu0 %v814
        %838 = vmatmul.f32.gmra.mxu0 %v817
        %v839 = vpop.f32.mrf.mxu0
        %v840 = vadd.f32 0.0, %v839
        %841 = vmatmul.f32.gmra.mxu0 %v820
        %v842 = vpop.f32.mrf.mxu0
        %v843 = vadd.f32 0.0, %v842
        %844 = vdwg.mxu0
        %v845 = vadd.f32 %v724, %v840
        %v846 = vadd.f32 %v727, %v843
        %v847 = vld [vmem:[%s1 + $0x40] sm:$0x1]
        %v848 = vperm.slane %v847, 0
        %v849 = vmul.f32 %v484, %v848
        %v850 = vmul.f32 %v485, %v848
        %v852 = vsel %vm432, %v849, 0
        %v855 = vsel %vm432, %v850, 0
        %857 = vmatpush.xpose.msra.mxu0 0.0
        %858 = vmatpush.xpose.msra.mxu0 0.0
        %859 = vmatpush.xpose.msra.mxu0 0.0
        %860 = vmatpush.xpose.msra.mxu0 0.0
        %861 = vmatpush.xpose.msra.mxu0 0.0
        %862 = vmatpush.xpose.msra.mxu0 0.0
        %863 = vmatpush.xpose.msra.mxu0 0.0
        %864 = vmatpush.xpose.msra.mxu0 0.0
        %865 = vmatpush.xpose.msra.mxu0 0.0
        %866 = vmatpush.xpose.msra.mxu0 0.0
        %867 = vmatpush.xpose.msra.mxu0 0.0
        %868 = vmatpush.xpose.msra.mxu0 0.0
        %869 = vmatpush.xpose.msra.mxu0 0.0
        %870 = vmatpush.xpose.msra.mxu0 0.0
        %871 = vmatpush.xpose.msra.mxu0 %v855
        %872 = vmatpush.xpose.msra.mxu0 %v852
        %873 = vmatmul.f32.gmra.mxu0 %v495
        %v874 = vpop.f32.mrf.mxu0
        %v875 = vadd.f32 0.0, %v874
        %876 = vmatmul.f32.gmra.mxu0 %v498
        %v877 = vpop.f32.mrf.mxu0
        %v878 = vadd.f32 0.0, %v877
        %879 = vdwg.mxu0
        %v880 = vmul.f32 %v875, 0.35355338
        %v881 = vmul.f32 %v878, 0.35355338
        %v882 = vadd.f32 %v880, %v389
        %v883 = vadd.f32 %v881, %v390
        %v884 = vsel %vm533, %v882, -inf
        %885 = vmax.xlane.f32.xlu0 %v884
        %v886 = vpop.xlane.xlu0 %885
        %v887 = vsel %vm533, %v883, -inf
        %888 = vmax.xlane.f32.xlu0 %v887
        %v889 = vpop.xlane.xlu0 %888
        %v890 = vsub.f32 %v882, %v886
        %v891 = vsub.f32 %v883, %v889
        %v892 = vmul.f32 %v890, 1.442695
        %v893 = vpow.pop %v892
        %v894 = vmul.f32 %v891, 1.442695
        %v895 = vpow.pop %v894
        %v896 = vsel %vm533, %v893, 0.0
        %897 = vadd.xlane.f32.xlu0 %v896
        %v898 = vpop.xlane.xlu0 %897
        %v899 = vsel %vm533, %v895, 0.0
        %900 = vadd.xlane.f32.xlu0 %v899
        %v901 = vpop.xlane.xlu0 %900
        %v902 = vrcp.pop %v898
        %v903 = vmul.f32 %v898, %v902
        %v904 = vsub.f32 1.0, %v903
        %v905 = vmul.f32 %v902, %v904
        %v906 = vadd.f32 %v902, %v905
        %vm907 = vweird.f32 %v898
        %vm908 = vweird.f32 %v902
        %vm909 = vmor %vm907, %vm908
        %v910 = vsel %vm909, %v902, %v906
        %v911 = vand.u32 2147483647, %v898
        %vm912 = vcmp.eq.f32.partialorder %v911, 8.507059e+37
        %v913 = vand.u32 %v898, 2147483648
        %v914 = vor.u32 1.1754944e-38, %v913
        %v915 = vsel %vm912, %v914, %v910
        %v916 = vrcp.pop %v901
        %v917 = vmul.f32 %v901, %v916
        %v918 = vsub.f32 1.0, %v917
        %v919 = vmul.f32 %v916, %v918
        %v920 = vadd.f32 %v916, %v919
        %vm921 = vweird.f32 %v901
        %vm922 = vweird.f32 %v916
        %vm923 = vmor %vm921, %vm922
        %v924 = vsel %vm923, %v916, %v920
        %v925 = vand.u32 2147483647, %v901
        %vm926 = vcmp.eq.f32.partialorder %v925, 8.507059e+37
        %v927 = vand.u32 %v901, 2147483648
        %v928 = vor.u32 1.1754944e-38, %v927
        %v929 = vsel %vm926, %v928, %v924
        %v930 = vmul.f32 %v893, %v915
        %v931 = vmul.f32 %v895, %v929
        %v932 = vmul.f32 %v488, %v848
        %v933 = vmul.f32 %v489, %v848
        %v935 = vsel %vm533, %v930, 0
        %v938 = vsel %vm533, %v931, 0
        %940 = vmatpush.msra.mxu0 0.0
        %941 = vmatpush.msra.mxu0 0.0
        %942 = vmatpush.msra.mxu0 0.0
        %943 = vmatpush.msra.mxu0 0.0
        %944 = vmatpush.msra.mxu0 0.0
        %945 = vmatpush.msra.mxu0 0.0
        %946 = vmatpush.msra.mxu0 0.0
        %947 = vmatpush.msra.mxu0 0.0
        %948 = vmatpush.msra.mxu0 0.0
        %949 = vmatpush.msra.mxu0 0.0
        %950 = vmatpush.msra.mxu0 0.0
        %951 = vmatpush.msra.mxu0 0.0
        %952 = vmatpush.msra.mxu0 0.0
        %953 = vmatpush.msra.mxu0 0.0
        %954 = vmatpush.msra.mxu0 %v933
        %955 = vmatpush.msra.mxu0 %v932
        %956 = vmatmul.f32.gmra.mxu0 %v935
        %v957 = vpop.f32.mrf.mxu0
        %v958 = vadd.f32 0.0, %v957
        %959 = vmatmul.f32.gmra.mxu0 %v938
        %v960 = vpop.f32.mrf.mxu0
        %v961 = vadd.f32 0.0, %v960
        %962 = vdwg.mxu0
        %v963 = vadd.f32 %v845, %v958
        %v964 = vadd.f32 %v846, %v961
        %v965 = vld [vmem:[%s354 + $0x10] sm:$0xff]
        %v966 = vld [vmem:[%s354 + $0x18] sm:$0xff]
        %v967 = vld [vmem:[%s354 + $0x20] sm:$0xff]
        %v968 = vld [vmem:[%s354 + $0x28] sm:$0xff]
        %v969 = vld [vmem:[%s354 + $0x3] sm:$0x1]
        %v970 = vperm.slane %v969, 0
        %v972 = vsel %vm432, %v963, 0
        %v975 = vsel %vm432, %v964, 0
        %977 = vmatpush.msra.mxu0 0.0
        %978 = vmatpush.msra.mxu0 0.0
        %979 = vmatpush.msra.mxu0 0.0
        %980 = vmatpush.msra.mxu0 0.0
        %981 = vmatpush.msra.mxu0 0.0
        %982 = vmatpush.msra.mxu0 0.0
        %983 = vmatpush.msra.mxu0 0.0
        %984 = vmatpush.msra.mxu0 0.0
        %985 = vmatpush.msra.mxu0 0.0
        %986 = vmatpush.msra.mxu0 0.0
        %987 = vmatpush.msra.mxu0 0.0
        %988 = vmatpush.msra.mxu0 0.0
        %989 = vmatpush.msra.mxu0 %v968
        %990 = vmatpush.msra.mxu0 %v967
        %991 = vmatpush.msra.mxu0 %v966
        %992 = vmatpush.msra.mxu0 %v965
        %993 = vmatmul.f32.gmra.mxu0 %v972
        %v994 = vpop.f32.mrf.mxu0
        %v995 = vadd.f32 %v970, %v994
        %996 = vmatmul.f32.gmra.mxu0 %v975
        %v997 = vpop.f32.mrf.mxu0
        %v998 = vadd.f32 %v970, %v997
        %999 = vdwg.mxu0
        %v1000 = vadd.f32 %v387, %v995
        %v1001 = vadd.f32 %v388, %v998
        %v1002 = vld [vmem:[%s354 + $0x4] sm:$0x1]
        %v1003 = vld [vmem:[%s354 + $0x5] sm:$0x1]
        %v1004 = vsel %vm432, %v1000, 0.0
        %1005 = vadd.xlane.f32.xlu0 %v1004
        %v1006 = vpop.xlane.xlu0 %1005
        %v1007 = vsel %vm432, %v1001, 0.0
        %1008 = vadd.xlane.f32.xlu0 %v1007
        %v1009 = vpop.xlane.xlu0 %1008
        %v1010 = vrcp.pop 32.0
        %v1011 = vmul.f32 32.0, %v1010
        %v1012 = vsub.f32 1.0, %v1011
        %v1013 = vmul.f32 %v1010, %v1012
        %v1014 = vadd.f32 %v1010, %v1013
        %vm1015 = vweird.f32 %v1010
        %v1016 = vsel %vm1015, %v1010, %v1014
        %v1017 = vmul.f32 %v1006, %v1016
        %v1018 = vmul.f32 %v1009, %v1016
        %v1019 = vsub.f32 %v1000, %v1017
        %v1020 = vsub.f32 %v1001, %v1018
        %v1021 = vmul.f32 %v1019, %v1019
        %v1022 = vmul.f32 %v1020, %v1020
        %v1023 = vsel %vm432, %v1021, 0.0
        %1024 = vadd.xlane.f32.xlu0 %v1023
        %v1025 = vpop.xlane.xlu0 %1024
        %v1026 = vsel %vm432, %v1022, 0.0
        %1027 = vadd.xlane.f32.xlu0 %v1026
        %v1028 = vpop.xlane.xlu0 %1027
        %v1029 = vmul.f32 %v1025, %v1016
        %v1030 = vmul.f32 %v1028, %v1016
        %v1031 = vadd.f32 %v1029, 1e-05
        %v1032 = vadd.f32 %v1030, 1e-05
        %v1033 = vrsqrt.pop %v1031
        %v1034 = vmul.f32 %v1033, %v1031
        %v1035 = vmul.f32 %v1034, %v1033
        %v1036 = vmul.f32 0.5, %v1035
        %v1037 = vsub.f32 1.5, %v1036
        %v1038 = vmul.f32 %v1033, %v1037
        %vm1039 = vweird.f32 %v1031
        %vm1040 = vweird.f32 %v1033
        %vm1041 = vmor %vm1039, %vm1040
        %v1042 = vsel %vm1041, %v1033, %v1038
        %v1043 = vrsqrt.pop %v1032
        %v1044 = vmul.f32 %v1043, %v1032
        %v1045 = vmul.f32 %v1044, %v1043
        %v1046 = vmul.f32 0.5, %v1045
        %v1047 = vsub.f32 1.5, %v1046
        %v1048 = vmul.f32 %v1043, %v1047
        %vm1049 = vweird.f32 %v1032
        %vm1050 = vweird.f32 %v1043
        %vm1051 = vmor %vm1049, %vm1050
        %v1052 = vsel %vm1051, %v1043, %v1048
        %v1053 = vmul.f32 %v1019, %v1042
        %v1054 = vmul.f32 %v1020, %v1052
        %v1055 = vperm.slane %v1002, 0
        %v1056 = vmul.f32 %v1053, %v1055
        %v1057 = vmul.f32 %v1054, %v1055
        %v1058 = vperm.slane %v1003, 0
        %v1059 = vadd.f32 %v1056, %v1058
        %v1060 = vadd.f32 %v1057, %v1058
        %v1061 = vpack.c.bf16 %v1060, %v1059
        %v1062 = vld [vmem:[%s363] sm:$0xff]
        %v1063 = vld [vmem:[%s363 + $0x8] sm:$0xff]
        %v1064 = vld [vmem:[%s363 + $0x40] sm:$0xff]
        %v1065 = vld [vmem:[%s363 + $0x48] sm:$0xff]
        %v1066 = vld [vmem:[%s363 + $0x80] sm:$0xff]
        %v1067 = vld [vmem:[%s363 + $0x88] sm:$0xff]
        %v1068 = vld [vmem:[%s363 + $0xc0] sm:$0xff]
        %v1069 = vld [vmem:[%s363 + $0xc8] sm:$0xff]
        %v1070 = vld [vmem:[%s358] sm:$0xf]
        %v1072 = vperm.slane %v1070, 0
        %v1073 = vperm.slane %v1070, 1
        %v1074 = vperm.slane %v1070, 2
        %v1075 = vperm.slane %v1070, 3
        %v1088 = vunpack.c.l.b16 %v1062
        %v1089 = vunpack.c.h.b16 %v1062
        %v1090 = vunpack.c.l.b16 %v1063
        %v1091 = vunpack.c.h.b16 %v1063
        %v1092 = vunpack.c.l.b16 %v1064
        %v1093 = vunpack.c.h.b16 %v1064
        %v1094 = vunpack.c.l.b16 %v1065
        %v1095 = vunpack.c.h.b16 %v1065
        %v1096 = vunpack.c.l.b16 %v1066
        %v1097 = vunpack.c.h.b16 %v1066
        %v1098 = vunpack.c.l.b16 %v1067
        %v1099 = vunpack.c.h.b16 %v1067
        %v1100 = vunpack.c.l.b16 %v1068
        %v1101 = vunpack.c.h.b16 %v1068
        %v1102 = vunpack.c.l.b16 %v1069
        %v1103 = vunpack.c.h.b16 %v1069
        %v1104 = vpack.c.b16 %v1092, %v1088
        %v1105 = vpack.c.b16 %v1093, %v1089
        %v1106 = vpack.c.b16 %v1094, %v1090
        %v1107 = vpack.c.b16 %v1095, %v1091
        %v1108 = vpack.c.b16 %v1100, %v1096
        %v1109 = vpack.c.b16 %v1101, %v1097
        %v1110 = vpack.c.b16 %v1102, %v1098
        %v1111 = vpack.c.b16 %v1103, %v1099
        %v1121 = vsel %vm432, %v1061, 0
        %1123 = vmatpush.bf16.msra.mxu0 0
        %1124 = vmatpush.bf16.msra.mxu0 0
        %1125 = vmatpush.bf16.msra.mxu0 0
        %1126 = vmatpush.bf16.msra.mxu0 0
        %1127 = vmatpush.bf16.msra.mxu0 0
        %1128 = vmatpush.bf16.msra.mxu0 0
        %1129 = vmatpush.bf16.msra.mxu0 %v1108
        %1130 = vmatpush.bf16.msra.mxu0 %v1104
        %1131 = vmatmul.bf16.gmra.mxu0 %v1121
        %v1132 = vpop.f32.mrf.mxu0
        %v1133 = vadd.f32 %v1072, %v1132
        %v1134 = vpop.f32.mrf.mxu0
        %v1135 = vadd.f32 %v1072, %v1134
        %1136 = vdwg.mxu0
        %1137 = vmatpush.bf16.msra.mxu0 0
        %1138 = vmatpush.bf16.msra.mxu0 0
        %1139 = vmatpush.bf16.msra.mxu0 0
        %1140 = vmatpush.bf16.msra.mxu0 0
        %1141 = vmatpush.bf16.msra.mxu0 0
        %1142 = vmatpush.bf16.msra.mxu0 0
        %1143 = vmatpush.bf16.msra.mxu0 %v1109
        %1144 = vmatpush.bf16.msra.mxu0 %v1105
        %1145 = vmatmul.bf16.gmra.mxu0 %v1121
        %v1146 = vpop.f32.mrf.mxu0
        %v1147 = vadd.f32 %v1073, %v1146
        %v1148 = vpop.f32.mrf.mxu0
        %v1149 = vadd.f32 %v1073, %v1148
        %1150 = vdwg.mxu0
        %1151 = vmatpush.bf16.msra.mxu0 0
        %1152 = vmatpush.bf16.msra.mxu0 0
        %1153 = vmatpush.bf16.msra.mxu0 0
        %1154 = vmatpush.bf16.msra.mxu0 0
        %1155 = vmatpush.bf16.msra.mxu0 0
        %1156 = vmatpush.bf16.msra.mxu0 0
        %1157 = vmatpush.bf16.msra.mxu0 %v1110
        %1158 = vmatpush.bf16.msra.mxu0 %v1106
        %1159 = vmatmul.bf16.gmra.mxu0 %v1121
        %v1160 = vpop.f32.mrf.mxu0
        %v1161 = vadd.f32 %v1074, %v1160
        %v1162 = vpop.f32.mrf.mxu0
        %v1163 = vadd.f32 %v1074, %v1162
        %1164 = vdwg.mxu0
        %1165 = vmatpush.bf16.msra.mxu0 0
        %1166 = vmatpush.bf16.msra.mxu0 0
        %1167 = vmatpush.bf16.msra.mxu0 0
        %1168 = vmatpush.bf16.msra.mxu0 0
        %1169 = vmatpush.bf16.msra.mxu0 0
        %1170 = vmatpush.bf16.msra.mxu0 0
        %1171 = vmatpush.bf16.msra.mxu0 %v1111
        %1172 = vmatpush.bf16.msra.mxu0 %v1107
        %1173 = vmatmul.bf16.gmra.mxu0 %v1121
        %v1174 = vpop.f32.mrf.mxu0
        %v1175 = vadd.f32 %v1075, %v1174
        %v1176 = vpop.f32.mrf.mxu0
        %v1177 = vadd.f32 %v1075, %v1176
        %1178 = vdwg.mxu0
        %v1179 = vmax.f32 %v1133, 0.0
        %v1180 = vmax.f32 %v1147, 0.0
        %v1181 = vmax.f32 %v1161, 0.0
        %v1182 = vmax.f32 %v1175, 0.0
        %v1183 = vmax.f32 %v1135, 0.0
        %v1184 = vmax.f32 %v1149, 0.0
        %v1185 = vmax.f32 %v1163, 0.0
        %v1186 = vmax.f32 %v1177, 0.0
        %v1187 = vpack.c.bf16 %v1183, %v1179
        %v1188 = vpack.c.bf16 %v1184, %v1180
        %v1189 = vpack.c.bf16 %v1185, %v1181
        %v1190 = vpack.c.bf16 %v1186, %v1182
        %v1191 = vld [vmem:[%s368] sm:$0xf]
        %v1192 = vld [vmem:[%s368 + $0x4] sm:$0xf]
        %v1193 = vld [vmem:[%s368 + $0x8] sm:$0xf]
        %v1194 = vld [vmem:[%s368 + $0xc] sm:$0xf]
        %v1195 = vld [vmem:[%s368 + $0x10] sm:$0xf]
        %v1196 = vld [vmem:[%s368 + $0x14] sm:$0xf]
        %v1197 = vld [vmem:[%s368 + $0x18] sm:$0xf]
        %v1198 = vld [vmem:[%s368 + $0x1c] sm:$0xf]
        %v1199 = vld [vmem:[%s368 + $0x20] sm:$0xf]
        %v1200 = vld [vmem:[%s368 + $0x24] sm:$0xf]
        %v1201 = vld [vmem:[%s368 + $0x28] sm:$0xf]
        %v1202 = vld [vmem:[%s368 + $0x2c] sm:$0xf]
        %v1203 = vld [vmem:[%s368 + $0x30] sm:$0xf]
        %v1204 = vld [vmem:[%s368 + $0x34] sm:$0xf]
        %v1205 = vld [vmem:[%s368 + $0x38] sm:$0xf]
        %v1206 = vld [vmem:[%s368 + $0x3c] sm:$0xf]
        %v1207 = vld [vmem:[%s368 + $0x40] sm:$0xf]
        %v1208 = vld [vmem:[%s368 + $0x44] sm:$0xf]
        %v1209 = vld [vmem:[%s368 + $0x48] sm:$0xf]
        %v1210 = vld [vmem:[%s368 + $0x4c] sm:$0xf]
        %v1211 = vld [vmem:[%s368 + $0x50] sm:$0xf]
        %v1212 = vld [vmem:[%s368 + $0x54] sm:$0xf]
        %v1213 = vld [vmem:[%s368 + $0x58] sm:$0xf]
        %v1214 = vld [vmem:[%s368 + $0x5c] sm:$0xf]
        %v1215 = vld [vmem:[%s368 + $0x60] sm:$0xf]
        %v1216 = vld [vmem:[%s368 + $0x64] sm:$0xf]
        %v1217 = vld [vmem:[%s368 + $0x68] sm:$0xf]
        %v1218 = vld [vmem:[%s368 + $0x6c] sm:$0xf]
        %v1219 = vld [vmem:[%s368 + $0x70] sm:$0xf]
        %v1220 = vld [vmem:[%s368 + $0x74] sm:$0xf]
        %v1221 = vld [vmem:[%s368 + $0x78] sm:$0xf]
        %v1222 = vld [vmem:[%s368 + $0x7c] sm:$0xf]
        %v1223 = vld [vmem:[%s368 + $0x80] sm:$0xf]
        %v1224 = vld [vmem:[%s368 + $0x84] sm:$0xf]
        %v1225 = vld [vmem:[%s368 + $0x88] sm:$0xf]
        %v1226 = vld [vmem:[%s368 + $0x8c] sm:$0xf]
        %v1227 = vld [vmem:[%s368 + $0x90] sm:$0xf]
        %v1228 = vld [vmem:[%s368 + $0x94] sm:$0xf]
        %v1229 = vld [vmem:[%s368 + $0x98] sm:$0xf]
        %v1230 = vld [vmem:[%s368 + $0x9c] sm:$0xf]
        %v1231 = vld [vmem:[%s368 + $0xa0] sm:$0xf]
        %v1232 = vld [vmem:[%s368 + $0xa4] sm:$0xf]
        %v1233 = vld [vmem:[%s368 + $0xa8] sm:$0xf]
        %v1234 = vld [vmem:[%s368 + $0xac] sm:$0xf]
        %v1235 = vld [vmem:[%s368 + $0xb0] sm:$0xf]
        %v1236 = vld [vmem:[%s368 + $0xb4] sm:$0xf]
        %v1237 = vld [vmem:[%s368 + $0xb8] sm:$0xf]
        %v1238 = vld [vmem:[%s368 + $0xbc] sm:$0xf]
        %v1239 = vld [vmem:[%s368 + $0xc0] sm:$0xf]
        %v1240 = vld [vmem:[%s368 + $0xc4] sm:$0xf]
        %v1241 = vld [vmem:[%s368 + $0xc8] sm:$0xf]
        %v1242 = vld [vmem:[%s368 + $0xcc] sm:$0xf]
        %v1243 = vld [vmem:[%s368 + $0xd0] sm:$0xf]
        %v1244 = vld [vmem:[%s368 + $0xd4] sm:$0xf]
        %v1245 = vld [vmem:[%s368 + $0xd8] sm:$0xf]
        %v1246 = vld [vmem:[%s368 + $0xdc] sm:$0xf]
        %v1247 = vld [vmem:[%s368 + $0xe0] sm:$0xf]
        %v1248 = vld [vmem:[%s368 + $0xe4] sm:$0xf]
        %v1249 = vld [vmem:[%s368 + $0xe8] sm:$0xf]
        %v1250 = vld [vmem:[%s368 + $0xec] sm:$0xf]
        %v1251 = vld [vmem:[%s368 + $0xf0] sm:$0xf]
        %v1252 = vld [vmem:[%s368 + $0xf4] sm:$0xf]
        %v1253 = vld [vmem:[%s368 + $0xf8] sm:$0xf]
        %v1254 = vld [vmem:[%s368 + $0xfc] sm:$0xf]
        %v1255 = vld [vmem:[%s363 + $0x10] sm:$0xff]
        %v1256 = vld [vmem:[%s363 + $0x18] sm:$0xff]
        %v1257 = vld [vmem:[%s363 + $0x50] sm:$0xff]
        %v1258 = vld [vmem:[%s363 + $0x58] sm:$0xff]
        %v1259 = vld [vmem:[%s363 + $0x90] sm:$0xff]
        %v1260 = vld [vmem:[%s363 + $0x98] sm:$0xff]
        %v1261 = vld [vmem:[%s363 + $0xd0] sm:$0xff]
        %v1262 = vld [vmem:[%s363 + $0xd8] sm:$0xff]
        %v1263 = vld [vmem:[%s358 + $0x4] sm:$0xf]
        %v1265 = vperm.slane %v1263, 0
        %v1266 = vperm.slane %v1263, 1
        %v1267 = vperm.slane %v1263, 2
        %v1268 = vperm.slane %v1263, 3
        %v1281 = vunpack.c.l.b16 %v1255
        %v1282 = vunpack.c.h.b16 %v1255
        %v1283 = vunpack.c.l.b16 %v1256
        %v1284 = vunpack.c.h.b16 %v1256
        %v1285 = vunpack.c.l.b16 %v1257
        %v1286 = vunpack.c.h.b16 %v1257
        %v1287 = vunpack.c.l.b16 %v1258
        %v1288 = vunpack.c.h.b16 %v1258
        %v1289 = vunpack.c.l.b16 %v1259
        %v1290 = vunpack.c.h.b16 %v1259
        %v1291 = vunpack.c.l.b16 %v1260
        %v1292 = vunpack.c.h.b16 %v1260
        %v1293 = vunpack.c.l.b16 %v1261
        %v1294 = vunpack.c.h.b16 %v1261
        %v1295 = vunpack.c.l.b16 %v1262
        %v1296 = vunpack.c.h.b16 %v1262
        %v1297 = vpack.c.b16 %v1285, %v1281
        %v1298 = vpack.c.b16 %v1286, %v1282
        %v1299 = vpack.c.b16 %v1287, %v1283
        %v1300 = vpack.c.b16 %v1288, %v1284
        %v1301 = vpack.c.b16 %v1293, %v1289
        %v1302 = vpack.c.b16 %v1294, %v1290
        %v1303 = vpack.c.b16 %v1295, %v1291
        %v1304 = vpack.c.b16 %v1296, %v1292
        %1313 = vmatpush.bf16.msra.mxu0 0
        %1314 = vmatpush.bf16.msra.mxu0 0
        %1315 = vmatpush.bf16.msra.mxu0 0
        %1316 = vmatpush.bf16.msra.mxu0 0
        %1317 = vmatpush.bf16.msra.mxu0 0
        %1318 = vmatpush.bf16.msra.mxu0 0
        %1319 = vmatpush.bf16.msra.mxu0 %v1301
        %1320 = vmatpush.bf16.msra.mxu0 %v1297
        %1321 = vmatmul.bf16.gmra.mxu0 %v1121
        %v1322 = vpop.f32.mrf.mxu0
        %v1323 = vadd.f32 %v1265, %v1322
        %v1324 = vpop.f32.mrf.mxu0
        %v1325 = vadd.f32 %v1265, %v1324
        %1326 = vdwg.mxu0
        %1327 = vmatpush.bf16.msra.mxu0 0
        %1328 = vmatpush.bf16.msra.mxu0 0
        %1329 = vmatpush.bf16.msra.mxu0 0
        %1330 = vmatpush.bf16.msra.mxu0 0
        %1331 = vmatpush.bf16.msra.mxu0 0
        %1332 = vmatpush.bf16.msra.mxu0 0
        %1333 = vmatpush.bf16.msra.mxu0 %v1302
        %1334 = vmatpush.bf16.msra.mxu0 %v1298
        %1335 = vmatmul.bf16.gmra.mxu0 %v1121
        %v1336 = vpop.f32.mrf.mxu0
        %v1337 = vadd.f32 %v1266, %v1336
        %v1338 = vpop.f32.mrf.mxu0
        %v1339 = vadd.f32 %v1266, %v1338
        %1340 = vdwg.mxu0
        %1341 = vmatpush.bf16.msra.mxu0 0
        %1342 = vmatpush.bf16.msra.mxu0 0
        %1343 = vmatpush.bf16.msra.mxu0 0
        %1344 = vmatpush.bf16.msra.mxu0 0
        %1345 = vmatpush.bf16.msra.mxu0 0
        %1346 = vmatpush.bf16.msra.mxu0 0
        %1347 = vmatpush.bf16.msra.mxu0 %v1303
        %1348 = vmatpush.bf16.msra.mxu0 %v1299
        %1349 = vmatmul.bf16.gmra.mxu0 %v1121
        %v1350 = vpop.f32.mrf.mxu0
        %v1351 = vadd.f32 %v1267, %v1350
        %v1352 = vpop.f32.mrf.mxu0
        %v1353 = vadd.f32 %v1267, %v1352
        %1354 = vdwg.mxu0
        %1355 = vmatpush.bf16.msra.mxu0 0
        %1356 = vmatpush.bf16.msra.mxu0 0
        %1357 = vmatpush.bf16.msra.mxu0 0
        %1358 = vmatpush.bf16.msra.mxu0 0
        %1359 = vmatpush.bf16.msra.mxu0 0
        %1360 = vmatpush.bf16.msra.mxu0 0
        %1361 = vmatpush.bf16.msra.mxu0 %v1304
        %1362 = vmatpush.bf16.msra.mxu0 %v1300
        %1363 = vmatmul.bf16.gmra.mxu0 %v1121
        %v1364 = vpop.f32.mrf.mxu0
        %v1365 = vadd.f32 %v1268, %v1364
        %v1366 = vpop.f32.mrf.mxu0
        %v1367 = vadd.f32 %v1268, %v1366
        %1368 = vdwg.mxu0
        %v1369 = vmax.f32 %v1323, 0.0
        %v1370 = vmax.f32 %v1337, 0.0
        %v1371 = vmax.f32 %v1351, 0.0
        %v1372 = vmax.f32 %v1365, 0.0
        %v1373 = vmax.f32 %v1325, 0.0
        %v1374 = vmax.f32 %v1339, 0.0
        %v1375 = vmax.f32 %v1353, 0.0
        %v1376 = vmax.f32 %v1367, 0.0
        %v1377 = vpack.c.bf16 %v1373, %v1369
        %v1378 = vpack.c.bf16 %v1374, %v1370
        %v1379 = vpack.c.bf16 %v1375, %v1371
        %v1380 = vpack.c.bf16 %v1376, %v1372
        %v1381 = vld [vmem:[%s368 + $0x100] sm:$0xf]
        %v1382 = vld [vmem:[%s368 + $0x104] sm:$0xf]
        %v1383 = vld [vmem:[%s368 + $0x108] sm:$0xf]
        %v1384 = vld [vmem:[%s368 + $0x10c] sm:$0xf]
        %v1385 = vld [vmem:[%s368 + $0x110] sm:$0xf]
        %v1386 = vld [vmem:[%s368 + $0x114] sm:$0xf]
        %v1387 = vld [vmem:[%s368 + $0x118] sm:$0xf]
        %v1388 = vld [vmem:[%s368 + $0x11c] sm:$0xf]
        %v1389 = vld [vmem:[%s368 + $0x120] sm:$0xf]
        %v1390 = vld [vmem:[%s368 + $0x124] sm:$0xf]
        %v1391 = vld [vmem:[%s368 + $0x128] sm:$0xf]
        %v1392 = vld [vmem:[%s368 + $0x12c] sm:$0xf]
        %v1393 = vld [vmem:[%s368 + $0x130] sm:$0xf]
        %v1394 = vld [vmem:[%s368 + $0x134] sm:$0xf]
        %v1395 = vld [vmem:[%s368 + $0x138] sm:$0xf]
        %v1396 = vld [vmem:[%s368 + $0x13c] sm:$0xf]
        %v1397 = vld [vmem:[%s368 + $0x140] sm:$0xf]
        %v1398 = vld [vmem:[%s368 + $0x144] sm:$0xf]
        %v1399 = vld [vmem:[%s368 + $0x148] sm:$0xf]
        %v1400 = vld [vmem:[%s368 + $0x14c] sm:$0xf]
        %v1401 = vld [vmem:[%s368 + $0x150] sm:$0xf]
        %v1402 = vld [vmem:[%s368 + $0x154] sm:$0xf]
        %v1403 = vld [vmem:[%s368 + $0x158] sm:$0xf]
        %v1404 = vld [vmem:[%s368 + $0x15c] sm:$0xf]
        %v1405 = vld [vmem:[%s368 + $0x160] sm:$0xf]
        %v1406 = vld [vmem:[%s368 + $0x164] sm:$0xf]
        %v1407 = vld [vmem:[%s368 + $0x168] sm:$0xf]
        %v1408 = vld [vmem:[%s368 + $0x16c] sm:$0xf]
        %v1409 = vld [vmem:[%s368 + $0x170] sm:$0xf]
        %v1410 = vld [vmem:[%s368 + $0x174] sm:$0xf]
        %v1411 = vld [vmem:[%s368 + $0x178] sm:$0xf]
        %v1412 = vld [vmem:[%s368 + $0x17c] sm:$0xf]
        %v1413 = vld [vmem:[%s368 + $0x180] sm:$0xf]
        %v1414 = vld [vmem:[%s368 + $0x184] sm:$0xf]
        %v1415 = vld [vmem:[%s368 + $0x188] sm:$0xf]
        %v1416 = vld [vmem:[%s368 + $0x18c] sm:$0xf]
        %v1417 = vld [vmem:[%s368 + $0x190] sm:$0xf]
        %v1418 = vld [vmem:[%s368 + $0x194] sm:$0xf]
        %v1419 = vld [vmem:[%s368 + $0x198] sm:$0xf]
        %v1420 = vld [vmem:[%s368 + $0x19c] sm:$0xf]
        %v1421 = vld [vmem:[%s368 + $0x1a0] sm:$0xf]
        %v1422 = vld [vmem:[%s368 + $0x1a4] sm:$0xf]
        %v1423 = vld [vmem:[%s368 + $0x1a8] sm:$0xf]
        %v1424 = vld [vmem:[%s368 + $0x1ac] sm:$0xf]
        %v1425 = vld [vmem:[%s368 + $0x1b0] sm:$0xf]
        %v1426 = vld [vmem:[%s368 + $0x1b4] sm:$0xf]
        %v1427 = vld [vmem:[%s368 + $0x1b8] sm:$0xf]
        %v1428 = vld [vmem:[%s368 + $0x1bc] sm:$0xf]
        %v1429 = vld [vmem:[%s368 + $0x1c0] sm:$0xf]
        %v1430 = vld [vmem:[%s368 + $0x1c4] sm:$0xf]
        %v1431 = vld [vmem:[%s368 + $0x1c8] sm:$0xf]
        %v1432 = vld [vmem:[%s368 + $0x1cc] sm:$0xf]
        %v1433 = vld [vmem:[%s368 + $0x1d0] sm:$0xf]
        %v1434 = vld [vmem:[%s368 + $0x1d4] sm:$0xf]
        %v1435 = vld [vmem:[%s368 + $0x1d8] sm:$0xf]
        %v1436 = vld [vmem:[%s368 + $0x1dc] sm:$0xf]
        %v1437 = vld [vmem:[%s368 + $0x1e0] sm:$0xf]
        %v1438 = vld [vmem:[%s368 + $0x1e4] sm:$0xf]
        %v1439 = vld [vmem:[%s368 + $0x1e8] sm:$0xf]
        %v1440 = vld [vmem:[%s368 + $0x1ec] sm:$0xf]
        %v1441 = vld [vmem:[%s368 + $0x1f0] sm:$0xf]
        %v1442 = vld [vmem:[%s368 + $0x1f4] sm:$0xf]
        %v1443 = vld [vmem:[%s368 + $0x1f8] sm:$0xf]
        %v1444 = vld [vmem:[%s368 + $0x1fc] sm:$0xf]
        %v1509 = vunpack.c.l.b16 %v1381
        %v1510 = vunpack.c.l.b16 %v1382
        %v1511 = vunpack.c.l.b16 %v1383
        %v1512 = vunpack.c.l.b16 %v1384
        %v1513 = vunpack.c.l.b16 %v1385
        %v1514 = vunpack.c.l.b16 %v1386
        %v1515 = vunpack.c.l.b16 %v1387
        %v1516 = vunpack.c.l.b16 %v1388
        %v1517 = vunpack.c.l.b16 %v1389
        %v1518 = vunpack.c.l.b16 %v1390
        %v1519 = vunpack.c.l.b16 %v1391
        %v1520 = vunpack.c.l.b16 %v1392
        %v1521 = vunpack.c.l.b16 %v1393
        %v1522 = vunpack.c.l.b16 %v1394
        %v1523 = vunpack.c.l.b16 %v1395
        %v1524 = vunpack.c.l.b16 %v1396
        %v1525 = vunpack.c.l.b16 %v1397
        %v1526 = vunpack.c.l.b16 %v1398
        %v1527 = vunpack.c.l.b16 %v1399
        %v1528 = vunpack.c.l.b16 %v1400
        %v1529 = vunpack.c.l.b16 %v1401
        %v1530 = vunpack.c.l.b16 %v1402
        %v1531 = vunpack.c.l.b16 %v1403
        %v1532 = vunpack.c.l.b16 %v1404
        %v1533 = vunpack.c.l.b16 %v1405
        %v1534 = vunpack.c.l.b16 %v1406
        %v1535 = vunpack.c.l.b16 %v1407
        %v1536 = vunpack.c.l.b16 %v1408
        %v1537 = vunpack.c.l.b16 %v1409
        %v1538 = vunpack.c.l.b16 %v1410
        %v1539 = vunpack.c.l.b16 %v1411
        %v1540 = vunpack.c.l.b16 %v1412
        %v1541 = vunpack.c.l.b16 %v1413
        %v1542 = vunpack.c.l.b16 %v1414
        %v1543 = vunpack.c.l.b16 %v1415
        %v1544 = vunpack.c.l.b16 %v1416
        %v1545 = vunpack.c.l.b16 %v1417
        %v1546 = vunpack.c.l.b16 %v1418
        %v1547 = vunpack.c.l.b16 %v1419
        %v1548 = vunpack.c.l.b16 %v1420
        %v1549 = vunpack.c.l.b16 %v1421
        %v1550 = vunpack.c.l.b16 %v1422
        %v1551 = vunpack.c.l.b16 %v1423
        %v1552 = vunpack.c.l.b16 %v1424
        %v1553 = vunpack.c.l.b16 %v1425
        %v1554 = vunpack.c.l.b16 %v1426
        %v1555 = vunpack.c.l.b16 %v1427
        %v1556 = vunpack.c.l.b16 %v1428
        %v1557 = vunpack.c.l.b16 %v1429
        %v1558 = vunpack.c.l.b16 %v1430
        %v1559 = vunpack.c.l.b16 %v1431
        %v1560 = vunpack.c.l.b16 %v1432
        %v1561 = vunpack.c.l.b16 %v1433
        %v1562 = vunpack.c.l.b16 %v1434
        %v1563 = vunpack.c.l.b16 %v1435
        %v1564 = vunpack.c.l.b16 %v1436
        %v1565 = vunpack.c.l.b16 %v1437
        %v1566 = vunpack.c.l.b16 %v1438
        %v1567 = vunpack.c.l.b16 %v1439
        %v1568 = vunpack.c.l.b16 %v1440
        %v1569 = vunpack.c.l.b16 %v1441
        %v1570 = vunpack.c.l.b16 %v1442
        %v1571 = vunpack.c.l.b16 %v1443
        %v1572 = vunpack.c.l.b16 %v1444
        %v1573 = vpack.c.b16 %v1510, %v1509
        %v1574 = vpack.c.b16 %v1512, %v1511
        %v1575 = vpack.c.b16 %v1514, %v1513
        %v1576 = vpack.c.b16 %v1516, %v1515
        %v1577 = vpack.c.b16 %v1518, %v1517
        %v1578 = vpack.c.b16 %v1520, %v1519
        %v1579 = vpack.c.b16 %v1522, %v1521
        %v1580 = vpack.c.b16 %v1524, %v1523
        %v1581 = vpack.c.b16 %v1526, %v1525
        %v1582 = vpack.c.b16 %v1528, %v1527
        %v1583 = vpack.c.b16 %v1530, %v1529
        %v1584 = vpack.c.b16 %v1532, %v1531
        %v1585 = vpack.c.b16 %v1534, %v1533
        %v1586 = vpack.c.b16 %v1536, %v1535
        %v1587 = vpack.c.b16 %v1538, %v1537
        %v1588 = vpack.c.b16 %v1540, %v1539
        %v1589 = vpack.c.b16 %v1542, %v1541
        %v1590 = vpack.c.b16 %v1544, %v1543
        %v1591 = vpack.c.b16 %v1546, %v1545
        %v1592 = vpack.c.b16 %v1548, %v1547
        %v1593 = vpack.c.b16 %v1550, %v1549
        %v1594 = vpack.c.b16 %v1552, %v1551
        %v1595 = vpack.c.b16 %v1554, %v1553
        %v1596 = vpack.c.b16 %v1556, %v1555
        %v1597 = vpack.c.b16 %v1558, %v1557
        %v1598 = vpack.c.b16 %v1560, %v1559
        %v1599 = vpack.c.b16 %v1562, %v1561
        %v1600 = vpack.c.b16 %v1564, %v1563
        %v1601 = vpack.c.b16 %v1566, %v1565
        %v1602 = vpack.c.b16 %v1568, %v1567
        %v1603 = vpack.c.b16 %v1570, %v1569
        %v1604 = vpack.c.b16 %v1572, %v1571
        %1637 = vmatpush.bf16.msra.mxu0 %v1580
        %1638 = vmatpush.bf16.msra.mxu0 %v1579
        %1639 = vmatpush.bf16.msra.mxu0 %v1578
        %1640 = vmatpush.bf16.msra.mxu0 %v1577
        %1641 = vmatpush.bf16.msra.mxu0 %v1576
        %1642 = vmatpush.bf16.msra.mxu0 %v1575
        %1643 = vmatpush.bf16.msra.mxu0 %v1574
        %1644 = vmatpush.bf16.msra.mxu0 %v1573
        %1645 = vmatmul.bf16.gmra.mxu0 %v1377
        %v1646 = vpop.f32.mrf.mxu0
        %v1647 = vadd.f32 0.0, %v1646
        %v1648 = vpop.f32.mrf.mxu0
        %v1649 = vadd.f32 0.0, %v1648
        %1650 = vdwg.mxu0
        %1651 = vmatpush.bf16.msra.mxu0 %v1588
        %1652 = vmatpush.bf16.msra.mxu0 %v1587
        %1653 = vmatpush.bf16.msra.mxu0 %v1586
        %1654 = vmatpush.bf16.msra.mxu0 %v1585
        %1655 = vmatpush.bf16.msra.mxu0 %v1584
        %1656 = vmatpush.bf16.msra.mxu0 %v1583
        %1657 = vmatpush.bf16.msra.mxu0 %v1582
        %1658 = vmatpush.bf16.msra.mxu0 %v1581
        %1659 = vmatmul.bf16.gmra.mxu0 %v1378
        %v1660 = vpop.f32.mrf.mxu0
        %v1661 = vadd.f32 %v1647, %v1660
        %v1662 = vpop.f32.mrf.mxu0
        %v1663 = vadd.f32 %v1649, %v1662
        %1664 = vdwg.mxu0
        %1665 = vmatpush.bf16.msra.mxu0 %v1596
        %1666 = vmatpush.bf16.msra.mxu0 %v1595
        %1667 = vmatpush.bf16.msra.mxu0 %v1594
        %1668 = vmatpush.bf16.msra.mxu0 %v1593
        %1669 = vmatpush.bf16.msra.mxu0 %v1592
        %1670 = vmatpush.bf16.msra.mxu0 %v1591
        %1671 = vmatpush.bf16.msra.mxu0 %v1590
        %1672 = vmatpush.bf16.msra.mxu0 %v1589
        %1673 = vmatmul.bf16.gmra.mxu0 %v1379
        %v1674 = vpop.f32.mrf.mxu0
        %v1675 = vadd.f32 %v1661, %v1674
        %v1676 = vpop.f32.mrf.mxu0
        %v1677 = vadd.f32 %v1663, %v1676
        %1678 = vdwg.mxu0
        %1679 = vmatpush.bf16.msra.mxu0 %v1604
        %1680 = vmatpush.bf16.msra.mxu0 %v1603
        %1681 = vmatpush.bf16.msra.mxu0 %v1602
        %1682 = vmatpush.bf16.msra.mxu0 %v1601
        %1683 = vmatpush.bf16.msra.mxu0 %v1600
        %1684 = vmatpush.bf16.msra.mxu0 %v1599
        %1685 = vmatpush.bf16.msra.mxu0 %v1598
        %1686 = vmatpush.bf16.msra.mxu0 %v1597
        %1687 = vmatmul.bf16.gmra.mxu0 %v1380
        %v1688 = vpop.f32.mrf.mxu0
        %v1689 = vadd.f32 %v1675, %v1688
        %v1690 = vpop.f32.mrf.mxu0
        %v1691 = vadd.f32 %v1677, %v1690
        %1692 = vdwg.mxu0
        %v1757 = vunpack.c.l.b16 %v1191
        %v1758 = vunpack.c.l.b16 %v1192
        %v1759 = vunpack.c.l.b16 %v1193
        %v1760 = vunpack.c.l.b16 %v1194
        %v1761 = vunpack.c.l.b16 %v1195
        %v1762 = vunpack.c.l.b16 %v1196
        %v1763 = vunpack.c.l.b16 %v1197
        %v1764 = vunpack.c.l.b16 %v1198
        %v1765 = vunpack.c.l.b16 %v1199
        %v1766 = vunpack.c.l.b16 %v1200
        %v1767 = vunpack.c.l.b16 %v1201
        %v1768 = vunpack.c.l.b16 %v1202
        %v1769 = vunpack.c.l.b16 %v1203
        %v1770 = vunpack.c.l.b16 %v1204
        %v1771 = vunpack.c.l.b16 %v1205
        %v1772 = vunpack.c.l.b16 %v1206
        %v1773 = vunpack.c.l.b16 %v1207
        %v1774 = vunpack.c.l.b16 %v1208
        %v1775 = vunpack.c.l.b16 %v1209
        %v1776 = vunpack.c.l.b16 %v1210
        %v1777 = vunpack.c.l.b16 %v1211
        %v1778 = vunpack.c.l.b16 %v1212
        %v1779 = vunpack.c.l.b16 %v1213
        %v1780 = vunpack.c.l.b16 %v1214
        %v1781 = vunpack.c.l.b16 %v1215
        %v1782 = vunpack.c.l.b16 %v1216
        %v1783 = vunpack.c.l.b16 %v1217
        %v1784 = vunpack.c.l.b16 %v1218
        %v1785 = vunpack.c.l.b16 %v1219
        %v1786 = vunpack.c.l.b16 %v1220
        %v1787 = vunpack.c.l.b16 %v1221
        %v1788 = vunpack.c.l.b16 %v1222
        %v1789 = vunpack.c.l.b16 %v1223
        %v1790 = vunpack.c.l.b16 %v1224
        %v1791 = vunpack.c.l.b16 %v1225
        %v1792 = vunpack.c.l.b16 %v1226
        %v1793 = vunpack.c.l.b16 %v1227
        %v1794 = vunpack.c.l.b16 %v1228
        %v1795 = vunpack.c.l.b16 %v1229
        %v1796 = vunpack.c.l.b16 %v1230
        %v1797 = vunpack.c.l.b16 %v1231
        %v1798 = vunpack.c.l.b16 %v1232
        %v1799 = vunpack.c.l.b16 %v1233
        %v1800 = vunpack.c.l.b16 %v1234
        %v1801 = vunpack.c.l.b16 %v1235
        %v1802 = vunpack.c.l.b16 %v1236
        %v1803 = vunpack.c.l.b16 %v1237
        %v1804 = vunpack.c.l.b16 %v1238
        %v1805 = vunpack.c.l.b16 %v1239
        %v1806 = vunpack.c.l.b16 %v1240
        %v1807 = vunpack.c.l.b16 %v1241
        %v1808 = vunpack.c.l.b16 %v1242
        %v1809 = vunpack.c.l.b16 %v1243
        %v1810 = vunpack.c.l.b16 %v1244
        %v1811 = vunpack.c.l.b16 %v1245
        %v1812 = vunpack.c.l.b16 %v1246
        %v1813 = vunpack.c.l.b16 %v1247
        %v1814 = vunpack.c.l.b16 %v1248
        %v1815 = vunpack.c.l.b16 %v1249
        %v1816 = vunpack.c.l.b16 %v1250
        %v1817 = vunpack.c.l.b16 %v1251
        %v1818 = vunpack.c.l.b16 %v1252
        %v1819 = vunpack.c.l.b16 %v1253
        %v1820 = vunpack.c.l.b16 %v1254
        %v1821 = vpack.c.b16 %v1758, %v1757
        %v1822 = vpack.c.b16 %v1760, %v1759
        %v1823 = vpack.c.b16 %v1762, %v1761
        %v1824 = vpack.c.b16 %v1764, %v1763
        %v1825 = vpack.c.b16 %v1766, %v1765
        %v1826 = vpack.c.b16 %v1768, %v1767
        %v1827 = vpack.c.b16 %v1770, %v1769
        %v1828 = vpack.c.b16 %v1772, %v1771
        %v1829 = vpack.c.b16 %v1774, %v1773
        %v1830 = vpack.c.b16 %v1776, %v1775
        %v1831 = vpack.c.b16 %v1778, %v1777
        %v1832 = vpack.c.b16 %v1780, %v1779
        %v1833 = vpack.c.b16 %v1782, %v1781
        %v1834 = vpack.c.b16 %v1784, %v1783
        %v1835 = vpack.c.b16 %v1786, %v1785
        %v1836 = vpack.c.b16 %v1788, %v1787
        %v1837 = vpack.c.b16 %v1790, %v1789
        %v1838 = vpack.c.b16 %v1792, %v1791
        %v1839 = vpack.c.b16 %v1794, %v1793
        %v1840 = vpack.c.b16 %v1796, %v1795
        %v1841 = vpack.c.b16 %v1798, %v1797
        %v1842 = vpack.c.b16 %v1800, %v1799
        %v1843 = vpack.c.b16 %v1802, %v1801
        %v1844 = vpack.c.b16 %v1804, %v1803
        %v1845 = vpack.c.b16 %v1806, %v1805
        %v1846 = vpack.c.b16 %v1808, %v1807
        %v1847 = vpack.c.b16 %v1810, %v1809
        %v1848 = vpack.c.b16 %v1812, %v1811
        %v1849 = vpack.c.b16 %v1814, %v1813
        %v1850 = vpack.c.b16 %v1816, %v1815
        %v1851 = vpack.c.b16 %v1818, %v1817
        %v1852 = vpack.c.b16 %v1820, %v1819
        %1885 = vmatpush.bf16.msra.mxu0 %v1828
        %1886 = vmatpush.bf16.msra.mxu0 %v1827
        %1887 = vmatpush.bf16.msra.mxu0 %v1826
        %1888 = vmatpush.bf16.msra.mxu0 %v1825
        %1889 = vmatpush.bf16.msra.mxu0 %v1824
        %1890 = vmatpush.bf16.msra.mxu0 %v1823
        %1891 = vmatpush.bf16.msra.mxu0 %v1822
        %1892 = vmatpush.bf16.msra.mxu0 %v1821
        %1893 = vmatmul.bf16.gmra.mxu0 %v1187
        %v1894 = vpop.f32.mrf.mxu0
        %v1895 = vadd.f32 %v1689, %v1894
        %v1896 = vpop.f32.mrf.mxu0
        %v1897 = vadd.f32 %v1691, %v1896
        %1898 = vdwg.mxu0
        %1899 = vmatpush.bf16.msra.mxu0 %v1836
        %1900 = vmatpush.bf16.msra.mxu0 %v1835
        %1901 = vmatpush.bf16.msra.mxu0 %v1834
        %1902 = vmatpush.bf16.msra.mxu0 %v1833
        %1903 = vmatpush.bf16.msra.mxu0 %v1832
        %1904 = vmatpush.bf16.msra.mxu0 %v1831
        %1905 = vmatpush.bf16.msra.mxu0 %v1830
        %1906 = vmatpush.bf16.msra.mxu0 %v1829
        %1907 = vmatmul.bf16.gmra.mxu0 %v1188
        %v1908 = vpop.f32.mrf.mxu0
        %v1909 = vadd.f32 %v1895, %v1908
        %v1910 = vpop.f32.mrf.mxu0
        %v1911 = vadd.f32 %v1897, %v1910
        %1912 = vdwg.mxu0
        %1913 = vmatpush.bf16.msra.mxu0 %v1844
        %1914 = vmatpush.bf16.msra.mxu0 %v1843
        %1915 = vmatpush.bf16.msra.mxu0 %v1842
        %1916 = vmatpush.bf16.msra.mxu0 %v1841
        %1917 = vmatpush.bf16.msra.mxu0 %v1840
        %1918 = vmatpush.bf16.msra.mxu0 %v1839
        %1919 = vmatpush.bf16.msra.mxu0 %v1838
        %1920 = vmatpush.bf16.msra.mxu0 %v1837
        %1921 = vmatmul.bf16.gmra.mxu0 %v1189
        %v1922 = vpop.f32.mrf.mxu0
        %v1923 = vadd.f32 %v1909, %v1922
        %v1924 = vpop.f32.mrf.mxu0
        %v1925 = vadd.f32 %v1911, %v1924
        %1926 = vdwg.mxu0
        %1927 = vmatpush.bf16.msra.mxu0 %v1852
        %1928 = vmatpush.bf16.msra.mxu0 %v1851
        %1929 = vmatpush.bf16.msra.mxu0 %v1850
        %1930 = vmatpush.bf16.msra.mxu0 %v1849
        %1931 = vmatpush.bf16.msra.mxu0 %v1848
        %1932 = vmatpush.bf16.msra.mxu0 %v1847
        %1933 = vmatpush.bf16.msra.mxu0 %v1846
        %1934 = vmatpush.bf16.msra.mxu0 %v1845
        %1935 = vmatmul.bf16.gmra.mxu0 %v1190
        %v1936 = vpop.f32.mrf.mxu0
        %v1937 = vadd.f32 %v1923, %v1936
        %v1938 = vpop.f32.mrf.mxu0
        %v1939 = vadd.f32 %v1925, %v1938
        %1940 = vdwg.mxu0
        %v1941 = vld [vmem:[%s363 + $0x20] sm:$0xff]
        %v1942 = vld [vmem:[%s363 + $0x28] sm:$0xff]
        %v1943 = vld [vmem:[%s363 + $0x60] sm:$0xff]
        %v1944 = vld [vmem:[%s363 + $0x68] sm:$0xff]
        %v1945 = vld [vmem:[%s363 + $0xa0] sm:$0xff]
        %v1946 = vld [vmem:[%s363 + $0xa8] sm:$0xff]
        %v1947 = vld [vmem:[%s363 + $0xe0] sm:$0xff]
        %v1948 = vld [vmem:[%s363 + $0xe8] sm:$0xff]
        %v1949 = vld [vmem:[%s358 + $0x8] sm:$0xf]
        %v1951 = vperm.slane %v1949, 0
        %v1952 = vperm.slane %v1949, 1
        %v1953 = vperm.slane %v1949, 2
        %v1954 = vperm.slane %v1949, 3
        %v1967 = vunpack.c.l.b16 %v1941
        %v1968 = vunpack.c.h.b16 %v1941
        %v1969 = vunpack.c.l.b16 %v1942
        %v1970 = vunpack.c.h.b16 %v1942
        %v1971 = vunpack.c.l.b16 %v1943
        %v1972 = vunpack.c.h.b16 %v1943
        %v1973 = vunpack.c.l.b16 %v1944
        %v1974 = vunpack.c.h.b16 %v1944
        %v1975 = vunpack.c.l.b16 %v1945
        %v1976 = vunpack.c.h.b16 %v1945
        %v1977 = vunpack.c.l.b16 %v1946
        %v1978 = vunpack.c.h.b16 %v1946
        %v1979 = vunpack.c.l.b16 %v1947
        %v1980 = vunpack.c.h.b16 %v1947
        %v1981 = vunpack.c.l.b16 %v1948
        %v1982 = vunpack.c.h.b16 %v1948
        %v1983 = vpack.c.b16 %v1971, %v1967
        %v1984 = vpack.c.b16 %v1972, %v1968
        %v1985 = vpack.c.b16 %v1973, %v1969
        %v1986 = vpack.c.b16 %v1974, %v1970
        %v1987 = vpack.c.b16 %v1979, %v1975
        %v1988 = vpack.c.b16 %v1980, %v1976
        %v1989 = vpack.c.b16 %v1981, %v1977
        %v1990 = vpack.c.b16 %v1982, %v1978
        %1999 = vmatpush.bf16.msra.mxu0 0
        %2000 = vmatpush.bf16.msra.mxu0 0
        %2001 = vmatpush.bf16.msra.mxu0 0
        %2002 = vmatpush.bf16.msra.mxu0 0
        %2003 = vmatpush.bf16.msra.mxu0 0
        %2004 = vmatpush.bf16.msra.mxu0 0
        %2005 = vmatpush.bf16.msra.mxu0 %v1987
        %2006 = vmatpush.bf16.msra.mxu0 %v1983
        %2007 = vmatmul.bf16.gmra.mxu0 %v1121
        %v2008 = vpop.f32.mrf.mxu0
        %v2009 = vadd.f32 %v1951, %v2008
        %v2010 = vpop.f32.mrf.mxu0
        %v2011 = vadd.f32 %v1951, %v2010
        %2012 = vdwg.mxu0
        %2013 = vmatpush.bf16.msra.mxu0 0
        %2014 = vmatpush.bf16.msra.mxu0 0
        %2015 = vmatpush.bf16.msra.mxu0 0
        %2016 = vmatpush.bf16.msra.mxu0 0
        %2017 = vmatpush.bf16.msra.mxu0 0
        %2018 = vmatpush.bf16.msra.mxu0 0
        %2019 = vmatpush.bf16.msra.mxu0 %v1988
        %2020 = vmatpush.bf16.msra.mxu0 %v1984
        %2021 = vmatmul.bf16.gmra.mxu0 %v1121
        %v2022 = vpop.f32.mrf.mxu0
        %v2023 = vadd.f32 %v1952, %v2022
        %v2024 = vpop.f32.mrf.mxu0
        %v2025 = vadd.f32 %v1952, %v2024
        %2026 = vdwg.mxu0
        %2027 = vmatpush.bf16.msra.mxu0 0
        %2028 = vmatpush.bf16.msra.mxu0 0
        %2029 = vmatpush.bf16.msra.mxu0 0
        %2030 = vmatpush.bf16.msra.mxu0 0
        %2031 = vmatpush.bf16.msra.mxu0 0
        %2032 = vmatpush.bf16.msra.mxu0 0
        %2033 = vmatpush.bf16.msra.mxu0 %v1989
        %2034 = vmatpush.bf16.msra.mxu0 %v1985
        %2035 = vmatmul.bf16.gmra.mxu0 %v1121
        %v2036 = vpop.f32.mrf.mxu0
        %v2037 = vadd.f32 %v1953, %v2036
        %v2038 = vpop.f32.mrf.mxu0
        %v2039 = vadd.f32 %v1953, %v2038
        %2040 = vdwg.mxu0
        %2041 = vmatpush.bf16.msra.mxu0 0
        %2042 = vmatpush.bf16.msra.mxu0 0
        %2043 = vmatpush.bf16.msra.mxu0 0
        %2044 = vmatpush.bf16.msra.mxu0 0
        %2045 = vmatpush.bf16.msra.mxu0 0
        %2046 = vmatpush.bf16.msra.mxu0 0
        %2047 = vmatpush.bf16.msra.mxu0 %v1990
        %2048 = vmatpush.bf16.msra.mxu0 %v1986
        %2049 = vmatmul.bf16.gmra.mxu0 %v1121
        %v2050 = vpop.f32.mrf.mxu0
        %v2051 = vadd.f32 %v1954, %v2050
        %v2052 = vpop.f32.mrf.mxu0
        %v2053 = vadd.f32 %v1954, %v2052
        %2054 = vdwg.mxu0
        %v2055 = vmax.f32 %v2009, 0.0
        %v2056 = vmax.f32 %v2023, 0.0
        %v2057 = vmax.f32 %v2037, 0.0
        %v2058 = vmax.f32 %v2051, 0.0
        %v2059 = vmax.f32 %v2011, 0.0
        %v2060 = vmax.f32 %v2025, 0.0
        %v2061 = vmax.f32 %v2039, 0.0
        %v2062 = vmax.f32 %v2053, 0.0
        %v2063 = vpack.c.bf16 %v2059, %v2055
        %v2064 = vpack.c.bf16 %v2060, %v2056
        %v2065 = vpack.c.bf16 %v2061, %v2057
        %v2066 = vpack.c.bf16 %v2062, %v2058
        %v2067 = vld [vmem:[%s368 + $0x200] sm:$0xf]
        %v2068 = vld [vmem:[%s368 + $0x204] sm:$0xf]
        %v2069 = vld [vmem:[%s368 + $0x208] sm:$0xf]
        %v2070 = vld [vmem:[%s368 + $0x20c] sm:$0xf]
        %v2071 = vld [vmem:[%s368 + $0x210] sm:$0xf]
        %v2072 = vld [vmem:[%s368 + $0x214] sm:$0xf]
        %v2073 = vld [vmem:[%s368 + $0x218] sm:$0xf]
        %v2074 = vld [vmem:[%s368 + $0x21c] sm:$0xf]
        %v2075 = vld [vmem:[%s368 + $0x220] sm:$0xf]
        %v2076 = vld [vmem:[%s368 + $0x224] sm:$0xf]
        %v2077 = vld [vmem:[%s368 + $0x228] sm:$0xf]
        %v2078 = vld [vmem:[%s368 + $0x22c] sm:$0xf]
        %v2079 = vld [vmem:[%s368 + $0x230] sm:$0xf]
        %v2080 = vld [vmem:[%s368 + $0x234] sm:$0xf]
        %v2081 = vld [vmem:[%s368 + $0x238] sm:$0xf]
        %v2082 = vld [vmem:[%s368 + $0x23c] sm:$0xf]
        %v2083 = vld [vmem:[%s368 + $0x240] sm:$0xf]
        %v2084 = vld [vmem:[%s368 + $0x244] sm:$0xf]
        %v2085 = vld [vmem:[%s368 + $0x248] sm:$0xf]
        %v2086 = vld [vmem:[%s368 + $0x24c] sm:$0xf]
        %v2087 = vld [vmem:[%s368 + $0x250] sm:$0xf]
        %v2088 = vld [vmem:[%s368 + $0x254] sm:$0xf]
        %v2089 = vld [vmem:[%s368 + $0x258] sm:$0xf]
        %v2090 = vld [vmem:[%s368 + $0x25c] sm:$0xf]
        %v2091 = vld [vmem:[%s368 + $0x260] sm:$0xf]
        %v2092 = vld [vmem:[%s368 + $0x264] sm:$0xf]
        %v2093 = vld [vmem:[%s368 + $0x268] sm:$0xf]
        %v2094 = vld [vmem:[%s368 + $0x26c] sm:$0xf]
        %v2095 = vld [vmem:[%s368 + $0x270] sm:$0xf]
        %v2096 = vld [vmem:[%s368 + $0x274] sm:$0xf]
        %v2097 = vld [vmem:[%s368 + $0x278] sm:$0xf]
        %v2098 = vld [vmem:[%s368 + $0x27c] sm:$0xf]
        %v2099 = vld [vmem:[%s368 + $0x280] sm:$0xf]
        %v2100 = vld [vmem:[%s368 + $0x284] sm:$0xf]
        %v2101 = vld [vmem:[%s368 + $0x288] sm:$0xf]
        %v2102 = vld [vmem:[%s368 + $0x28c] sm:$0xf]
        %v2103 = vld [vmem:[%s368 + $0x290] sm:$0xf]
        %v2104 = vld [vmem:[%s368 + $0x294] sm:$0xf]
        %v2105 = vld [vmem:[%s368 + $0x298] sm:$0xf]
        %v2106 = vld [vmem:[%s368 + $0x29c] sm:$0xf]
        %v2107 = vld [vmem:[%s368 + $0x2a0] sm:$0xf]
        %v2108 = vld [vmem:[%s368 + $0x2a4] sm:$0xf]
        %v2109 = vld [vmem:[%s368 + $0x2a8] sm:$0xf]
        %v2110 = vld [vmem:[%s368 + $0x2ac] sm:$0xf]
        %v2111 = vld [vmem:[%s368 + $0x2b0] sm:$0xf]
        %v2112 = vld [vmem:[%s368 + $0x2b4] sm:$0xf]
        %v2113 = vld [vmem:[%s368 + $0x2b8] sm:$0xf]
        %v2114 = vld [vmem:[%s368 + $0x2bc] sm:$0xf]
        %v2115 = vld [vmem:[%s368 + $0x2c0] sm:$0xf]
        %v2116 = vld [vmem:[%s368 + $0x2c4] sm:$0xf]
        %v2117 = vld [vmem:[%s368 + $0x2c8] sm:$0xf]
        %v2118 = vld [vmem:[%s368 + $0x2cc] sm:$0xf]
        %v2119 = vld [vmem:[%s368 + $0x2d0] sm:$0xf]
        %v2120 = vld [vmem:[%s368 + $0x2d4] sm:$0xf]
        %v2121 = vld [vmem:[%s368 + $0x2d8] sm:$0xf]
        %v2122 = vld [vmem:[%s368 + $0x2dc] sm:$0xf]
        %v2123 = vld [vmem:[%s368 + $0x2e0] sm:$0xf]
        %v2124 = vld [vmem:[%s368 + $0x2e4] sm:$0xf]
        %v2125 = vld [vmem:[%s368 + $0x2e8] sm:$0xf]
        %v2126 = vld [vmem:[%s368 + $0x2ec] sm:$0xf]
        %v2127 = vld [vmem:[%s368 + $0x2f0] sm:$0xf]
        %v2128 = vld [vmem:[%s368 + $0x2f4] sm:$0xf]
        %v2129 = vld [vmem:[%s368 + $0x2f8] sm:$0xf]
        %v2130 = vld [vmem:[%s368 + $0x2fc] sm:$0xf]
        %v2195 = vunpack.c.l.b16 %v2067
        %v2196 = vunpack.c.l.b16 %v2068
        %v2197 = vunpack.c.l.b16 %v2069
        %v2198 = vunpack.c.l.b16 %v2070
        %v2199 = vunpack.c.l.b16 %v2071
        %v2200 = vunpack.c.l.b16 %v2072
        %v2201 = vunpack.c.l.b16 %v2073
        %v2202 = vunpack.c.l.b16 %v2074
        %v2203 = vunpack.c.l.b16 %v2075
        %v2204 = vunpack.c.l.b16 %v2076
        %v2205 = vunpack.c.l.b16 %v2077
        %v2206 = vunpack.c.l.b16 %v2078
        %v2207 = vunpack.c.l.b16 %v2079
        %v2208 = vunpack.c.l.b16 %v2080
        %v2209 = vunpack.c.l.b16 %v2081
        %v2210 = vunpack.c.l.b16 %v2082
        %v2211 = vunpack.c.l.b16 %v2083
        %v2212 = vunpack.c.l.b16 %v2084
        %v2213 = vunpack.c.l.b16 %v2085
        %v2214 = vunpack.c.l.b16 %v2086
        %v2215 = vunpack.c.l.b16 %v2087
        %v2216 = vunpack.c.l.b16 %v2088
        %v2217 = vunpack.c.l.b16 %v2089
        %v2218 = vunpack.c.l.b16 %v2090
        %v2219 = vunpack.c.l.b16 %v2091
        %v2220 = vunpack.c.l.b16 %v2092
        %v2221 = vunpack.c.l.b16 %v2093
        %v2222 = vunpack.c.l.b16 %v2094
        %v2223 = vunpack.c.l.b16 %v2095
        %v2224 = vunpack.c.l.b16 %v2096
        %v2225 = vunpack.c.l.b16 %v2097
        %v2226 = vunpack.c.l.b16 %v2098
        %v2227 = vunpack.c.l.b16 %v2099
        %v2228 = vunpack.c.l.b16 %v2100
        %v2229 = vunpack.c.l.b16 %v2101
        %v2230 = vunpack.c.l.b16 %v2102
        %v2231 = vunpack.c.l.b16 %v2103
        %v2232 = vunpack.c.l.b16 %v2104
        %v2233 = vunpack.c.l.b16 %v2105
        %v2234 = vunpack.c.l.b16 %v2106
        %v2235 = vunpack.c.l.b16 %v2107
        %v2236 = vunpack.c.l.b16 %v2108
        %v2237 = vunpack.c.l.b16 %v2109
        %v2238 = vunpack.c.l.b16 %v2110
        %v2239 = vunpack.c.l.b16 %v2111
        %v2240 = vunpack.c.l.b16 %v2112
        %v2241 = vunpack.c.l.b16 %v2113
        %v2242 = vunpack.c.l.b16 %v2114
        %v2243 = vunpack.c.l.b16 %v2115
        %v2244 = vunpack.c.l.b16 %v2116
        %v2245 = vunpack.c.l.b16 %v2117
        %v2246 = vunpack.c.l.b16 %v2118
        %v2247 = vunpack.c.l.b16 %v2119
        %v2248 = vunpack.c.l.b16 %v2120
        %v2249 = vunpack.c.l.b16 %v2121
        %v2250 = vunpack.c.l.b16 %v2122
        %v2251 = vunpack.c.l.b16 %v2123
        %v2252 = vunpack.c.l.b16 %v2124
        %v2253 = vunpack.c.l.b16 %v2125
        %v2254 = vunpack.c.l.b16 %v2126
        %v2255 = vunpack.c.l.b16 %v2127
        %v2256 = vunpack.c.l.b16 %v2128
        %v2257 = vunpack.c.l.b16 %v2129
        %v2258 = vunpack.c.l.b16 %v2130
        %v2259 = vpack.c.b16 %v2196, %v2195
        %v2260 = vpack.c.b16 %v2198, %v2197
        %v2261 = vpack.c.b16 %v2200, %v2199
        %v2262 = vpack.c.b16 %v2202, %v2201
        %v2263 = vpack.c.b16 %v2204, %v2203
        %v2264 = vpack.c.b16 %v2206, %v2205
        %v2265 = vpack.c.b16 %v2208, %v2207
        %v2266 = vpack.c.b16 %v2210, %v2209
        %v2267 = vpack.c.b16 %v2212, %v2211
        %v2268 = vpack.c.b16 %v2214, %v2213
        %v2269 = vpack.c.b16 %v2216, %v2215
        %v2270 = vpack.c.b16 %v2218, %v2217
        %v2271 = vpack.c.b16 %v2220, %v2219
        %v2272 = vpack.c.b16 %v2222, %v2221
        %v2273 = vpack.c.b16 %v2224, %v2223
        %v2274 = vpack.c.b16 %v2226, %v2225
        %v2275 = vpack.c.b16 %v2228, %v2227
        %v2276 = vpack.c.b16 %v2230, %v2229
        %v2277 = vpack.c.b16 %v2232, %v2231
        %v2278 = vpack.c.b16 %v2234, %v2233
        %v2279 = vpack.c.b16 %v2236, %v2235
        %v2280 = vpack.c.b16 %v2238, %v2237
        %v2281 = vpack.c.b16 %v2240, %v2239
        %v2282 = vpack.c.b16 %v2242, %v2241
        %v2283 = vpack.c.b16 %v2244, %v2243
        %v2284 = vpack.c.b16 %v2246, %v2245
        %v2285 = vpack.c.b16 %v2248, %v2247
        %v2286 = vpack.c.b16 %v2250, %v2249
        %v2287 = vpack.c.b16 %v2252, %v2251
        %v2288 = vpack.c.b16 %v2254, %v2253
        %v2289 = vpack.c.b16 %v2256, %v2255
        %v2290 = vpack.c.b16 %v2258, %v2257
        %2323 = vmatpush.bf16.msra.mxu0 %v2266
        %2324 = vmatpush.bf16.msra.mxu0 %v2265
        %2325 = vmatpush.bf16.msra.mxu0 %v2264
        %2326 = vmatpush.bf16.msra.mxu0 %v2263
        %2327 = vmatpush.bf16.msra.mxu0 %v2262
        %2328 = vmatpush.bf16.msra.mxu0 %v2261
        %2329 = vmatpush.bf16.msra.mxu0 %v2260
        %2330 = vmatpush.bf16.msra.mxu0 %v2259
        %2331 = vmatmul.bf16.gmra.mxu0 %v2063
        %v2332 = vpop.f32.mrf.mxu0
        %v2333 = vadd.f32 0.0, %v2332
        %v2334 = vpop.f32.mrf.mxu0
        %v2335 = vadd.f32 0.0, %v2334
        %2336 = vdwg.mxu0
        %2337 = vmatpush.bf16.msra.mxu0 %v2274
        %2338 = vmatpush.bf16.msra.mxu0 %v2273
        %2339 = vmatpush.bf16.msra.mxu0 %v2272
        %2340 = vmatpush.bf16.msra.mxu0 %v2271
        %2341 = vmatpush.bf16.msra.mxu0 %v2270
        %2342 = vmatpush.bf16.msra.mxu0 %v2269
        %2343 = vmatpush.bf16.msra.mxu0 %v2268
        %2344 = vmatpush.bf16.msra.mxu0 %v2267
        %2345 = vmatmul.bf16.gmra.mxu0 %v2064
        %v2346 = vpop.f32.mrf.mxu0
        %v2347 = vadd.f32 %v2333, %v2346
        %v2348 = vpop.f32.mrf.mxu0
        %v2349 = vadd.f32 %v2335, %v2348
        %2350 = vdwg.mxu0
        %2351 = vmatpush.bf16.msra.mxu0 %v2282
        %2352 = vmatpush.bf16.msra.mxu0 %v2281
        %2353 = vmatpush.bf16.msra.mxu0 %v2280
        %2354 = vmatpush.bf16.msra.mxu0 %v2279
        %2355 = vmatpush.bf16.msra.mxu0 %v2278
        %2356 = vmatpush.bf16.msra.mxu0 %v2277
        %2357 = vmatpush.bf16.msra.mxu0 %v2276
        %2358 = vmatpush.bf16.msra.mxu0 %v2275
        %2359 = vmatmul.bf16.gmra.mxu0 %v2065
        %v2360 = vpop.f32.mrf.mxu0
        %v2361 = vadd.f32 %v2347, %v2360
        %v2362 = vpop.f32.mrf.mxu0
        %v2363 = vadd.f32 %v2349, %v2362
        %2364 = vdwg.mxu0
        %2365 = vmatpush.bf16.msra.mxu0 %v2290
        %2366 = vmatpush.bf16.msra.mxu0 %v2289
        %2367 = vmatpush.bf16.msra.mxu0 %v2288
        %2368 = vmatpush.bf16.msra.mxu0 %v2287
        %2369 = vmatpush.bf16.msra.mxu0 %v2286
        %2370 = vmatpush.bf16.msra.mxu0 %v2285
        %2371 = vmatpush.bf16.msra.mxu0 %v2284
        %2372 = vmatpush.bf16.msra.mxu0 %v2283
        %2373 = vmatmul.bf16.gmra.mxu0 %v2066
        %v2374 = vpop.f32.mrf.mxu0
        %v2375 = vadd.f32 %v2361, %v2374
        %v2376 = vpop.f32.mrf.mxu0
        %v2377 = vadd.f32 %v2363, %v2376
        %2378 = vdwg.mxu0
        %v2379 = vadd.f32 %v1937, %v2375
        %v2380 = vadd.f32 %v1939, %v2377
        %v2381 = vld [vmem:[%s363 + $0x30] sm:$0xff]
        %v2382 = vld [vmem:[%s363 + $0x38] sm:$0xff]
        %v2383 = vld [vmem:[%s363 + $0x70] sm:$0xff]
        %v2384 = vld [vmem:[%s363 + $0x78] sm:$0xff]
        %v2385 = vld [vmem:[%s363 + $0xb0] sm:$0xff]
        %v2386 = vld [vmem:[%s363 + $0xb8] sm:$0xff]
        %v2387 = vld [vmem:[%s363 + $0xf0] sm:$0xff]
        %v2388 = vld [vmem:[%s363 + $0xf8] sm:$0xff]
        %v2389 = vld [vmem:[%s358 + $0xc] sm:$0xf]
        %v2391 = vperm.slane %v2389, 0
        %v2392 = vperm.slane %v2389, 1
        %v2393 = vperm.slane %v2389, 2
        %v2394 = vperm.slane %v2389, 3
        %v2407 = vunpack.c.l.b16 %v2381
        %v2408 = vunpack.c.h.b16 %v2381
        %v2409 = vunpack.c.l.b16 %v2382
        %v2410 = vunpack.c.h.b16 %v2382
        %v2411 = vunpack.c.l.b16 %v2383
        %v2412 = vunpack.c.h.b16 %v2383
        %v2413 = vunpack.c.l.b16 %v2384
        %v2414 = vunpack.c.h.b16 %v2384
        %v2415 = vunpack.c.l.b16 %v2385
        %v2416 = vunpack.c.h.b16 %v2385
        %v2417 = vunpack.c.l.b16 %v2386
        %v2418 = vunpack.c.h.b16 %v2386
        %v2419 = vunpack.c.l.b16 %v2387
        %v2420 = vunpack.c.h.b16 %v2387
        %v2421 = vunpack.c.l.b16 %v2388
        %v2422 = vunpack.c.h.b16 %v2388
        %v2423 = vpack.c.b16 %v2411, %v2407
        %v2424 = vpack.c.b16 %v2412, %v2408
        %v2425 = vpack.c.b16 %v2413, %v2409
        %v2426 = vpack.c.b16 %v2414, %v2410
        %v2427 = vpack.c.b16 %v2419, %v2415
        %v2428 = vpack.c.b16 %v2420, %v2416
        %v2429 = vpack.c.b16 %v2421, %v2417
        %v2430 = vpack.c.b16 %v2422, %v2418
        %2439 = vmatpush.bf16.msra.mxu0 0
        %2440 = vmatpush.bf16.msra.mxu0 0
        %2441 = vmatpush.bf16.msra.mxu0 0
        %2442 = vmatpush.bf16.msra.mxu0 0
        %2443 = vmatpush.bf16.msra.mxu0 0
        %2444 = vmatpush.bf16.msra.mxu0 0
        %2445 = vmatpush.bf16.msra.mxu0 %v2427
        %2446 = vmatpush.bf16.msra.mxu0 %v2423
        %2447 = vmatmul.bf16.gmra.mxu0 %v1121
        %v2448 = vpop.f32.mrf.mxu0
        %v2449 = vadd.f32 %v2391, %v2448
        %v2450 = vpop.f32.mrf.mxu0
        %v2451 = vadd.f32 %v2391, %v2450
        %2452 = vdwg.mxu0
        %2453 = vmatpush.bf16.msra.mxu0 0
        %2454 = vmatpush.bf16.msra.mxu0 0
        %2455 = vmatpush.bf16.msra.mxu0 0
        %2456 = vmatpush.bf16.msra.mxu0 0
        %2457 = vmatpush.bf16.msra.mxu0 0
        %2458 = vmatpush.bf16.msra.mxu0 0
        %2459 = vmatpush.bf16.msra.mxu0 %v2428
        %2460 = vmatpush.bf16.msra.mxu0 %v2424
        %2461 = vmatmul.bf16.gmra.mxu0 %v1121
        %v2462 = vpop.f32.mrf.mxu0
        %v2463 = vadd.f32 %v2392, %v2462
        %v2464 = vpop.f32.mrf.mxu0
        %v2465 = vadd.f32 %v2392, %v2464
        %2466 = vdwg.mxu0
        %2467 = vmatpush.bf16.msra.mxu0 0
        %2468 = vmatpush.bf16.msra.mxu0 0
        %2469 = vmatpush.bf16.msra.mxu0 0
        %2470 = vmatpush.bf16.msra.mxu0 0
        %2471 = vmatpush.bf16.msra.mxu0 0
        %2472 = vmatpush.bf16.msra.mxu0 0
        %2473 = vmatpush.bf16.msra.mxu0 %v2429
        %2474 = vmatpush.bf16.msra.mxu0 %v2425
        %2475 = vmatmul.bf16.gmra.mxu0 %v1121
        %v2476 = vpop.f32.mrf.mxu0
        %v2477 = vadd.f32 %v2393, %v2476
        %v2478 = vpop.f32.mrf.mxu0
        %v2479 = vadd.f32 %v2393, %v2478
        %2480 = vdwg.mxu0
        %2481 = vmatpush.bf16.msra.mxu0 0
        %2482 = vmatpush.bf16.msra.mxu0 0
        %2483 = vmatpush.bf16.msra.mxu0 0
        %2484 = vmatpush.bf16.msra.mxu0 0
        %2485 = vmatpush.bf16.msra.mxu0 0
        %2486 = vmatpush.bf16.msra.mxu0 0
        %2487 = vmatpush.bf16.msra.mxu0 %v2430
        %2488 = vmatpush.bf16.msra.mxu0 %v2426
        %2489 = vmatmul.bf16.gmra.mxu0 %v1121
        %v2490 = vpop.f32.mrf.mxu0
        %v2491 = vadd.f32 %v2394, %v2490
        %v2492 = vpop.f32.mrf.mxu0
        %v2493 = vadd.f32 %v2394, %v2492
        %2494 = vdwg.mxu0
        %v2495 = vmax.f32 %v2449, 0.0
        %v2496 = vmax.f32 %v2463, 0.0
        %v2497 = vmax.f32 %v2477, 0.0
        %v2498 = vmax.f32 %v2491, 0.0
        %v2499 = vmax.f32 %v2451, 0.0
        %v2500 = vmax.f32 %v2465, 0.0
        %v2501 = vmax.f32 %v2479, 0.0
        %v2502 = vmax.f32 %v2493, 0.0
        %v2503 = vpack.c.bf16 %v2499, %v2495
        %v2504 = vpack.c.bf16 %v2500, %v2496
        %v2505 = vpack.c.bf16 %v2501, %v2497
        %v2506 = vpack.c.bf16 %v2502, %v2498
        %v2507 = vld [vmem:[%s368 + $0x300] sm:$0xf]
        %v2508 = vld [vmem:[%s368 + $0x304] sm:$0xf]
        %v2509 = vld [vmem:[%s368 + $0x308] sm:$0xf]
        %v2510 = vld [vmem:[%s368 + $0x30c] sm:$0xf]
        %v2511 = vld [vmem:[%s368 + $0x310] sm:$0xf]
        %v2512 = vld [vmem:[%s368 + $0x314] sm:$0xf]
        %v2513 = vld [vmem:[%s368 + $0x318] sm:$0xf]
        %v2514 = vld [vmem:[%s368 + $0x31c] sm:$0xf]
        %v2515 = vld [vmem:[%s368 + $0x320] sm:$0xf]
        %v2516 = vld [vmem:[%s368 + $0x324] sm:$0xf]
        %v2517 = vld [vmem:[%s368 + $0x328] sm:$0xf]
        %v2518 = vld [vmem:[%s368 + $0x32c] sm:$0xf]
        %v2519 = vld [vmem:[%s368 + $0x330] sm:$0xf]
        %v2520 = vld [vmem:[%s368 + $0x334] sm:$0xf]
        %v2521 = vld [vmem:[%s368 + $0x338] sm:$0xf]
        %v2522 = vld [vmem:[%s368 + $0x33c] sm:$0xf]
        %v2523 = vld [vmem:[%s368 + $0x340] sm:$0xf]
        %v2524 = vld [vmem:[%s368 + $0x344] sm:$0xf]
        %v2525 = vld [vmem:[%s368 + $0x348] sm:$0xf]
        %v2526 = vld [vmem:[%s368 + $0x34c] sm:$0xf]
        %v2527 = vld [vmem:[%s368 + $0x350] sm:$0xf]
        %v2528 = vld [vmem:[%s368 + $0x354] sm:$0xf]
        %v2529 = vld [vmem:[%s368 + $0x358] sm:$0xf]
        %v2530 = vld [vmem:[%s368 + $0x35c] sm:$0xf]
        %v2531 = vld [vmem:[%s368 + $0x360] sm:$0xf]
        %v2532 = vld [vmem:[%s368 + $0x364] sm:$0xf]
        %v2533 = vld [vmem:[%s368 + $0x368] sm:$0xf]
        %v2534 = vld [vmem:[%s368 + $0x36c] sm:$0xf]
        %v2535 = vld [vmem:[%s368 + $0x370] sm:$0xf]
        %v2536 = vld [vmem:[%s368 + $0x374] sm:$0xf]
        %v2537 = vld [vmem:[%s368 + $0x378] sm:$0xf]
        %v2538 = vld [vmem:[%s368 + $0x37c] sm:$0xf]
        %v2539 = vld [vmem:[%s368 + $0x380] sm:$0xf]
        %v2540 = vld [vmem:[%s368 + $0x384] sm:$0xf]
        %v2541 = vld [vmem:[%s368 + $0x388] sm:$0xf]
        %v2542 = vld [vmem:[%s368 + $0x38c] sm:$0xf]
        %v2543 = vld [vmem:[%s368 + $0x390] sm:$0xf]
        %v2544 = vld [vmem:[%s368 + $0x394] sm:$0xf]
        %v2545 = vld [vmem:[%s368 + $0x398] sm:$0xf]
        %v2546 = vld [vmem:[%s368 + $0x39c] sm:$0xf]
        %v2547 = vld [vmem:[%s368 + $0x3a0] sm:$0xf]
        %v2548 = vld [vmem:[%s368 + $0x3a4] sm:$0xf]
        %v2549 = vld [vmem:[%s368 + $0x3a8] sm:$0xf]
        %v2550 = vld [vmem:[%s368 + $0x3ac] sm:$0xf]
        %v2551 = vld [vmem:[%s368 + $0x3b0] sm:$0xf]
        %v2552 = vld [vmem:[%s368 + $0x3b4] sm:$0xf]
        %v2553 = vld [vmem:[%s368 + $0x3b8] sm:$0xf]
        %v2554 = vld [vmem:[%s368 + $0x3bc] sm:$0xf]
        %v2555 = vld [vmem:[%s368 + $0x3c0] sm:$0xf]
        %v2556 = vld [vmem:[%s368 + $0x3c4] sm:$0xf]
        %v2557 = vld [vmem:[%s368 + $0x3c8] sm:$0xf]
        %v2558 = vld [vmem:[%s368 + $0x3cc] sm:$0xf]
        %v2559 = vld [vmem:[%s368 + $0x3d0] sm:$0xf]
        %v2560 = vld [vmem:[%s368 + $0x3d4] sm:$0xf]
        %v2561 = vld [vmem:[%s368 + $0x3d8] sm:$0xf]
        %v2562 = vld [vmem:[%s368 + $0x3dc] sm:$0xf]
        %v2563 = vld [vmem:[%s368 + $0x3e0] sm:$0xf]
        %v2564 = vld [vmem:[%s368 + $0x3e4] sm:$0xf]
        %v2565 = vld [vmem:[%s368 + $0x3e8] sm:$0xf]
        %v2566 = vld [vmem:[%s368 + $0x3ec] sm:$0xf]
        %v2567 = vld [vmem:[%s368 + $0x3f0] sm:$0xf]
        %v2568 = vld [vmem:[%s368 + $0x3f4] sm:$0xf]
        %v2569 = vld [vmem:[%s368 + $0x3f8] sm:$0xf]
        %v2570 = vld [vmem:[%s368 + $0x3fc] sm:$0xf]
        %v2635 = vunpack.c.l.b16 %v2507
        %v2636 = vunpack.c.l.b16 %v2508
        %v2637 = vunpack.c.l.b16 %v2509
        %v2638 = vunpack.c.l.b16 %v2510
        %v2639 = vunpack.c.l.b16 %v2511
        %v2640 = vunpack.c.l.b16 %v2512
        %v2641 = vunpack.c.l.b16 %v2513
        %v2642 = vunpack.c.l.b16 %v2514
        %v2643 = vunpack.c.l.b16 %v2515
        %v2644 = vunpack.c.l.b16 %v2516
        %v2645 = vunpack.c.l.b16 %v2517
        %v2646 = vunpack.c.l.b16 %v2518
        %v2647 = vunpack.c.l.b16 %v2519
        %v2648 = vunpack.c.l.b16 %v2520
        %v2649 = vunpack.c.l.b16 %v2521
        %v2650 = vunpack.c.l.b16 %v2522
        %v2651 = vunpack.c.l.b16 %v2523
        %v2652 = vunpack.c.l.b16 %v2524
        %v2653 = vunpack.c.l.b16 %v2525
        %v2654 = vunpack.c.l.b16 %v2526
        %v2655 = vunpack.c.l.b16 %v2527
        %v2656 = vunpack.c.l.b16 %v2528
        %v2657 = vunpack.c.l.b16 %v2529
        %v2658 = vunpack.c.l.b16 %v2530
        %v2659 = vunpack.c.l.b16 %v2531
        %v2660 = vunpack.c.l.b16 %v2532
        %v2661 = vunpack.c.l.b16 %v2533
        %v2662 = vunpack.c.l.b16 %v2534
        %v2663 = vunpack.c.l.b16 %v2535
        %v2664 = vunpack.c.l.b16 %v2536
        %v2665 = vunpack.c.l.b16 %v2537
        %v2666 = vunpack.c.l.b16 %v2538
        %v2667 = vunpack.c.l.b16 %v2539
        %v2668 = vunpack.c.l.b16 %v2540
        %v2669 = vunpack.c.l.b16 %v2541
        %v2670 = vunpack.c.l.b16 %v2542
        %v2671 = vunpack.c.l.b16 %v2543
        %v2672 = vunpack.c.l.b16 %v2544
        %v2673 = vunpack.c.l.b16 %v2545
        %v2674 = vunpack.c.l.b16 %v2546
        %v2675 = vunpack.c.l.b16 %v2547
        %v2676 = vunpack.c.l.b16 %v2548
        %v2677 = vunpack.c.l.b16 %v2549
        %v2678 = vunpack.c.l.b16 %v2550
        %v2679 = vunpack.c.l.b16 %v2551
        %v2680 = vunpack.c.l.b16 %v2552
        %v2681 = vunpack.c.l.b16 %v2553
        %v2682 = vunpack.c.l.b16 %v2554
        %v2683 = vunpack.c.l.b16 %v2555
        %v2684 = vunpack.c.l.b16 %v2556
        %v2685 = vunpack.c.l.b16 %v2557
        %v2686 = vunpack.c.l.b16 %v2558
        %v2687 = vunpack.c.l.b16 %v2559
        %v2688 = vunpack.c.l.b16 %v2560
        %v2689 = vunpack.c.l.b16 %v2561
        %v2690 = vunpack.c.l.b16 %v2562
        %v2691 = vunpack.c.l.b16 %v2563
        %v2692 = vunpack.c.l.b16 %v2564
        %v2693 = vunpack.c.l.b16 %v2565
        %v2694 = vunpack.c.l.b16 %v2566
        %v2695 = vunpack.c.l.b16 %v2567
        %v2696 = vunpack.c.l.b16 %v2568
        %v2697 = vunpack.c.l.b16 %v2569
        %v2698 = vunpack.c.l.b16 %v2570
        %v2699 = vpack.c.b16 %v2636, %v2635
        %v2700 = vpack.c.b16 %v2638, %v2637
        %v2701 = vpack.c.b16 %v2640, %v2639
        %v2702 = vpack.c.b16 %v2642, %v2641
        %v2703 = vpack.c.b16 %v2644, %v2643
        %v2704 = vpack.c.b16 %v2646, %v2645
        %v2705 = vpack.c.b16 %v2648, %v2647
        %v2706 = vpack.c.b16 %v2650, %v2649
        %v2707 = vpack.c.b16 %v2652, %v2651
        %v2708 = vpack.c.b16 %v2654, %v2653
        %v2709 = vpack.c.b16 %v2656, %v2655
        %v2710 = vpack.c.b16 %v2658, %v2657
        %v2711 = vpack.c.b16 %v2660, %v2659
        %v2712 = vpack.c.b16 %v2662, %v2661
        %v2713 = vpack.c.b16 %v2664, %v2663
        %v2714 = vpack.c.b16 %v2666, %v2665
        %v2715 = vpack.c.b16 %v2668, %v2667
        %v2716 = vpack.c.b16 %v2670, %v2669
        %v2717 = vpack.c.b16 %v2672, %v2671
        %v2718 = vpack.c.b16 %v2674, %v2673
        %v2719 = vpack.c.b16 %v2676, %v2675
        %v2720 = vpack.c.b16 %v2678, %v2677
        %v2721 = vpack.c.b16 %v2680, %v2679
        %v2722 = vpack.c.b16 %v2682, %v2681
        %v2723 = vpack.c.b16 %v2684, %v2683
        %v2724 = vpack.c.b16 %v2686, %v2685
        %v2725 = vpack.c.b16 %v2688, %v2687
        %v2726 = vpack.c.b16 %v2690, %v2689
        %v2727 = vpack.c.b16 %v2692, %v2691
        %v2728 = vpack.c.b16 %v2694, %v2693
        %v2729 = vpack.c.b16 %v2696, %v2695
        %v2730 = vpack.c.b16 %v2698, %v2697
        %2763 = vmatpush.bf16.msra.mxu0 %v2706
        %2764 = vmatpush.bf16.msra.mxu0 %v2705
        %2765 = vmatpush.bf16.msra.mxu0 %v2704
        %2766 = vmatpush.bf16.msra.mxu0 %v2703
        %2767 = vmatpush.bf16.msra.mxu0 %v2702
        %2768 = vmatpush.bf16.msra.mxu0 %v2701
        %2769 = vmatpush.bf16.msra.mxu0 %v2700
        %2770 = vmatpush.bf16.msra.mxu0 %v2699
        %2771 = vmatmul.bf16.gmra.mxu0 %v2503
        %v2772 = vpop.f32.mrf.mxu0
        %v2773 = vadd.f32 0.0, %v2772
        %v2774 = vpop.f32.mrf.mxu0
        %v2775 = vadd.f32 0.0, %v2774
        %2776 = vdwg.mxu0
        %2777 = vmatpush.bf16.msra.mxu0 %v2714
        %2778 = vmatpush.bf16.msra.mxu0 %v2713
        %2779 = vmatpush.bf16.msra.mxu0 %v2712
        %2780 = vmatpush.bf16.msra.mxu0 %v2711
        %2781 = vmatpush.bf16.msra.mxu0 %v2710
        %2782 = vmatpush.bf16.msra.mxu0 %v2709
        %2783 = vmatpush.bf16.msra.mxu0 %v2708
        %2784 = vmatpush.bf16.msra.mxu0 %v2707
        %2785 = vmatmul.bf16.gmra.mxu0 %v2504
        %v2786 = vpop.f32.mrf.mxu0
        %v2787 = vadd.f32 %v2773, %v2786
        %v2788 = vpop.f32.mrf.mxu0
        %v2789 = vadd.f32 %v2775, %v2788
        %2790 = vdwg.mxu0
        %2791 = vmatpush.bf16.msra.mxu0 %v2722
        %2792 = vmatpush.bf16.msra.mxu0 %v2721
        %2793 = vmatpush.bf16.msra.mxu0 %v2720
        %2794 = vmatpush.bf16.msra.mxu0 %v2719
        %2795 = vmatpush.bf16.msra.mxu0 %v2718
        %2796 = vmatpush.bf16.msra.mxu0 %v2717
        %2797 = vmatpush.bf16.msra.mxu0 %v2716
        %2798 = vmatpush.bf16.msra.mxu0 %v2715
        %2799 = vmatmul.bf16.gmra.mxu0 %v2505
        %v2800 = vpop.f32.mrf.mxu0
        %v2801 = vadd.f32 %v2787, %v2800
        %v2802 = vpop.f32.mrf.mxu0
        %v2803 = vadd.f32 %v2789, %v2802
        %2804 = vdwg.mxu0
        %2805 = vmatpush.bf16.msra.mxu0 %v2730
        %2806 = vmatpush.bf16.msra.mxu0 %v2729
        %2807 = vmatpush.bf16.msra.mxu0 %v2728
        %2808 = vmatpush.bf16.msra.mxu0 %v2727
        %2809 = vmatpush.bf16.msra.mxu0 %v2726
        %2810 = vmatpush.bf16.msra.mxu0 %v2725
        %2811 = vmatpush.bf16.msra.mxu0 %v2724
        %2812 = vmatpush.bf16.msra.mxu0 %v2723
        %2813 = vmatmul.bf16.gmra.mxu0 %v2506
        %v2814 = vpop.f32.mrf.mxu0
        %v2815 = vadd.f32 %v2801, %v2814
        %v2816 = vpop.f32.mrf.mxu0
        %v2817 = vadd.f32 %v2803, %v2816
        %2818 = vdwg.mxu0
        %v2819 = vadd.f32 %v2379, %v2815
        %v2820 = vadd.f32 %v2380, %v2817
        %v2821 = vld [vmem:[%s354 + $0x8] sm:$0x1]
        %v2822 = vperm.slane %v2821, 0
        %v2823 = vadd.f32 %v2819, %v2822
        %v2824 = vadd.f32 %v2820, %v2822
        %v2825 = vadd.f32 %v1059, %v2823
        %v2826 = vadd.f32 %v1060, %v2824
        %v2827 = vld [vmem:[%s354 + $0x6] sm:$0x1]
        %v2828 = vld [vmem:[%s354 + $0x7] sm:$0x1]
        %v2829 = vsel %vm432, %v2825, 0.0
        %2830 = vadd.xlane.f32.xlu0 %v2829
        %v2831 = vpop.xlane.xlu0 %2830
        %v2832 = vsel %vm432, %v2826, 0.0
        %2833 = vadd.xlane.f32.xlu0 %v2832
        %v2834 = vpop.xlane.xlu0 %2833
        %v2835 = vmul.f32 %v2831, %v1016
        %v2836 = vmul.f32 %v2834, %v1016
        %v2837 = vsub.f32 %v2825, %v2835
        %v2838 = vsub.f32 %v2826, %v2836
        %v2839 = vmul.f32 %v2837, %v2837
        %v2840 = vmul.f32 %v2838, %v2838
        %v2841 = vsel %vm432, %v2839, 0.0
        %2842 = vadd.xlane.f32.xlu0 %v2841
        %v2843 = vpop.xlane.xlu0 %2842
        %v2844 = vsel %vm432, %v2840, 0.0
        %2845 = vadd.xlane.f32.xlu0 %v2844
        %v2846 = vpop.xlane.xlu0 %2845
        %v2847 = vmul.f32 %v2843, %v1016
        %v2848 = vmul.f32 %v2846, %v1016
        %v2849 = vadd.f32 %v2847, 1e-05
        %v2850 = vadd.f32 %v2848, 1e-05
        %v2851 = vrsqrt.pop %v2849
        %v2852 = vmul.f32 %v2851, %v2849
        %v2853 = vmul.f32 %v2852, %v2851
        %v2854 = vmul.f32 0.5, %v2853
        %v2855 = vsub.f32 1.5, %v2854
        %v2856 = vmul.f32 %v2851, %v2855
        %vm2857 = vweird.f32 %v2849
        %vm2858 = vweird.f32 %v2851
        %vm2859 = vmor %vm2857, %vm2858
        %v2860 = vsel %vm2859, %v2851, %v2856
        %v2861 = vrsqrt.pop %v2850
        %v2862 = vmul.f32 %v2861, %v2850
        %v2863 = vmul.f32 %v2862, %v2861
        %v2864 = vmul.f32 0.5, %v2863
        %v2865 = vsub.f32 1.5, %v2864
        %v2866 = vmul.f32 %v2861, %v2865
        %vm2867 = vweird.f32 %v2850
        %vm2868 = vweird.f32 %v2861
        %vm2869 = vmor %vm2867, %vm2868
        %v2870 = vsel %vm2869, %v2861, %v2866
        %v2871 = vmul.f32 %v2837, %v2860
        %v2872 = vmul.f32 %v2838, %v2870
        %v2873 = vperm.slane %v2827, 0
        %v2874 = vmul.f32 %v2871, %v2873
        %v2875 = vmul.f32 %v2872, %v2873
        %v2876 = vperm.slane %v2828, 0
        %v2877 = vadd.f32 %v2874, %v2876
        %v2878 = vadd.f32 %v2875, %v2876
        %2879 = vst.msk [vmem:[#allocation2] sm:$0xff] %vm432, %v2877
        %2880 = vst.msk [vmem:[#allocation2 + $0x8] sm:$0xff] %vm432, %v2878
        %p2881 = scmp.eq.s32.totalorder %s20, 1
        // Predicated region
        $region57: #{tpu_custom_call.1} parent=51 // pred_check
          %p2882 = pneg %p2881
        $region58: #{tpu_custom_call.1} parent=51 // pred_check_branch
          %2884 = sbr.rel (%p2882) target = $region60
        $region59: #{tpu_custom_call.1} parent=51 // pred_region
          %v2885 = vld [vmem:[%s7] sm:$0xff]
          %v2886 = vld [vmem:[%s7 + $0x8] sm:$0xff]
          %v2887 = vld [vmem:[%s7 + $0x10] sm:$0xff]
          %v2888 = vld [vmem:[%s7 + $0x18] sm:$0xff]
          %v2889 = vld [vmem:[%s7 + $0x20] sm:$0x1]
          %v2890 = vperm.slane %v2889, 0
          %v2892 = vsel %vm432, %v2877, 0
          %v2895 = vsel %vm432, %v2878, 0
          %2897 = vmatpush.msra.mxu0 0.0
          %2898 = vmatpush.msra.mxu0 0.0
          %2899 = vmatpush.msra.mxu0 0.0
          %2900 = vmatpush.msra.mxu0 0.0
          %2901 = vmatpush.msra.mxu0 0.0
          %2902 = vmatpush.msra.mxu0 0.0
          %2903 = vmatpush.msra.mxu0 0.0
          %2904 = vmatpush.msra.mxu0 0.0
          %2905 = vmatpush.msra.mxu0 0.0
          %2906 = vmatpush.msra.mxu0 0.0
          %2907 = vmatpush.msra.mxu0 0.0
          %2908 = vmatpush.msra.mxu0 0.0
          %2909 = vmatpush.msra.mxu0 %v2888
          %2910 = vmatpush.msra.mxu0 %v2887
          %2911 = vmatpush.msra.mxu0 %v2886
          %2912 = vmatpush.msra.mxu0 %v2885
          %2913 = vmatmul.f32.gmra.mxu0 %v2892
          %v2914 = vpop.f32.mrf.mxu0
          %v2915 = vadd.f32 %v2890, %v2914
          %2916 = vmatmul.f32.gmra.mxu0 %v2895
          %v2917 = vpop.f32.mrf.mxu0
          %v2918 = vadd.f32 %v2890, %v2917
          %2919 = vdwg.mxu0
          %v2920 = vld [vmem:[%s7 + $0x70] sm:$0x1]
          %vm2921 = vcmp.gt.f32.partialorder %v2915, 0.0
          %vm2922 = vcmp.gt.f32.partialorder %v2918, 0.0
          %s2924 = vtos %v2920
          %v2925 = vstv %s2924
          %v2927 = vmul.f32 %v2915, %v2925
          %v2928 = vmul.f32 %v2918, %v2925
          %v2929 = vsel %vm2921, %v2915, %v2927
          %v2930 = vsel %vm2922, %v2918, %v2928
          %v2931 = vld [vmem:[%s7 + $0x28] sm:$0xff]
          %v2932 = vld [vmem:[%s7 + $0x30] sm:$0xff]
          %v2933 = vld [vmem:[%s7 + $0x38] sm:$0xff]
          %v2934 = vld [vmem:[%s7 + $0x40] sm:$0xff]
          %v2935 = vld [vmem:[%s7 + $0x48] sm:$0xff]
          %v2936 = vld [vmem:[%s7 + $0x50] sm:$0xff]
          %v2937 = vld [vmem:[%s7 + $0x58] sm:$0xff]
          %v2938 = vld [vmem:[%s7 + $0x60] sm:$0xff]
          %v2939 = vld [vmem:[%s7 + $0x68] sm:$0x1]
          %v2940 = vperm.slane %v2939, 0
          %vm2941 = vcmask 523264
          %v2943 = vsel %vm2941, %v2929, 0
          %v2946 = vsel %vm2941, %v2930, 0
          %2948 = vmatpush.msra.mxu0 0.0
          %2949 = vmatpush.msra.mxu0 0.0
          %2950 = vmatpush.msra.mxu0 0.0
          %2951 = vmatpush.msra.mxu0 0.0
          %2952 = vmatpush.msra.mxu0 0.0
          %2953 = vmatpush.msra.mxu0 0.0
          %2954 = vmatpush.msra.mxu0 0.0
          %2955 = vmatpush.msra.mxu0 0.0
          %2956 = vmatpush.msra.mxu0 %v2938
          %2957 = vmatpush.msra.mxu0 %v2937
          %2958 = vmatpush.msra.mxu0 %v2936
          %2959 = vmatpush.msra.mxu0 %v2935
          %2960 = vmatpush.msra.mxu0 %v2934
          %2961 = vmatpush.msra.mxu0 %v2933
          %2962 = vmatpush.msra.mxu0 %v2932
          %2963 = vmatpush.msra.mxu0 %v2931
          %2964 = vmatmul.f32.gmra.mxu0 %v2943
          %v2965 = vpop.f32.mrf.mxu0
          %v2966 = vadd.f32 %v2940, %v2965
          %2967 = vmatmul.f32.gmra.mxu0 %v2946
          %v2968 = vpop.f32.mrf.mxu0
          %v2969 = vadd.f32 %v2940, %v2968
          %2970 = vdwg.mxu0
          %2971 = vst [vmem:[#allocation3] sm:$0xff] %v2966
          %2972 = vst [vmem:[#allocation3 + $0x8] sm:$0xff] %v2969
        $region60: #{tpu_custom_call.1} parent=51 // pred_fallthru
          _
        // Predicated region
        $region61: #{tpu_custom_call.1} parent=51 // pred_check
          %p2973 = pneg %p226
        $region62: #{tpu_custom_call.1} parent=51 // pred_check_branch
          %2975 = sbr.rel (%p2973) target = $region64
        $region63: #{tpu_custom_call.1} parent=51 // pred_region
          %2977 = vsyncadd [#allocation4], 0
          %s2978 = sshll.u32 [#allocation3], 4
          %s2979 = int_to_ptr.vmem [resolvable:$true] %s2978
          %s2980 = sshll.u32 %s8, 4
          %s2981 = int_to_ptr.hbm [resolvable:$true] %s2980
          %2986 = dma.vmem_to_hbm [thread:$0]  %s2979, 256, %s2981, [#allocation4], 128, 128, 8
        $region64: #{tpu_custom_call.1} parent=51 // pred_fallthru
          _
        // Predicated region
        $region65: #{tpu_custom_call.1} parent=51 // pred_check
          %p2987 = pneg %p226
        $region66: #{tpu_custom_call.1} parent=51 // pred_check_branch
          %2989 = sbr.rel (%p2987) target = $region68
        $region67: #{tpu_custom_call.1} parent=51 // pred_region
          %2991 = dma.done [#allocation4], 256
        $region68: #{tpu_custom_call.1} parent=51 // pred_fallthru
          _
      $region52: #{tpu_custom_call.1} parent=5 // pred_fallthru
        _
      %p2992 = scmp.le.s32.totalorder 2, %s15
      // Predicated region
      $region69: #{tpu_custom_call.1} parent=5 // pred_check
        %p2993 = pneg %p2992
      $region70: #{tpu_custom_call.1} parent=5 // pred_check_branch
        %2995 = sbr.rel (%p2993) target = $region72
      $region71: #{tpu_custom_call.1} parent=5 // pred_region
        %s2996 = ssub.s32 %s15, 2
      $region72: #{tpu_custom_call.1} parent=5 // pred_fallthru
        _
    $region6: #{tpu_custom_call.1} parent=1 // loop_footer
      %s19 = sadd.s32 1, %s15
    $region7: #{tpu_custom_call.1} parent=1 // loop_footer_branch
      %14 = sbr.rel target = $region3
    $region8: #{tpu_custom_call.1} parent=1 // loop_exit
      _
    %2997 = vsyncpa [#allocation4], 1
    %s2998 = scalar_lea.sflag [#allocation4], 1
    %2999 = vsyncpa %s2998, 1

</llo_original>
